<compile_context>
chip_gen: v7x
topology: tpu7x:2x2x1
jax: 0.10.0
libtpu: 0.0.40
codegen_flags: <defaults>
</compile_context>

<pallas_src>
import functools

import jax
import jax.numpy as jnp
from jax.experimental import pallas as pl
from jax.experimental.pallas import tpu as pltpu


def _round_up(x, m):
    return ((x + m - 1) // m) * m


# -----------------------------------------------------------------------------
# In-kernel building blocks:  tanh(x @ W + b)  with f32 accumulation/epilogue.
# -----------------------------------------------------------------------------
def _dot32(x, w_ref):
    return jnp.dot(x.astype(w_ref.dtype), w_ref[...],
                   preferred_element_type=jnp.float32)


def _layer(x, w_ref, b_ref):
    return jnp.tanh(_dot32(x, w_ref) + b_ref[...].astype(jnp.float32))


# -----------------------------------------------------------------------------
# Single fused kernel: full forward pass for one batch tile.
# The concat before encoder_fuse and the slicing after decoder_fuse are never
# materialized: the fuse weights are pre-split by rows / columns respectively.
# -----------------------------------------------------------------------------
def _fused_forward_kernel(
    xt_ref, xp_ref, xs_ref,
    # encoder branches
    ewt1, ebt1, ewt2, ebt2,
    ewp1, ebp1, ewp2, ebp2,
    ews1, ebs1, ews2, ebs2,
    # encoder fuse (split by input rows)
    efw_t, efw_p, efw_s, efb,
    # decoder fuse (split by output columns)
    dfw_t, dfb_t, dfw_p, dfb_p, dfw_s, dfb_s,
    # decoder branches
    dwt1, dbt1, dwt2, dbt2,
    dwp1, dbp1, dwp2, dbp2,
    dws1, dbs1, dws2, dbs2,
    # outputs
    ot_ref, op_ref, os_ref, z_ref,
):
    # ---- encoder ------------------------------------------------------------
    et = _layer(_layer(xt_ref[...], ewt1, ebt1), ewt2, ebt2)
    ep = _layer(_layer(xp_ref[...], ewp1, ebp1), ewp2, ebp2)
    es = _layer(_layer(xs_ref[...], ews1, ebs1), ews2, ebs2)
    zacc = _dot32(et, efw_t) + _dot32(ep, efw_p) + _dot32(es, efw_s)
    z = jnp.tanh(zacc + efb[...].astype(jnp.float32))
    z_ref[...] = z.astype(z_ref.dtype)

    # ---- decoder: interleave each fuse chunk with its own branch so only one
    # modality's f32 intermediates are live at a time (bounds VMEM scratch). --
    tc = _layer(z, dfw_t, dfb_t)
    ot_ref[...] = _layer(_layer(tc, dwt1, dbt1), dwt2, dbt2).astype(ot_ref.dtype)
    pc = _layer(z, dfw_p, dfb_p)
    op_ref[...] = _layer(_layer(pc, dwp1, dbp1), dwp2, dbp2).astype(op_ref.dtype)
    sc = _layer(z, dfw_s, dfb_s)
    os_ref[...] = _layer(_layer(sc, dws1, dbs1), dws2, dbs2).astype(os_ref.dtype)


# -----------------------------------------------------------------------------
# pallas_call plumbing
# -----------------------------------------------------------------------------
def _weight_spec(arr):
    zeros = (0,) * arr.ndim
    index_map = lambda i: zeros
    try:
        # Constant across grid steps -> single-buffer: DMA'd once, half the
        # VMEM footprint of the default double buffer.
        return pl.BlockSpec(arr.shape, index_map, pipeline_mode=pl.Buffered(1))
    except Exception:  # older jax without pipeline_mode support
        return pl.BlockSpec(arr.shape, index_map)


def _vmem_capacity_bytes():
    try:
        return int(pltpu.get_tpu_info().vmem_capacity_bytes)
    except Exception:
        return 64 << 20  # conservative: v7x per-core VMEM


def _tile_and_pad(batch, vmem_capacity, weight_bytes, row_bytes):
    """Pick the batch tile (multiple of 8) and the padded batch it divides."""
    # Activation budget = physical VMEM minus single-buffered weights + margin.
    act_budget = int(vmem_capacity * 0.9) - weight_bytes - (4 << 20)
    mem_cap = max((act_budget // max(row_bytes, 1)) // 8 * 8, 8)
    # v5e/v6e (128 MiB VMEM): big tiles amortize per-step overhead;
    # v7x (64 MiB): keep activation tiles smaller.
    gen_cap = 1024 if vmem_capacity >= (100 << 20) else 256
    max_tile = min(gen_cap, mem_cap)

    if batch < 128:
        mb = min(_round_up(max(batch, 1), 8), max_tile)
        return mb, _round_up(max(batch, 1), mb)

    padded = _round_up(batch, 128)
    if batch >= 256:
        # Keep >= 2 grid steps so the "parallel" batch axis can be sharded
        # across both v7x TensorCores (negligible cost on 1-TC chips).
        max_tile = min(max_tile, padded // 2)
    for cand in (1024, 512, 256, 128):
        if cand <= max_tile and padded % cand == 0:
            return cand, padded
    mb = max(max_tile, 8)
    return mb, _round_up(batch, mb)


def multimodal_autoencoder_forward(params, x_text, x_ppi, x_seq,
                                   out_dtype=jnp.float32):
    """Mirrors MultiModalAutoencoder.forward: one fused pallas_call."""
    d, pd = params.dims, params.padded_dims
    batch = x_text.shape[0]
    out_itemsize = jnp.dtype(out_dtype).itemsize

    weights = params.flat_weights()
    weight_bytes = sum(int(a.size) * a.dtype.itemsize for a in weights)

    # Per-batch-row VMEM bytes: double-buffered in/out tiles + f32 intermediates.
    in_cols = pd["text_dim"] + pd["ppi_dim"] + pd["seq_dim"]
    out_cols = in_cols + pd["zdim"]
    inter_cols = (pd["text_dim1"] + pd["text_dim2"] + pd["ppi_dim1"]
                  + pd["ppi_dim2"] + pd["seq_dim1"] + pd["seq_dim2"]
                  + pd["zdim"]
                  + max(pd["text_dim"], pd["ppi_dim"], pd["seq_dim"]))
    row_bytes = (2 * in_cols * x_text.dtype.itemsize
                 + 2 * out_cols * out_itemsize
                 + inter_cols * 4)

    vmem_cap = _vmem_capacity_bytes()
    mb, padded_batch = _tile_and_pad(batch, vmem_cap, weight_bytes, row_bytes)
    grid = (padded_batch // mb,)

    def pad2d(x, pdim):
        return jnp.pad(x, ((0, padded_batch - x.shape[0]),
                           (0, pdim - x.shape[1])))

    xs = (pad2d(x_text, pd["text_dim"]),
          pad2d(x_ppi, pd["ppi_dim"]),
          pad2d(x_seq, pd["seq_dim"]))

    in_specs = ([pl.BlockSpec((mb, x.shape[1]), lambda i: (i, 0)) for x in xs]
                + [_weight_spec(w) for w in weights])
    out_shapes = (
        jax.ShapeDtypeStruct((padded_batch, pd["text_dim"]), out_dtype),
        jax.ShapeDtypeStruct((padded_batch, pd["ppi_dim"]), out_dtype),
        jax.ShapeDtypeStruct((padded_batch, pd["seq_dim"]), out_dtype),
        jax.ShapeDtypeStruct((padded_batch, pd["zdim"]), out_dtype),
    )
    out_specs = tuple(pl.BlockSpec((mb, s.shape[1]), lambda i: (i, 0))
                      for s in out_shapes)

    # Always pass an explicit scoped-VMEM limit (the v5e default is 16 MiB);
    # floor at 32 MiB, cap below the physical VMEM of the current generation.
    est = weight_bytes + mb * row_bytes + (4 << 20)
    vmem_limit = min(max(32 << 20, int(est)), int(vmem_cap * 0.9))

    ot, op, os_, z = pl.pallas_call(
        _fused_forward_kernel,
        out_shape=out_shapes,
        grid=grid,
        in_specs=in_specs,
        out_specs=out_specs,
        compiler_params=pltpu.CompilerParams(
            dimension_semantics=("parallel",),
            vmem_limit_bytes=vmem_limit,
        ),
    )(*xs, *weights)

    return (ot[:batch, :d["text_dim"]],
            op[:batch, :d["ppi_dim"]],
            os_[:batch, :d["seq_dim"]],
            z[:batch, :d["zdim"]])


# -----------------------------------------------------------------------------
# Parameters (deterministic, PyTorch-Linear-style uniform init), zero-padded
# to lane-aligned shapes.  Zero padding is exact through Linear+Tanh chains:
# padded activation columns stay exactly tanh(0) == 0 at every layer.
# -----------------------------------------------------------------------------
def _uniform(key, shape, bound):
    return jax.random.uniform(key, shape, jnp.float32, -bound, bound)


def _linear_padded(key, in_dim, out_dim, pad_in, pad_out, dtype):
    kw, kb = jax.random.split(key)
    bound = 1.0 / float(in_dim) ** 0.5
    w = _uniform(kw, (in_dim, out_dim), bound)
    b = _uniform(kb, (1, out_dim), bound)
    w = jnp.pad(w, ((0, pad_in - in_dim), (0, pad_out - out_dim))).astype(dtype)
    b = jnp.pad(b, ((0, 0), (0, pad_out - out_dim)))  # bias kept f32
    return w, b


class MultiModalAutoencoderParams:
    def __init__(self, key,
                 text_dim=1024, text_dim1=768, text_dim2=512,
                 ppi_dim=1000, ppi_dim1=1000, ppi_dim2=1000,
                 seq_dim=1024, seq_dim1=768, seq_dim2=512,
                 zdim=512,
                 param_dtype=jnp.bfloat16):
        self.dims = dict(
            text_dim=text_dim, text_dim1=text_dim1, text_dim2=text_dim2,
            ppi_dim=ppi_dim, ppi_dim1=ppi_dim1, ppi_dim2=ppi_dim2,
            seq_dim=seq_dim, seq_dim1=seq_dim1, seq_dim2=seq_dim2,
            zdim=zdim)
        self.padded_dims = {k: _round_up(v, 128) for k, v in self.dims.items()}
        d, pd = self.dims, self.padded_dims

        keys = jax.random.split(key, 14)
        self.enc_text = [
            _linear_padded(keys[0], d["text_dim"], d["text_dim1"],
                           pd["text_dim"], pd["text_dim1"], param_dtype),
            _linear_padded(keys[1], d["text_dim1"], d["text_dim2"],
                           pd["text_dim1"], pd["text_dim2"], param_dtype)]
        self.enc_ppi = [
            _linear_padded(keys[2], d["ppi_dim"], d["ppi_dim1"],
                           pd["ppi_dim"], pd["ppi_dim1"], param_dtype),
            _linear_padded(keys[3], d["ppi_dim1"], d["ppi_dim2"],
                           pd["ppi_dim1"], pd["ppi_dim2"], param_dtype)]
        self.enc_seq = [
            _linear_padded(keys[4], d["seq_dim"], d["seq_dim1"],
                           pd["seq_dim"], pd["seq_dim1"], param_dtype),
            _linear_padded(keys[5], d["seq_dim1"], d["seq_dim2"],
                           pd["seq_dim1"], pd["seq_dim2"], param_dtype)]

        def pad_w(w, pr, pc):
            return jnp.pad(w, ((0, pr - w.shape[0]),
                               (0, pc - w.shape[1]))).astype(param_dtype)

        # encoder_fuse: Linear(text_dim2+ppi_dim2+seq_dim2, zdim), pre-split by
        # input rows so the concat of encoder outputs is never materialized.
        fused = d["text_dim2"] + d["ppi_dim2"] + d["seq_dim2"]
        t2, p2 = d["text_dim2"], d["ppi_dim2"]
        kw, kb = jax.random.split(keys[6])
        bound = 1.0 / float(fused) ** 0.5
        wf = _uniform(kw, (fused, d["zdim"]), bound)
        bf = _uniform(kb, (1, d["zdim"]), bound)
        self.enc_fuse_w = (pad_w(wf[:t2], pd["text_dim2"], pd["zdim"]),
                           pad_w(wf[t2:t2 + p2], pd["ppi_dim2"], pd["zdim"]),
                           pad_w(wf[t2 + p2:], pd["seq_dim2"], pd["zdim"]))
        self.enc_fuse_b = jnp.pad(bf, ((0, 0), (0, pd["zdim"] - d["zdim"])))

        # decoder_fuse: Linear(zdim, fused), pre-split by output columns so the
        # kernel emits the text/ppi/seq chunks directly (no slicing).
        kw, kb = jax.random.split(keys[7])
        bound = 1.0 / float(d["zdim"]) ** 0.5
        wdf = _uniform(kw, (d["zdim"], fused), bound)
        bdf = _uniform(kb, (1, fused), bound)
        self.dec_fuse_w = (pad_w(wdf[:, :t2], pd["zdim"], pd["text_dim2"]),
                           pad_w(wdf[:, t2:t2 + p2], pd["zdim"], pd["ppi_dim2"]),
                           pad_w(wdf[:, t2 + p2:], pd["zdim"], pd["seq_dim2"]))
        self.dec_fuse_b = (
            jnp.pad(bdf[:, :t2], ((0, 0), (0, pd["text_dim2"] - t2))),
            jnp.pad(bdf[:, t2:t2 + p2], ((0, 0), (0, pd["ppi_dim2"] - p2))),
            jnp.pad(bdf[:, t2 + p2:],
                    ((0, 0), (0, pd["seq_dim2"] - d["seq_dim2"]))))

        self.dec_text = [
            _linear_padded(keys[8], d["text_dim2"], d["text_dim1"],
                           pd["text_dim2"], pd["text_dim1"], param_dtype),
            _linear_padded(keys[9], d["text_dim1"], d["text_dim"],
                           pd["text_dim1"], pd["text_dim"], param_dtype)]
        self.dec_ppi = [
            _linear_padded(keys[10], d["ppi_dim2"], d["ppi_dim1"],
                           pd["ppi_dim2"], pd["ppi_dim1"], param_dtype),
            _linear_padded(keys[11], d["ppi_dim1"], d["ppi_dim"],
                           pd["ppi_dim1"], pd["ppi_dim"], param_dtype)]
        self.dec_seq = [
            _linear_padded(keys[12], d["seq_dim2"], d["seq_dim1"],
                           pd["seq_dim2"], pd["seq_dim1"], param_dtype),
            _linear_padded(keys[13], d["seq_dim1"], d["seq_dim"],
                           pd["seq_dim1"], pd["seq_dim"], param_dtype)]

    def flat_weights(self):
        ws = []
        for branch in (self.enc_text, self.enc_ppi, self.enc_seq):
            for w, b in branch:
                ws += [w, b]
        ws += [*self.enc_fuse_w, self.enc_fuse_b]
        for w, b in zip(self.dec_fuse_w, self.dec_fuse_b):
            ws += [w, b]
        for branch in (self.dec_text, self.dec_ppi, self.dec_seq):
            for w, b in branch:
                ws += [w, b]
        return ws


# -----------------------------------------------------------------------------
# Pure-JAX reference (same mixed precision / same padded weights).
# -----------------------------------------------------------------------------
def _ref_forward(params, x_text, x_ppi, x_seq):
    d, pd = params.dims, params.padded_dims

    def layer(x, w, b):
        return jnp.tanh(
            jnp.dot(x.astype(w.dtype), w, preferred_element_type=jnp.float32)
            + b.astype(jnp.float32))

    def mlp(x, layers):
        for w, b in layers:
            x = layer(x, w, b)
        return x

    def pad_cols(x, pdim):
        return jnp.pad(x, ((0, 0), (0, pdim - x.shape[1])))

    et = mlp(pad_cols(x_text, pd["text_dim"]), params.enc_text)
    ep = mlp(pad_cols(x_ppi, pd["ppi_dim"]), params.enc_ppi)
    es = mlp(pad_cols(x_seq, pd["seq_dim"]), params.enc_seq)
    z = layer(jnp.concatenate((et, ep, es), axis=1),
              jnp.concatenate(params.enc_fuse_w, axis=0),
              params.enc_fuse_b)
    fo_t = layer(z, params.dec_fuse_w[0], params.dec_fuse_b[0])
    fo_p = layer(z, params.dec_fuse_w[1], params.dec_fuse_b[1])
    fo_s = layer(z, params.dec_fuse_w[2], params.dec_fuse_b[2])
    dt = mlp(fo_t, params.dec_text)[:, :d["text_dim"]]
    dp = mlp(fo_p, params.dec_ppi)[:, :d["ppi_dim"]]
    ds = mlp(fo_s, params.dec_seq)[:, :d["seq_dim"]]
    return dt, dp, ds, z[:, :d["zdim"]]


if __name__ == "__main__":
    key = jax.random.PRNGKey(0)
    pkey, k1, k2, k3 = jax.random.split(key, 4)

    # --- Config 1: lane-aligned dims, bf16 weights, batch multiple of 8 -----
    B = 8
    params = MultiModalAutoencoderParams(
        pkey,
        text_dim=256, text_dim1=128, text_dim2=128,
        ppi_dim=256, ppi_dim1=128, ppi_dim2=128,
        seq_dim=256, seq_dim1=128, seq_dim2=128,
        zdim=128,
        param_dtype=jnp.bfloat16)
    x_text = jax.random.normal(k1, (B, 256), jnp.float32)
    x_ppi = jax.random.normal(k2, (B, 256), jnp.float32)
    x_seq = jax.random.normal(k3, (B, 256), jnp.float32)

    fwd = jax.jit(functools.partial(multimodal_autoencoder_forward, params))
    outs = fwd(x_text, x_ppi, x_seq)
    jax.block_until_ready(outs)

    refs = _ref_forward(params, x_text, x_ppi, x_seq)
    for got, ref in zip(outs, refs):
        assert got.shape == ref.shape, (got.shape, ref.shape)
        assert jnp.allclose(got, ref, atol=1e-2, rtol=1e-2), float(
            jnp.max(jnp.abs(got - ref)))

    # --- Config 2: ppi dims / zdim NOT multiples of 128 (mirrors the real
    # default ppi_dim=1000), f32 weights, batch not a multiple of 8;
    # exercises both the feature-dim padding and the batch padding paths. ----
    B2 = 6
    params2 = MultiModalAutoencoderParams(
        jax.random.PRNGKey(1),
        text_dim=256, text_dim1=128, text_dim2=128,
        ppi_dim=200, ppi_dim1=200, ppi_dim2=200,
        seq_dim=256, seq_dim1=128, seq_dim2=128,
        zdim=96,
        param_dtype=jnp.float32)
    x_text2 = jax.random.normal(k1, (B2, 256), jnp.float32)
    x_ppi2 = jax.random.normal(k2, (B2, 200), jnp.float32)
    x_seq2 = jax.random.normal(k3, (B2, 256), jnp.float32)

    fwd2 = jax.jit(functools.partial(multimodal_autoencoder_forward, params2))
    outs2 = fwd2(x_text2, x_ppi2, x_seq2)
    jax.block_until_ready(outs2)

    refs2 = _ref_forward(params2, x_text2, x_ppi2, x_seq2)
    for got, ref in zip(outs2, refs2):
        assert got.shape == ref.shape, (got.shape, ref.shape)
        assert jnp.allclose(got, ref, atol=1e-3, rtol=1e-3), float(
            jnp.max(jnp.abs(got - ref)))

    print("KERNEL_OK")
</pallas_src>

<mosaic_0001>
module attributes {stable_mosaic.version = 11 : i64} {
  func.func @_fused_forward_kernel(%arg0: i32, %arg1: memref<8x256xf32, #tpu.memory_space<vmem>>, %arg2: memref<8x256xf32, #tpu.memory_space<vmem>>, %arg3: memref<8x256xf32, #tpu.memory_space<vmem>>, %arg4: memref<256x128xbf16, #tpu.memory_space<vmem>>, %arg5: memref<1x128xf32, #tpu.memory_space<vmem>>, %arg6: memref<128x128xbf16, #tpu.memory_space<vmem>>, %arg7: memref<1x128xf32, #tpu.memory_space<vmem>>, %arg8: memref<256x128xbf16, #tpu.memory_space<vmem>>, %arg9: memref<1x128xf32, #tpu.memory_space<vmem>>, %arg10: memref<128x128xbf16, #tpu.memory_space<vmem>>, %arg11: memref<1x128xf32, #tpu.memory_space<vmem>>, %arg12: memref<256x128xbf16, #tpu.memory_space<vmem>>, %arg13: memref<1x128xf32, #tpu.memory_space<vmem>>, %arg14: memref<128x128xbf16, #tpu.memory_space<vmem>>, %arg15: memref<1x128xf32, #tpu.memory_space<vmem>>, %arg16: memref<128x128xbf16, #tpu.memory_space<vmem>>, %arg17: memref<128x128xbf16, #tpu.memory_space<vmem>>, %arg18: memref<128x128xbf16, #tpu.memory_space<vmem>>, %arg19: memref<1x128xf32, #tpu.memory_space<vmem>>, %arg20: memref<128x128xbf16, #tpu.memory_space<vmem>>, %arg21: memref<1x128xf32, #tpu.memory_space<vmem>>, %arg22: memref<128x128xbf16, #tpu.memory_space<vmem>>, %arg23: memref<1x128xf32, #tpu.memory_space<vmem>>, %arg24: memref<128x128xbf16, #tpu.memory_space<vmem>>, %arg25: memref<1x128xf32, #tpu.memory_space<vmem>>, %arg26: memref<128x128xbf16, #tpu.memory_space<vmem>>, %arg27: memref<1x128xf32, #tpu.memory_space<vmem>>, %arg28: memref<128x256xbf16, #tpu.memory_space<vmem>>, %arg29: memref<1x256xf32, #tpu.memory_space<vmem>>, %arg30: memref<128x128xbf16, #tpu.memory_space<vmem>>, %arg31: memref<1x128xf32, #tpu.memory_space<vmem>>, %arg32: memref<128x256xbf16, #tpu.memory_space<vmem>>, %arg33: memref<1x256xf32, #tpu.memory_space<vmem>>, %arg34: memref<128x128xbf16, #tpu.memory_space<vmem>>, %arg35: memref<1x128xf32, #tpu.memory_space<vmem>>, %arg36: memref<128x256xbf16, #tpu.memory_space<vmem>>, %arg37: memref<1x256xf32, #tpu.memory_space<vmem>>, %arg38: memref<8x256xf32, #tpu.memory_space<vmem>>, %arg39: memref<8x256xf32, #tpu.memory_space<vmem>>, %arg40: memref<8x256xf32, #tpu.memory_space<vmem>>, %arg41: memref<8x128xf32, #tpu.memory_space<vmem>>) attributes {dimension_semantics = [#tpu.dimension_semantics<parallel>], iteration_bounds = array<i64: 1>, scalar_prefetch = 0 : i64, scratch_operands = 0 : i64, tpu.core_type = #tpu.core_type<tc>, window_params = [{transform_indices = @transform_0, window_bounds = array<i64: 8, 256>}, {transform_indices = @transform_1, window_bounds = array<i64: 8, 256>}, {transform_indices = @transform_2, window_bounds = array<i64: 8, 256>}, {pipeline_mode = #tpu.pipeline_mode<synchronous>, transform_indices = @transform_3, window_bounds = array<i64: 256, 128>}, {pipeline_mode = #tpu.pipeline_mode<synchronous>, transform_indices = @transform_4, window_bounds = array<i64: 1, 128>}, {pipeline_mode = #tpu.pipeline_mode<synchronous>, transform_indices = @transform_5, window_bounds = array<i64: 128, 128>}, {pipeline_mode = #tpu.pipeline_mode<synchronous>, transform_indices = @transform_6, window_bounds = array<i64: 1, 128>}, {pipeline_mode = #tpu.pipeline_mode<synchronous>, transform_indices = @transform_7, window_bounds = array<i64: 256, 128>}, {pipeline_mode = #tpu.pipeline_mode<synchronous>, transform_indices = @transform_8, window_bounds = array<i64: 1, 128>}, {pipeline_mode = #tpu.pipeline_mode<synchronous>, transform_indices = @transform_9, window_bounds = array<i64: 128, 128>}, {pipeline_mode = #tpu.pipeline_mode<synchronous>, transform_indices = @transform_10, window_bounds = array<i64: 1, 128>}, {pipeline_mode = #tpu.pipeline_mode<synchronous>, transform_indices = @transform_11, window_bounds = array<i64: 256, 128>}, {pipeline_mode = #tpu.pipeline_mode<synchronous>, transform_indices = @transform_12, window_bounds = array<i64: 1, 128>}, {pipeline_mode = #tpu.pipeline_mode<synchronous>, transform_indices = @transform_13, window_bounds = array<i64: 128, 128>}, {pipeline_mode = #tpu.pipeline_mode<synchronous>, transform_indices = @transform_14, window_bounds = array<i64: 1, 128>}, {pipeline_mode = #tpu.pipeline_mode<synchronous>, transform_indices = @transform_15, window_bounds = array<i64: 128, 128>}, {pipeline_mode = #tpu.pipeline_mode<synchronous>, transform_indices = @transform_16, window_bounds = array<i64: 128, 128>}, {pipeline_mode = #tpu.pipeline_mode<synchronous>, transform_indices = @transform_17, window_bounds = array<i64: 128, 128>}, {pipeline_mode = #tpu.pipeline_mode<synchronous>, transform_indices = @transform_18, window_bounds = array<i64: 1, 128>}, {pipeline_mode = #tpu.pipeline_mode<synchronous>, transform_indices = @transform_19, window_bounds = array<i64: 128, 128>}, {pipeline_mode = #tpu.pipeline_mode<synchronous>, transform_indices = @transform_20, window_bounds = array<i64: 1, 128>}, {pipeline_mode = #tpu.pipeline_mode<synchronous>, transform_indices = @transform_21, window_bounds = array<i64: 128, 128>}, {pipeline_mode = #tpu.pipeline_mode<synchronous>, transform_indices = @transform_22, window_bounds = array<i64: 1, 128>}, {pipeline_mode = #tpu.pipeline_mode<synchronous>, transform_indices = @transform_23, window_bounds = array<i64: 128, 128>}, {pipeline_mode = #tpu.pipeline_mode<synchronous>, transform_indices = @transform_24, window_bounds = array<i64: 1, 128>}, {pipeline_mode = #tpu.pipeline_mode<synchronous>, transform_indices = @transform_25, window_bounds = array<i64: 128, 128>}, {pipeline_mode = #tpu.pipeline_mode<synchronous>, transform_indices = @transform_26, window_bounds = array<i64: 1, 128>}, {pipeline_mode = #tpu.pipeline_mode<synchronous>, transform_indices = @transform_27, window_bounds = array<i64: 128, 256>}, {pipeline_mode = #tpu.pipeline_mode<synchronous>, transform_indices = @transform_28, window_bounds = array<i64: 1, 256>}, {pipeline_mode = #tpu.pipeline_mode<synchronous>, transform_indices = @transform_29, window_bounds = array<i64: 128, 128>}, {pipeline_mode = #tpu.pipeline_mode<synchronous>, transform_indices = @transform_30, window_bounds = array<i64: 1, 128>}, {pipeline_mode = #tpu.pipeline_mode<synchronous>, transform_indices = @transform_31, window_bounds = array<i64: 128, 256>}, {pipeline_mode = #tpu.pipeline_mode<synchronous>, transform_indices = @transform_32, window_bounds = array<i64: 1, 256>}, {pipeline_mode = #tpu.pipeline_mode<synchronous>, transform_indices = @transform_33, window_bounds = array<i64: 128, 128>}, {pipeline_mode = #tpu.pipeline_mode<synchronous>, transform_indices = @transform_34, window_bounds = array<i64: 1, 128>}, {pipeline_mode = #tpu.pipeline_mode<synchronous>, transform_indices = @transform_35, window_bounds = array<i64: 128, 256>}, {pipeline_mode = #tpu.pipeline_mode<synchronous>, transform_indices = @transform_36, window_bounds = array<i64: 1, 256>}, {transform_indices = @transform_37, window_bounds = array<i64: 8, 256>}, {transform_indices = @transform_38, window_bounds = array<i64: 8, 256>}, {transform_indices = @transform_39, window_bounds = array<i64: 8, 256>}, {transform_indices = @transform_40, window_bounds = array<i64: 8, 128>}]} {
    %c0 = arith.constant 0 : index
    %c0_0 = arith.constant 0 : index
    %0 = vector.load %arg1[%c0, %c0_0] : memref<8x256xf32, #tpu.memory_space<vmem>>, vector<8x256xf32>
    %1 = arith.truncf %0 : vector<8x256xf32> to vector<8x256xbf16>
    %c0_1 = arith.constant 0 : index
    %c0_2 = arith.constant 0 : index
    %2 = vector.load %arg4[%c0_1, %c0_2] : memref<256x128xbf16, #tpu.memory_space<vmem>>, vector<256x128xbf16>
    %cst = arith.constant dense<0.000000e+00> : vector<8x128xf32>
    %3 = tpu.matmul %1, %2, %cst {dimension_numbers = #tpu.dot_dimension_numbers<[1], [0], [0], [1], [0, 0, 1, 1], [], []>} : vector<8x256xbf16>, vector<256x128xbf16>, vector<8x128xf32> -> vector<8x128xf32>
    %c0_3 = arith.constant 0 : index
    %c0_4 = arith.constant 0 : index
    %4 = vector.load %arg5[%c0_3, %c0_4] : memref<1x128xf32, #tpu.memory_space<vmem>>, vector<1x128xf32>
    %5 = vector.broadcast %4 : vector<1x128xf32> to vector<8x128xf32>
    %6 = arith.addf %3, %5 : vector<8x128xf32>
    %7 = math.tanh %6 : vector<8x128xf32>
    %8 = arith.truncf %7 : vector<8x128xf32> to vector<8x128xbf16>
    %c0_5 = arith.constant 0 : index
    %c0_6 = arith.constant 0 : index
    %9 = vector.load %arg6[%c0_5, %c0_6] : memref<128x128xbf16, #tpu.memory_space<vmem>>, vector<128x128xbf16>
    %cst_7 = arith.constant dense<0.000000e+00> : vector<8x128xf32>
    %10 = tpu.matmul %8, %9, %cst_7 {dimension_numbers = #tpu.dot_dimension_numbers<[1], [0], [0], [1], [0, 0, 1, 1], [], []>} : vector<8x128xbf16>, vector<128x128xbf16>, vector<8x128xf32> -> vector<8x128xf32>
    %c0_8 = arith.constant 0 : index
    %c0_9 = arith.constant 0 : index
    %11 = vector.load %arg7[%c0_8, %c0_9] : memref<1x128xf32, #tpu.memory_space<vmem>>, vector<1x128xf32>
    %12 = vector.broadcast %11 : vector<1x128xf32> to vector<8x128xf32>
    %13 = arith.addf %10, %12 : vector<8x128xf32>
    %14 = math.tanh %13 : vector<8x128xf32>
    %c0_10 = arith.constant 0 : index
    %c0_11 = arith.constant 0 : index
    %15 = vector.load %arg2[%c0_10, %c0_11] : memref<8x256xf32, #tpu.memory_space<vmem>>, vector<8x256xf32>
    %16 = arith.truncf %15 : vector<8x256xf32> to vector<8x256xbf16>
    %c0_12 = arith.constant 0 : index
    %c0_13 = arith.constant 0 : index
    %17 = vector.load %arg8[%c0_12, %c0_13] : memref<256x128xbf16, #tpu.memory_space<vmem>>, vector<256x128xbf16>
    %cst_14 = arith.constant dense<0.000000e+00> : vector<8x128xf32>
    %18 = tpu.matmul %16, %17, %cst_14 {dimension_numbers = #tpu.dot_dimension_numbers<[1], [0], [0], [1], [0, 0, 1, 1], [], []>} : vector<8x256xbf16>, vector<256x128xbf16>, vector<8x128xf32> -> vector<8x128xf32>
    %c0_15 = arith.constant 0 : index
    %c0_16 = arith.constant 0 : index
    %19 = vector.load %arg9[%c0_15, %c0_16] : memref<1x128xf32, #tpu.memory_space<vmem>>, vector<1x128xf32>
    %20 = vector.broadcast %19 : vector<1x128xf32> to vector<8x128xf32>
    %21 = arith.addf %18, %20 : vector<8x128xf32>
    %22 = math.tanh %21 : vector<8x128xf32>
    %23 = arith.truncf %22 : vector<8x128xf32> to vector<8x128xbf16>
    %c0_17 = arith.constant 0 : index
    %c0_18 = arith.constant 0 : index
    %24 = vector.load %arg10[%c0_17, %c0_18] : memref<128x128xbf16, #tpu.memory_space<vmem>>, vector<128x128xbf16>
    %cst_19 = arith.constant dense<0.000000e+00> : vector<8x128xf32>
    %25 = tpu.matmul %23, %24, %cst_19 {dimension_numbers = #tpu.dot_dimension_numbers<[1], [0], [0], [1], [0, 0, 1, 1], [], []>} : vector<8x128xbf16>, vector<128x128xbf16>, vector<8x128xf32> -> vector<8x128xf32>
    %c0_20 = arith.constant 0 : index
    %c0_21 = arith.constant 0 : index
    %26 = vector.load %arg11[%c0_20, %c0_21] : memref<1x128xf32, #tpu.memory_space<vmem>>, vector<1x128xf32>
    %27 = vector.broadcast %26 : vector<1x128xf32> to vector<8x128xf32>
    %28 = arith.addf %25, %27 : vector<8x128xf32>
    %29 = math.tanh %28 : vector<8x128xf32>
    %c0_22 = arith.constant 0 : index
    %c0_23 = arith.constant 0 : index
    %30 = vector.load %arg3[%c0_22, %c0_23] : memref<8x256xf32, #tpu.memory_space<vmem>>, vector<8x256xf32>
    %31 = arith.truncf %30 : vector<8x256xf32> to vector<8x256xbf16>
    %c0_24 = arith.constant 0 : index
    %c0_25 = arith.constant 0 : index
    %32 = vector.load %arg12[%c0_24, %c0_25] : memref<256x128xbf16, #tpu.memory_space<vmem>>, vector<256x128xbf16>
    %cst_26 = arith.constant dense<0.000000e+00> : vector<8x128xf32>
    %33 = tpu.matmul %31, %32, %cst_26 {dimension_numbers = #tpu.dot_dimension_numbers<[1], [0], [0], [1], [0, 0, 1, 1], [], []>} : vector<8x256xbf16>, vector<256x128xbf16>, vector<8x128xf32> -> vector<8x128xf32>
    %c0_27 = arith.constant 0 : index
    %c0_28 = arith.constant 0 : index
    %34 = vector.load %arg13[%c0_27, %c0_28] : memref<1x128xf32, #tpu.memory_space<vmem>>, vector<1x128xf32>
    %35 = vector.broadcast %34 : vector<1x128xf32> to vector<8x128xf32>
    %36 = arith.addf %33, %35 : vector<8x128xf32>
    %37 = math.tanh %36 : vector<8x128xf32>
    %38 = arith.truncf %37 : vector<8x128xf32> to vector<8x128xbf16>
    %c0_29 = arith.constant 0 : index
    %c0_30 = arith.constant 0 : index
    %39 = vector.load %arg14[%c0_29, %c0_30] : memref<128x128xbf16, #tpu.memory_space<vmem>>, vector<128x128xbf16>
    %cst_31 = arith.constant dense<0.000000e+00> : vector<8x128xf32>
    %40 = tpu.matmul %38, %39, %cst_31 {dimension_numbers = #tpu.dot_dimension_numbers<[1], [0], [0], [1], [0, 0, 1, 1], [], []>} : vector<8x128xbf16>, vector<128x128xbf16>, vector<8x128xf32> -> vector<8x128xf32>
    %c0_32 = arith.constant 0 : index
    %c0_33 = arith.constant 0 : index
    %41 = vector.load %arg15[%c0_32, %c0_33] : memref<1x128xf32, #tpu.memory_space<vmem>>, vector<1x128xf32>
    %42 = vector.broadcast %41 : vector<1x128xf32> to vector<8x128xf32>
    %43 = arith.addf %40, %42 : vector<8x128xf32>
    %44 = math.tanh %43 : vector<8x128xf32>
    %45 = arith.truncf %14 : vector<8x128xf32> to vector<8x128xbf16>
    %c0_34 = arith.constant 0 : index
    %c0_35 = arith.constant 0 : index
    %46 = vector.load %arg16[%c0_34, %c0_35] : memref<128x128xbf16, #tpu.memory_space<vmem>>, vector<128x128xbf16>
    %cst_36 = arith.constant dense<0.000000e+00> : vector<8x128xf32>
    %47 = tpu.matmul %45, %46, %cst_36 {dimension_numbers = #tpu.dot_dimension_numbers<[1], [0], [0], [1], [0, 0, 1, 1], [], []>} : vector<8x128xbf16>, vector<128x128xbf16>, vector<8x128xf32> -> vector<8x128xf32>
    %48 = arith.truncf %29 : vector<8x128xf32> to vector<8x128xbf16>
    %c0_37 = arith.constant 0 : index
    %c0_38 = arith.constant 0 : index
    %49 = vector.load %arg17[%c0_37, %c0_38] : memref<128x128xbf16, #tpu.memory_space<vmem>>, vector<128x128xbf16>
    %cst_39 = arith.constant dense<0.000000e+00> : vector<8x128xf32>
    %50 = tpu.matmul %48, %49, %cst_39 {dimension_numbers = #tpu.dot_dimension_numbers<[1], [0], [0], [1], [0, 0, 1, 1], [], []>} : vector<8x128xbf16>, vector<128x128xbf16>, vector<8x128xf32> -> vector<8x128xf32>
    %51 = arith.addf %47, %50 : vector<8x128xf32>
    %52 = arith.truncf %44 : vector<8x128xf32> to vector<8x128xbf16>
    %c0_40 = arith.constant 0 : index
    %c0_41 = arith.constant 0 : index
    %53 = vector.load %arg18[%c0_40, %c0_41] : memref<128x128xbf16, #tpu.memory_space<vmem>>, vector<128x128xbf16>
    %cst_42 = arith.constant dense<0.000000e+00> : vector<8x128xf32>
    %54 = tpu.matmul %52, %53, %cst_42 {dimension_numbers = #tpu.dot_dimension_numbers<[1], [0], [0], [1], [0, 0, 1, 1], [], []>} : vector<8x128xbf16>, vector<128x128xbf16>, vector<8x128xf32> -> vector<8x128xf32>
    %55 = arith.addf %51, %54 : vector<8x128xf32>
    %c0_43 = arith.constant 0 : index
    %c0_44 = arith.constant 0 : index
    %56 = vector.load %arg19[%c0_43, %c0_44] : memref<1x128xf32, #tpu.memory_space<vmem>>, vector<1x128xf32>
    %57 = vector.broadcast %56 : vector<1x128xf32> to vector<8x128xf32>
    %58 = arith.addf %55, %57 : vector<8x128xf32>
    %59 = math.tanh %58 : vector<8x128xf32>
    %c0_45 = arith.constant 0 : index
    %c0_46 = arith.constant 0 : index
    %60 = vector.load %arg41[%c0_45, %c0_46] : memref<8x128xf32, #tpu.memory_space<vmem>>, vector<8x128xf32>
    tpu.vector_store %arg41[%c0_45, %c0_46], %59 {strides = array<i32>} : memref<8x128xf32, #tpu.memory_space<vmem>>, vector<8x128xf32>,
    %61 = arith.truncf %59 : vector<8x128xf32> to vector<8x128xbf16>
    %c0_47 = arith.constant 0 : index
    %c0_48 = arith.constant 0 : index
    %62 = vector.load %arg20[%c0_47, %c0_48] : memref<128x128xbf16, #tpu.memory_space<vmem>>, vector<128x128xbf16>
    %cst_49 = arith.constant dense<0.000000e+00> : vector<8x128xf32>
    %63 = tpu.matmul %61, %62, %cst_49 {dimension_numbers = #tpu.dot_dimension_numbers<[1], [0], [0], [1], [0, 0, 1, 1], [], []>} : vector<8x128xbf16>, vector<128x128xbf16>, vector<8x128xf32> -> vector<8x128xf32>
    %c0_50 = arith.constant 0 : index
    %c0_51 = arith.constant 0 : index
    %64 = vector.load %arg21[%c0_50, %c0_51] : memref<1x128xf32, #tpu.memory_space<vmem>>, vector<1x128xf32>
    %65 = vector.broadcast %64 : vector<1x128xf32> to vector<8x128xf32>
    %66 = arith.addf %63, %65 : vector<8x128xf32>
    %67 = math.tanh %66 : vector<8x128xf32>
    %68 = arith.truncf %67 : vector<8x128xf32> to vector<8x128xbf16>
    %c0_52 = arith.constant 0 : index
    %c0_53 = arith.constant 0 : index
    %69 = vector.load %arg26[%c0_52, %c0_53] : memref<128x128xbf16, #tpu.memory_space<vmem>>, vector<128x128xbf16>
    %cst_54 = arith.constant dense<0.000000e+00> : vector<8x128xf32>
    %70 = tpu.matmul %68, %69, %cst_54 {dimension_numbers = #tpu.dot_dimension_numbers<[1], [0], [0], [1], [0, 0, 1, 1], [], []>} : vector<8x128xbf16>, vector<128x128xbf16>, vector<8x128xf32> -> vector<8x128xf32>
    %c0_55 = arith.constant 0 : index
    %c0_56 = arith.constant 0 : index
    %71 = vector.load %arg27[%c0_55, %c0_56] : memref<1x128xf32, #tpu.memory_space<vmem>>, vector<1x128xf32>
    %72 = vector.broadcast %71 : vector<1x128xf32> to vector<8x128xf32>
    %73 = arith.addf %70, %72 : vector<8x128xf32>
    %74 = math.tanh %73 : vector<8x128xf32>
    %75 = arith.truncf %74 : vector<8x128xf32> to vector<8x128xbf16>
    %c0_57 = arith.constant 0 : index
    %c0_58 = arith.constant 0 : index
    %76 = vector.load %arg28[%c0_57, %c0_58] : memref<128x256xbf16, #tpu.memory_space<vmem>>, vector<128x256xbf16>
    %cst_59 = arith.constant dense<0.000000e+00> : vector<8x256xf32>
    %77 = tpu.matmul %75, %76, %cst_59 {dimension_numbers = #tpu.dot_dimension_numbers<[1], [0], [0], [1], [0, 0, 1, 1], [], []>} : vector<8x128xbf16>, vector<128x256xbf16>, vector<8x256xf32> -> vector<8x256xf32>
    %c0_60 = arith.constant 0 : index
    %c0_61 = arith.constant 0 : index
    %78 = vector.load %arg29[%c0_60, %c0_61] : memref<1x256xf32, #tpu.memory_space<vmem>>, vector<1x256xf32>
    %79 = vector.broadcast %78 : vector<1x256xf32> to vector<8x256xf32>
    %80 = arith.addf %77, %79 : vector<8x256xf32>
    %81 = math.tanh %80 : vector<8x256xf32>
    %c0_62 = arith.constant 0 : index
    %c0_63 = arith.constant 0 : index
    %82 = vector.load %arg38[%c0_62, %c0_63] : memref<8x256xf32, #tpu.memory_space<vmem>>, vector<8x256xf32>
    tpu.vector_store %arg38[%c0_62, %c0_63], %81 {strides = array<i32>} : memref<8x256xf32, #tpu.memory_space<vmem>>, vector<8x256xf32>,
    %83 = arith.truncf %59 : vector<8x128xf32> to vector<8x128xbf16>
    %c0_64 = arith.constant 0 : index
    %c0_65 = arith.constant 0 : index
    %84 = vector.load %arg22[%c0_64, %c0_65] : memref<128x128xbf16, #tpu.memory_space<vmem>>, vector<128x128xbf16>
    %cst_66 = arith.constant dense<0.000000e+00> : vector<8x128xf32>
    %85 = tpu.matmul %83, %84, %cst_66 {dimension_numbers = #tpu.dot_dimension_numbers<[1], [0], [0], [1], [0, 0, 1, 1], [], []>} : vector<8x128xbf16>, vector<128x128xbf16>, vector<8x128xf32> -> vector<8x128xf32>
    %c0_67 = arith.constant 0 : index
    %c0_68 = arith.constant 0 : index
    %86 = vector.load %arg23[%c0_67, %c0_68] : memref<1x128xf32, #tpu.memory_space<vmem>>, vector<1x128xf32>
    %87 = vector.broadcast %86 : vector<1x128xf32> to vector<8x128xf32>
    %88 = arith.addf %85, %87 : vector<8x128xf32>
    %89 = math.tanh %88 : vector<8x128xf32>
    %90 = arith.truncf %89 : vector<8x128xf32> to vector<8x128xbf16>
    %c0_69 = arith.constant 0 : index
    %c0_70 = arith.constant 0 : index
    %91 = vector.load %arg30[%c0_69, %c0_70] : memref<128x128xbf16, #tpu.memory_space<vmem>>, vector<128x128xbf16>
    %cst_71 = arith.constant dense<0.000000e+00> : vector<8x128xf32>
    %92 = tpu.matmul %90, %91, %cst_71 {dimension_numbers = #tpu.dot_dimension_numbers<[1], [0], [0], [1], [0, 0, 1, 1], [], []>} : vector<8x128xbf16>, vector<128x128xbf16>, vector<8x128xf32> -> vector<8x128xf32>
    %c0_72 = arith.constant 0 : index
    %c0_73 = arith.constant 0 : index
    %93 = vector.load %arg31[%c0_72, %c0_73] : memref<1x128xf32, #tpu.memory_space<vmem>>, vector<1x128xf32>
    %94 = vector.broadcast %93 : vector<1x128xf32> to vector<8x128xf32>
    %95 = arith.addf %92, %94 : vector<8x128xf32>
    %96 = math.tanh %95 : vector<8x128xf32>
    %97 = arith.truncf %96 : vector<8x128xf32> to vector<8x128xbf16>
    %c0_74 = arith.constant 0 : index
    %c0_75 = arith.constant 0 : index
    %98 = vector.load %arg32[%c0_74, %c0_75] : memref<128x256xbf16, #tpu.memory_space<vmem>>, vector<128x256xbf16>
    %cst_76 = arith.constant dense<0.000000e+00> : vector<8x256xf32>
    %99 = tpu.matmul %97, %98, %cst_76 {dimension_numbers = #tpu.dot_dimension_numbers<[1], [0], [0], [1], [0, 0, 1, 1], [], []>} : vector<8x128xbf16>, vector<128x256xbf16>, vector<8x256xf32> -> vector<8x256xf32>
    %c0_77 = arith.constant 0 : index
    %c0_78 = arith.constant 0 : index
    %100 = vector.load %arg33[%c0_77, %c0_78] : memref<1x256xf32, #tpu.memory_space<vmem>>, vector<1x256xf32>
    %101 = vector.broadcast %100 : vector<1x256xf32> to vector<8x256xf32>
    %102 = arith.addf %99, %101 : vector<8x256xf32>
    %103 = math.tanh %102 : vector<8x256xf32>
    %c0_79 = arith.constant 0 : index
    %c0_80 = arith.constant 0 : index
    %104 = vector.load %arg39[%c0_79, %c0_80] : memref<8x256xf32, #tpu.memory_space<vmem>>, vector<8x256xf32>
    tpu.vector_store %arg39[%c0_79, %c0_80], %103 {strides = array<i32>} : memref<8x256xf32, #tpu.memory_space<vmem>>, vector<8x256xf32>,
    %105 = arith.truncf %59 : vector<8x128xf32> to vector<8x128xbf16>
    %c0_81 = arith.constant 0 : index
    %c0_82 = arith.constant 0 : index
    %106 = vector.load %arg24[%c0_81, %c0_82] : memref<128x128xbf16, #tpu.memory_space<vmem>>, vector<128x128xbf16>
    %cst_83 = arith.constant dense<0.000000e+00> : vector<8x128xf32>
    %107 = tpu.matmul %105, %106, %cst_83 {dimension_numbers = #tpu.dot_dimension_numbers<[1], [0], [0], [1], [0, 0, 1, 1], [], []>} : vector<8x128xbf16>, vector<128x128xbf16>, vector<8x128xf32> -> vector<8x128xf32>
    %c0_84 = arith.constant 0 : index
    %c0_85 = arith.constant 0 : index
    %108 = vector.load %arg25[%c0_84, %c0_85] : memref<1x128xf32, #tpu.memory_space<vmem>>, vector<1x128xf32>
    %109 = vector.broadcast %108 : vector<1x128xf32> to vector<8x128xf32>
    %110 = arith.addf %107, %109 : vector<8x128xf32>
    %111 = math.tanh %110 : vector<8x128xf32>
    %112 = arith.truncf %111 : vector<8x128xf32> to vector<8x128xbf16>
    %c0_86 = arith.constant 0 : index
    %c0_87 = arith.constant 0 : index
    %113 = vector.load %arg34[%c0_86, %c0_87] : memref<128x128xbf16, #tpu.memory_space<vmem>>, vector<128x128xbf16>
    %cst_88 = arith.constant dense<0.000000e+00> : vector<8x128xf32>
    %114 = tpu.matmul %112, %113, %cst_88 {dimension_numbers = #tpu.dot_dimension_numbers<[1], [0], [0], [1], [0, 0, 1, 1], [], []>} : vector<8x128xbf16>, vector<128x128xbf16>, vector<8x128xf32> -> vector<8x128xf32>
    %c0_89 = arith.constant 0 : index
    %c0_90 = arith.constant 0 : index
    %115 = vector.load %arg35[%c0_89, %c0_90] : memref<1x128xf32, #tpu.memory_space<vmem>>, vector<1x128xf32>
    %116 = vector.broadcast %115 : vector<1x128xf32> to vector<8x128xf32>
    %117 = arith.addf %114, %116 : vector<8x128xf32>
    %118 = math.tanh %117 : vector<8x128xf32>
    %119 = arith.truncf %118 : vector<8x128xf32> to vector<8x128xbf16>
    %c0_91 = arith.constant 0 : index
    %c0_92 = arith.constant 0 : index
    %120 = vector.load %arg36[%c0_91, %c0_92] : memref<128x256xbf16, #tpu.memory_space<vmem>>, vector<128x256xbf16>
    %cst_93 = arith.constant dense<0.000000e+00> : vector<8x256xf32>
    %121 = tpu.matmul %119, %120, %cst_93 {dimension_numbers = #tpu.dot_dimension_numbers<[1], [0], [0], [1], [0, 0, 1, 1], [], []>} : vector<8x128xbf16>, vector<128x256xbf16>, vector<8x256xf32> -> vector<8x256xf32>
    %c0_94 = arith.constant 0 : index
    %c0_95 = arith.constant 0 : index
    %122 = vector.load %arg37[%c0_94, %c0_95] : memref<1x256xf32, #tpu.memory_space<vmem>>, vector<1x256xf32>
    %123 = vector.broadcast %122 : vector<1x256xf32> to vector<8x256xf32>
    %124 = arith.addf %121, %123 : vector<8x256xf32>
    %125 = math.tanh %124 : vector<8x256xf32>
    %c0_96 = arith.constant 0 : index
    %c0_97 = arith.constant 0 : index
    %126 = vector.load %arg40[%c0_96, %c0_97] : memref<8x256xf32, #tpu.memory_space<vmem>>, vector<8x256xf32>
    tpu.vector_store %arg40[%c0_96, %c0_97], %125 {strides = array<i32>} : memref<8x256xf32, #tpu.memory_space<vmem>>, vector<8x256xf32>,
    return
  }
  func.func @transform_0(%arg0: i32) -> (i32, i32) {
    %c0_i32 = arith.constant 0 : i32
    %c0_i32_0 = arith.constant 0 : i32
    return %arg0, %c0_i32 : i32, i32
  }
  func.func @transform_1(%arg0: i32) -> (i32, i32) {
    %c0_i32 = arith.constant 0 : i32
    %c0_i32_0 = arith.constant 0 : i32
    return %arg0, %c0_i32 : i32, i32
  }
  func.func @transform_2(%arg0: i32) -> (i32, i32) {
    %c0_i32 = arith.constant 0 : i32
    %c0_i32_0 = arith.constant 0 : i32
    return %arg0, %c0_i32 : i32, i32
  }
  func.func @transform_3(%arg0: i32) -> (i32, i32) {
    %c0_i32 = arith.constant 0 : i32
    %c0_i32_0 = arith.constant 0 : i32
    %c0_i32_1 = arith.constant 0 : i32
    return %c0_i32, %c0_i32_0 : i32, i32
  }
  func.func @transform_4(%arg0: i32) -> (i32, i32) {
    %c0_i32 = arith.constant 0 : i32
    %c0_i32_0 = arith.constant 0 : i32
    %c0_i32_1 = arith.constant 0 : i32
    return %c0_i32, %c0_i32_0 : i32, i32
  }
  func.func @transform_5(%arg0: i32) -> (i32, i32) {
    %c0_i32 = arith.constant 0 : i32
    %c0_i32_0 = arith.constant 0 : i32
    %c0_i32_1 = arith.constant 0 : i32
    return %c0_i32, %c0_i32_0 : i32, i32
  }
  func.func @transform_6(%arg0: i32) -> (i32, i32) {
    %c0_i32 = arith.constant 0 : i32
    %c0_i32_0 = arith.constant 0 : i32
    %c0_i32_1 = arith.constant 0 : i32
    return %c0_i32, %c0_i32_0 : i32, i32
  }
  func.func @transform_7(%arg0: i32) -> (i32, i32) {
    %c0_i32 = arith.constant 0 : i32
    %c0_i32_0 = arith.constant 0 : i32
    %c0_i32_1 = arith.constant 0 : i32
    return %c0_i32, %c0_i32_0 : i32, i32
  }
  func.func @transform_8(%arg0: i32) -> (i32, i32) {
    %c0_i32 = arith.constant 0 : i32
    %c0_i32_0 = arith.constant 0 : i32
    %c0_i32_1 = arith.constant 0 : i32
    return %c0_i32, %c0_i32_0 : i32, i32
  }
  func.func @transform_9(%arg0: i32) -> (i32, i32) {
    %c0_i32 = arith.constant 0 : i32
    %c0_i32_0 = arith.constant 0 : i32
    %c0_i32_1 = arith.constant 0 : i32
    return %c0_i32, %c0_i32_0 : i32, i32
  }
  func.func @transform_10(%arg0: i32) -> (i32, i32) {
    %c0_i32 = arith.constant 0 : i32
    %c0_i32_0 = arith.constant 0 : i32
    %c0_i32_1 = arith.constant 0 : i32
    return %c0_i32, %c0_i32_0 : i32, i32
  }
  func.func @transform_11(%arg0: i32) -> (i32, i32) {
    %c0_i32 = arith.constant 0 : i32
    %c0_i32_0 = arith.constant 0 : i32
    %c0_i32_1 = arith.constant 0 : i32
    return %c0_i32, %c0_i32_0 : i32, i32
  }
  func.func @transform_12(%arg0: i32) -> (i32, i32) {
    %c0_i32 = arith.constant 0 : i32
    %c0_i32_0 = arith.constant 0 : i32
    %c0_i32_1 = arith.constant 0 : i32
    return %c0_i32, %c0_i32_0 : i32, i32
  }
  func.func @transform_13(%arg0: i32) -> (i32, i32) {
    %c0_i32 = arith.constant 0 : i32
    %c0_i32_0 = arith.constant 0 : i32
    %c0_i32_1 = arith.constant 0 : i32
    return %c0_i32, %c0_i32_0 : i32, i32
  }
  func.func @transform_14(%arg0: i32) -> (i32, i32) {
    %c0_i32 = arith.constant 0 : i32
    %c0_i32_0 = arith.constant 0 : i32
    %c0_i32_1 = arith.constant 0 : i32
    return %c0_i32, %c0_i32_0 : i32, i32
  }
  func.func @transform_15(%arg0: i32) -> (i32, i32) {
    %c0_i32 = arith.constant 0 : i32
    %c0_i32_0 = arith.constant 0 : i32
    %c0_i32_1 = arith.constant 0 : i32
    return %c0_i32, %c0_i32_0 : i32, i32
  }
  func.func @transform_16(%arg0: i32) -> (i32, i32) {
    %c0_i32 = arith.constant 0 : i32
    %c0_i32_0 = arith.constant 0 : i32
    %c0_i32_1 = arith.constant 0 : i32
    return %c0_i32, %c0_i32_0 : i32, i32
  }
  func.func @transform_17(%arg0: i32) -> (i32, i32) {
    %c0_i32 = arith.constant 0 : i32
    %c0_i32_0 = arith.constant 0 : i32
    %c0_i32_1 = arith.constant 0 : i32
    return %c0_i32, %c0_i32_0 : i32, i32
  }
  func.func @transform_18(%arg0: i32) -> (i32, i32) {
    %c0_i32 = arith.constant 0 : i32
    %c0_i32_0 = arith.constant 0 : i32
    %c0_i32_1 = arith.constant 0 : i32
    return %c0_i32, %c0_i32_0 : i32, i32
  }
  func.func @transform_19(%arg0: i32) -> (i32, i32) {
    %c0_i32 = arith.constant 0 : i32
    %c0_i32_0 = arith.constant 0 : i32
    %c0_i32_1 = arith.constant 0 : i32
    return %c0_i32, %c0_i32_0 : i32, i32
  }
  func.func @transform_20(%arg0: i32) -> (i32, i32) {
    %c0_i32 = arith.constant 0 : i32
    %c0_i32_0 = arith.constant 0 : i32
    %c0_i32_1 = arith.constant 0 : i32
    return %c0_i32, %c0_i32_0 : i32, i32
  }
  func.func @transform_21(%arg0: i32) -> (i32, i32) {
    %c0_i32 = arith.constant 0 : i32
    %c0_i32_0 = arith.constant 0 : i32
    %c0_i32_1 = arith.constant 0 : i32
    return %c0_i32, %c0_i32_0 : i32, i32
  }
  func.func @transform_22(%arg0: i32) -> (i32, i32) {
    %c0_i32 = arith.constant 0 : i32
    %c0_i32_0 = arith.constant 0 : i32
    %c0_i32_1 = arith.constant 0 : i32
    return %c0_i32, %c0_i32_0 : i32, i32
  }
  func.func @transform_23(%arg0: i32) -> (i32, i32) {
    %c0_i32 = arith.constant 0 : i32
    %c0_i32_0 = arith.constant 0 : i32
    %c0_i32_1 = arith.constant 0 : i32
    return %c0_i32, %c0_i32_0 : i32, i32
  }
  func.func @transform_24(%arg0: i32) -> (i32, i32) {
    %c0_i32 = arith.constant 0 : i32
    %c0_i32_0 = arith.constant 0 : i32
    %c0_i32_1 = arith.constant 0 : i32
    return %c0_i32, %c0_i32_0 : i32, i32
  }
  func.func @transform_25(%arg0: i32) -> (i32, i32) {
    %c0_i32 = arith.constant 0 : i32
    %c0_i32_0 = arith.constant 0 : i32
    %c0_i32_1 = arith.constant 0 : i32
    return %c0_i32, %c0_i32_0 : i32, i32
  }
  func.func @transform_26(%arg0: i32) -> (i32, i32) {
    %c0_i32 = arith.constant 0 : i32
    %c0_i32_0 = arith.constant 0 : i32
    %c0_i32_1 = arith.constant 0 : i32
    return %c0_i32, %c0_i32_0 : i32, i32
  }
  func.func @transform_27(%arg0: i32) -> (i32, i32) {
    %c0_i32 = arith.constant 0 : i32
    %c0_i32_0 = arith.constant 0 : i32
    %c0_i32_1 = arith.constant 0 : i32
    return %c0_i32, %c0_i32_0 : i32, i32
  }
  func.func @transform_28(%arg0: i32) -> (i32, i32) {
    %c0_i32 = arith.constant 0 : i32
    %c0_i32_0 = arith.constant 0 : i32
    %c0_i32_1 = arith.constant 0 : i32
    return %c0_i32, %c0_i32_0 : i32, i32
  }
  func.func @transform_29(%arg0: i32) -> (i32, i32) {
    %c0_i32 = arith.constant 0 : i32
    %c0_i32_0 = arith.constant 0 : i32
    %c0_i32_1 = arith.constant 0 : i32
    return %c0_i32, %c0_i32_0 : i32, i32
  }
  func.func @transform_30(%arg0: i32) -> (i32, i32) {
    %c0_i32 = arith.constant 0 : i32
    %c0_i32_0 = arith.constant 0 : i32
    %c0_i32_1 = arith.constant 0 : i32
    return %c0_i32, %c0_i32_0 : i32, i32
  }
  func.func @transform_31(%arg0: i32) -> (i32, i32) {
    %c0_i32 = arith.constant 0 : i32
    %c0_i32_0 = arith.constant 0 : i32
    %c0_i32_1 = arith.constant 0 : i32
    return %c0_i32, %c0_i32_0 : i32, i32
  }
  func.func @transform_32(%arg0: i32) -> (i32, i32) {
    %c0_i32 = arith.constant 0 : i32
    %c0_i32_0 = arith.constant 0 : i32
    %c0_i32_1 = arith.constant 0 : i32
    return %c0_i32, %c0_i32_0 : i32, i32
  }
  func.func @transform_33(%arg0: i32) -> (i32, i32) {
    %c0_i32 = arith.constant 0 : i32
    %c0_i32_0 = arith.constant 0 : i32
    %c0_i32_1 = arith.constant 0 : i32
    return %c0_i32, %c0_i32_0 : i32, i32
  }
  func.func @transform_34(%arg0: i32) -> (i32, i32) {
    %c0_i32 = arith.constant 0 : i32
    %c0_i32_0 = arith.constant 0 : i32
    %c0_i32_1 = arith.constant 0 : i32
    return %c0_i32, %c0_i32_0 : i32, i32
  }
  func.func @transform_35(%arg0: i32) -> (i32, i32) {
    %c0_i32 = arith.constant 0 : i32
    %c0_i32_0 = arith.constant 0 : i32
    %c0_i32_1 = arith.constant 0 : i32
    return %c0_i32, %c0_i32_0 : i32, i32
  }
  func.func @transform_36(%arg0: i32) -> (i32, i32) {
    %c0_i32 = arith.constant 0 : i32
    %c0_i32_0 = arith.constant 0 : i32
    %c0_i32_1 = arith.constant 0 : i32
    return %c0_i32, %c0_i32_0 : i32, i32
  }
  func.func @transform_37(%arg0: i32) -> (i32, i32) {
    %c0_i32 = arith.constant 0 : i32
    %c0_i32_0 = arith.constant 0 : i32
    return %arg0, %c0_i32 : i32, i32
  }
  func.func @transform_38(%arg0: i32) -> (i32, i32) {
    %c0_i32 = arith.constant 0 : i32
    %c0_i32_0 = arith.constant 0 : i32
    return %arg0, %c0_i32 : i32, i32
  }
  func.func @transform_39(%arg0: i32) -> (i32, i32) {
    %c0_i32 = arith.constant 0 : i32
    %c0_i32_0 = arith.constant 0 : i32
    return %arg0, %c0_i32 : i32, i32
  }
  func.func @transform_40(%arg0: i32) -> (i32, i32) {
    %c0_i32 = arith.constant 0 : i32
    %c0_i32_0 = arith.constant 0 : i32
    return %arg0, %c0_i32 : i32, i32
  }
}

</mosaic_0001>

<llo_original>
// kernel: multimodal_autoencoder_forward.1
$region0: #{multimodal_autoencoder_forward.1}
  #allocation0 [shape = 'u32[]', space=smem, size = 0x4, offset = 0x4, fixed_abs, tag = 'smem constant byte address 0x4 - core index']
  #allocation1 [shape = 'u32[144,128]{1,0:T(1,128)}', space=vmem, size = 0x12000, scoped, tag = 'internal scratch']
  %s0 = inlined_call_operand.smem [shape: u32[41], index: -1, kind: input, shape index: {}]
  %s1 = sld [smem:[%s0]]
  %s2 = scalar_lea.smem %s0, 1
  %s3 = sld [smem:[%s2]]
  %s4 = scalar_lea.smem %s0, 2
  %s5 = sld [smem:[%s4]]
  %s6 = scalar_lea.smem %s0, 3
  %s7 = sld [smem:[%s6]]
  %s8 = scalar_lea.smem %s0, 4
  %s9 = sld [smem:[%s8]]
  %s10 = scalar_lea.smem %s0, 5
  %s11 = sld [smem:[%s10]]
  %s12 = scalar_lea.smem %s0, 6
  %s13 = sld [smem:[%s12]]
  %s14 = scalar_lea.smem %s0, 7
  %s15 = sld [smem:[%s14]]
  %s16 = scalar_lea.smem %s0, 8
  %s17 = sld [smem:[%s16]]
  %s18 = scalar_lea.smem %s0, 9
  %s19 = sld [smem:[%s18]]
  %s20 = scalar_lea.smem %s0, 10
  %s21 = sld [smem:[%s20]]
  %s22 = scalar_lea.smem %s0, 11
  %s23 = sld [smem:[%s22]]
  %s24 = scalar_lea.smem %s0, 12
  %s25 = sld [smem:[%s24]]
  %s26 = scalar_lea.smem %s0, 13
  %s27 = sld [smem:[%s26]]
  %s28 = scalar_lea.smem %s0, 14
  %s29 = sld [smem:[%s28]]
  %s30 = scalar_lea.smem %s0, 15
  %s31 = sld [smem:[%s30]]
  %s32 = scalar_lea.smem %s0, 16
  %s33 = sld [smem:[%s32]]
  %s34 = scalar_lea.smem %s0, 17
  %s35 = sld [smem:[%s34]]
  %s36 = scalar_lea.smem %s0, 18
  %s37 = sld [smem:[%s36]]
  %s38 = scalar_lea.smem %s0, 19
  %s39 = sld [smem:[%s38]]
  %s40 = scalar_lea.smem %s0, 20
  %s41 = sld [smem:[%s40]]
  %s42 = scalar_lea.smem %s0, 21
  %s43 = sld [smem:[%s42]]
  %s44 = scalar_lea.smem %s0, 22
  %s45 = sld [smem:[%s44]]
  %s46 = scalar_lea.smem %s0, 23
  %s47 = sld [smem:[%s46]]
  %s48 = scalar_lea.smem %s0, 24
  %s49 = sld [smem:[%s48]]
  %s50 = scalar_lea.smem %s0, 25
  %s51 = sld [smem:[%s50]]
  %s52 = scalar_lea.smem %s0, 26
  %s53 = sld [smem:[%s52]]
  %s54 = scalar_lea.smem %s0, 27
  %s55 = sld [smem:[%s54]]
  %s56 = scalar_lea.smem %s0, 28
  %s57 = sld [smem:[%s56]]
  %s58 = scalar_lea.smem %s0, 29
  %s59 = sld [smem:[%s58]]
  %s60 = scalar_lea.smem %s0, 30
  %s61 = sld [smem:[%s60]]
  %s62 = scalar_lea.smem %s0, 31
  %s63 = sld [smem:[%s62]]
  %s64 = scalar_lea.smem %s0, 32
  %s65 = sld [smem:[%s64]]
  %s66 = scalar_lea.smem %s0, 33
  %s67 = sld [smem:[%s66]]
  %s68 = scalar_lea.smem %s0, 34
  %s69 = sld [smem:[%s68]]
  %s70 = scalar_lea.smem %s0, 35
  %s71 = sld [smem:[%s70]]
  %s72 = scalar_lea.smem %s0, 36
  %s73 = sld [smem:[%s72]]
  %s74 = scalar_lea.smem %s0, 37
  %s75 = sld [smem:[%s74]]
  %s76 = scalar_lea.smem %s0, 38
  %s77 = sld [smem:[%s76]]
  %s78 = scalar_lea.smem %s0, 39
  %s79 = sld [smem:[%s78]]
  %s80 = scalar_lea.smem %s0, 40
  %s81 = sld [smem:[%s80]]
  %82 = xla_tuple %s75, %s77, %s79, %s81
  %s83 = sld [smem:[#allocation0]]
  $region278: #{multimodal_autoencoder_forward.1} parent=0
    _
  %s85 = ssub.s32 1, %s83
  %s86 = scalar_select 0, %s85, %s83
  $region1: #{multimodal_autoencoder_forward.1} parent=0
    #allocation2 [shape = 'u8[8192]{0}', space=vmem, size = 0x2000, scoped, tag = 'input window, operand 0, single buffered']
    #allocation3 [shape = 's32[1]{0}', space=sflag, size = 0x4, scoped, tag = 'scoped memory for multimodal_autoencoder_forward.1']
    #allocation4 [shape = 's32[1]{0}', space=sflag, size = 0x4, scoped, tag = 'scoped memory for multimodal_autoencoder_forward.1']
    #allocation5 [shape = 'u8[8192]{0}', space=vmem, size = 0x2000, scoped, tag = 'input window, operand 1, single buffered']
    #allocation6 [shape = 's32[1]{0}', space=sflag, size = 0x4, scoped, tag = 'scoped memory for multimodal_autoencoder_forward.1']
    #allocation7 [shape = 'u8[8192]{0}', space=vmem, size = 0x2000, scoped, tag = 'input window, operand 2, single buffered']
    #allocation8 [shape = 'u8[512]{0}', space=vmem, size = 0x400, scoped, tag = 'input window, operand 4, single buffered']
    #allocation9 [shape = 's32[1]{0}', space=sflag, size = 0x4, scoped, tag = 'scoped memory for multimodal_autoencoder_forward.1']
    #allocation10 [shape = 'u8[32768]{0}', space=vmem, size = 0x8000, scoped, tag = 'input window, operand 5, single buffered']
    #allocation11 [shape = 'u8[512]{0}', space=vmem, size = 0x400, scoped, tag = 'input window, operand 6, single buffered']
    #allocation12 [shape = 's32[1]{0}', space=sflag, size = 0x4, scoped, tag = 'scoped memory for multimodal_autoencoder_forward.1']
    #allocation13 [shape = 'u8[512]{0}', space=vmem, size = 0x400, scoped, tag = 'input window, operand 8, single buffered']
    #allocation14 [shape = 'u8[32768]{0}', space=vmem, size = 0x8000, scoped, tag = 'input window, operand 9, single buffered']
    #allocation15 [shape = 's32[1]{0}', space=sflag, size = 0x4, scoped, tag = 'scoped memory for multimodal_autoencoder_forward.1']
    #allocation16 [shape = 'u8[512]{0}', space=vmem, size = 0x400, scoped, tag = 'input window, operand 10, single buffered']
    #allocation17 [shape = 'u8[512]{0}', space=vmem, size = 0x400, scoped, tag = 'input window, operand 12, single buffered']
    #allocation18 [shape = 's32[1]{0}', space=sflag, size = 0x4, scoped, tag = 'scoped memory for multimodal_autoencoder_forward.1']
    #allocation19 [shape = 'u8[32768]{0}', space=vmem, size = 0x8000, scoped, tag = 'input window, operand 13, single buffered']
    #allocation20 [shape = 'u8[512]{0}', space=vmem, size = 0x400, scoped, tag = 'input window, operand 14, single buffered']
    #allocation21 [shape = 's32[1]{0}', space=sflag, size = 0x4, scoped, tag = 'scoped memory for multimodal_autoencoder_forward.1']
    #allocation22 [shape = 'u8[32768]{0}', space=vmem, size = 0x8000, scoped, tag = 'input window, operand 15, single buffered']
    #allocation23 [shape = 'u8[32768]{0}', space=vmem, size = 0x8000, scoped, tag = 'input window, operand 16, single buffered']
    #allocation24 [shape = 's32[1]{0}', space=sflag, size = 0x4, scoped, tag = 'scoped memory for multimodal_autoencoder_forward.1']
    #allocation25 [shape = 'u8[32768]{0}', space=vmem, size = 0x8000, scoped, tag = 'input window, operand 17, single buffered']
    #allocation26 [shape = 'u8[512]{0}', space=vmem, size = 0x400, scoped, tag = 'input window, operand 18, single buffered']
    #allocation27 [shape = 's32[1]{0}', space=sflag, size = 0x4, scoped, tag = 'scoped memory for multimodal_autoencoder_forward.1']
    #allocation28 [shape = 'u8[32768]{0}', space=vmem, size = 0x8000, scoped, tag = 'input window, operand 19, single buffered']
    #allocation29 [shape = 'u8[512]{0}', space=vmem, size = 0x400, scoped, tag = 'input window, operand 20, single buffered']
    #allocation30 [shape = 's32[1]{0}', space=sflag, size = 0x4, scoped, tag = 'scoped memory for multimodal_autoencoder_forward.1']
    #allocation31 [shape = 'u8[32768]{0}', space=vmem, size = 0x8000, scoped, tag = 'input window, operand 21, single buffered']
    #allocation32 [shape = 'u8[512]{0}', space=vmem, size = 0x400, scoped, tag = 'input window, operand 22, single buffered']
    #allocation33 [shape = 's32[1]{0}', space=sflag, size = 0x4, scoped, tag = 'scoped memory for multimodal_autoencoder_forward.1']
    #allocation34 [shape = 'u8[32768]{0}', space=vmem, size = 0x8000, scoped, tag = 'input window, operand 23, single buffered']
    #allocation35 [shape = 'u8[512]{0}', space=vmem, size = 0x400, scoped, tag = 'input window, operand 24, single buffered']
    #allocation36 [shape = 's32[1]{0}', space=sflag, size = 0x4, scoped, tag = 'scoped memory for multimodal_autoencoder_forward.1']
    #allocation37 [shape = 'u8[32768]{0}', space=vmem, size = 0x8000, scoped, tag = 'input window, operand 25, single buffered']
    #allocation38 [shape = 'u8[512]{0}', space=vmem, size = 0x400, scoped, tag = 'input window, operand 26, single buffered']
    #allocation39 [shape = 's32[1]{0}', space=sflag, size = 0x4, scoped, tag = 'scoped memory for multimodal_autoencoder_forward.1']
    #allocation40 [shape = 'u8[8192]{0}', space=vmem, size = 0x2000, scoped, tag = 'output window, operand 0, single buffered']
    #allocation41 [shape = 'u8[8192]{0}', space=vmem, size = 0x2000, scoped, tag = 'output window, operand 1, single buffered']
    #allocation42 [shape = 's32[1]{0}', space=sflag, size = 0x4, scoped, tag = 'scoped memory for multimodal_autoencoder_forward.1']
    #allocation43 [shape = 'u8[8192]{0}', space=vmem, size = 0x2000, scoped, tag = 'output window, operand 2, single buffered']
    #allocation44 [shape = 'u8[4096]{0}', space=vmem, size = 0x1000, scoped, tag = 'output window, operand 3, single buffered']
    #allocation45 [shape = 's32[1]{0}', space=sflag, size = 0x4, scoped, tag = 'scoped memory for multimodal_autoencoder_forward.1']
    %87 = vsyncpa [#allocation3], 0
    %88 = vsyncpa [#allocation6], 0
    %89 = vsyncpa [#allocation9], 0
    %90 = vsyncpa [#allocation12], 0
    %91 = vsyncpa [#allocation15], 0
    %92 = vsyncpa [#allocation18], 0
    %93 = vsyncpa [#allocation21], 0
    %94 = vsyncpa [#allocation24], 0
    %95 = vsyncpa [#allocation27], 0
    %96 = vsyncpa [#allocation30], 0
    %97 = vsyncpa [#allocation33], 0
    %98 = vsyncpa [#allocation36], 0
    %99 = vsyncpa [#allocation39], 0
    %100 = vsyncpa [#allocation4], 0
    %101 = vsyncpa [#allocation42], 0
    %102 = vsyncpa [#allocation45], 0
    // Predicated region
    $region2: #{multimodal_autoencoder_forward.1} parent=1 // pred_check
      _
    $region3: #{multimodal_autoencoder_forward.1} parent=1 // pred_check_branch
      %104 = sbr.rel (0) target = $region5
    $region4: #{multimodal_autoencoder_forward.1} parent=1 // pred_region
      %s106 = ssub.s32 256, 256
      %107 = vsyncadd [#allocation3], %s106
      %s109 = sshll.u32 [#allocation2], 4
      %s110 = int_to_ptr.vmem [resolvable:$true] %s109
      %112 = dma.hbm_to_vmem [thread:$0]  %s1, 256, %s110, [#allocation3]
    $region5: #{multimodal_autoencoder_forward.1} parent=1 // pred_fallthru
      _
    // Predicated region
    $region6: #{multimodal_autoencoder_forward.1} parent=1 // pred_check
      _
    $region7: #{multimodal_autoencoder_forward.1} parent=1 // pred_check_branch
      %114 = sbr.rel (0) target = $region9
    $region8: #{multimodal_autoencoder_forward.1} parent=1 // pred_region
      %s116 = ssub.s32 256, 256
      %117 = vsyncadd [#allocation6], %s116
      %s119 = sshll.u32 [#allocation5], 4
      %s120 = int_to_ptr.vmem [resolvable:$true] %s119
      %122 = dma.hbm_to_vmem [thread:$0]  %s3, 256, %s120, [#allocation6]
    $region9: #{multimodal_autoencoder_forward.1} parent=1 // pred_fallthru
      _
    // Predicated region
    $region10: #{multimodal_autoencoder_forward.1} parent=1 // pred_check
      _
    $region11: #{multimodal_autoencoder_forward.1} parent=1 // pred_check_branch
      %124 = sbr.rel (0) target = $region13
    $region12: #{multimodal_autoencoder_forward.1} parent=1 // pred_region
      %s126 = ssub.s32 256, 256
      %127 = vsyncadd [#allocation6], %s126
      %s129 = sshll.u32 [#allocation7], 4
      %s130 = int_to_ptr.vmem [resolvable:$true] %s129
      %132 = dma.hbm_to_vmem [thread:$0]  %s5, 256, %s130, [#allocation6]
    $region13: #{multimodal_autoencoder_forward.1} parent=1 // pred_fallthru
      _
    // Predicated region
    $region14: #{multimodal_autoencoder_forward.1} parent=1 // pred_check
      _
    $region15: #{multimodal_autoencoder_forward.1} parent=1 // pred_check_branch
      %134 = sbr.rel (0) target = $region17
    $region16: #{multimodal_autoencoder_forward.1} parent=1 // pred_region
      _
    $region17: #{multimodal_autoencoder_forward.1} parent=1 // pred_fallthru
      _
    // Predicated region
    $region18: #{multimodal_autoencoder_forward.1} parent=1 // pred_check
      _
    $region19: #{multimodal_autoencoder_forward.1} parent=1 // pred_check_branch
      %136 = sbr.rel (0) target = $region21
    $region20: #{multimodal_autoencoder_forward.1} parent=1 // pred_region
      %s138 = ssub.s32 16, 16
      %139 = vsyncadd [#allocation9], %s138
      %s141 = sshll.u32 [#allocation8], 4
      %s142 = int_to_ptr.vmem [resolvable:$true] %s141
      %144 = dma.hbm_to_vmem [thread:$0]  %s9, 16, %s142, [#allocation9]
    $region21: #{multimodal_autoencoder_forward.1} parent=1 // pred_fallthru
      _
    // Predicated region
    $region22: #{multimodal_autoencoder_forward.1} parent=1 // pred_check
      _
    $region23: #{multimodal_autoencoder_forward.1} parent=1 // pred_check_branch
      %146 = sbr.rel (0) target = $region25
    $region24: #{multimodal_autoencoder_forward.1} parent=1 // pred_region
      %s148 = ssub.s32 1024, 1024
      %149 = vsyncadd [#allocation9], %s148
      %s150 = sshll.u32 [#allocation10], 4
      %s151 = int_to_ptr.vmem [resolvable:$true] %s150
      %156 = dma.hbm_to_vmem [thread:$0]  %s11, 1024, %s151, [#allocation9], 64, 64, 4
    $region25: #{multimodal_autoencoder_forward.1} parent=1 // pred_fallthru
      _
    // Predicated region
    $region26: #{multimodal_autoencoder_forward.1} parent=1 // pred_check
      _
    $region27: #{multimodal_autoencoder_forward.1} parent=1 // pred_check_branch
      %158 = sbr.rel (0) target = $region29
    $region28: #{multimodal_autoencoder_forward.1} parent=1 // pred_region
      %s160 = ssub.s32 16, 16
      %161 = vsyncadd [#allocation12], %s160
      %s163 = sshll.u32 [#allocation11], 4
      %s164 = int_to_ptr.vmem [resolvable:$true] %s163
      %166 = dma.hbm_to_vmem [thread:$0]  %s13, 16, %s164, [#allocation12]
    $region29: #{multimodal_autoencoder_forward.1} parent=1 // pred_fallthru
      _
    // Predicated region
    $region30: #{multimodal_autoencoder_forward.1} parent=1 // pred_check
      _
    $region31: #{multimodal_autoencoder_forward.1} parent=1 // pred_check_branch
      %168 = sbr.rel (0) target = $region33
    $region32: #{multimodal_autoencoder_forward.1} parent=1 // pred_region
      _
    $region33: #{multimodal_autoencoder_forward.1} parent=1 // pred_fallthru
      _
    // Predicated region
    $region34: #{multimodal_autoencoder_forward.1} parent=1 // pred_check
      _
    $region35: #{multimodal_autoencoder_forward.1} parent=1 // pred_check_branch
      %170 = sbr.rel (0) target = $region37
    $region36: #{multimodal_autoencoder_forward.1} parent=1 // pred_region
      %s172 = ssub.s32 16, 16
      %173 = vsyncadd [#allocation12], %s172
      %s175 = sshll.u32 [#allocation13], 4
      %s176 = int_to_ptr.vmem [resolvable:$true] %s175
      %178 = dma.hbm_to_vmem [thread:$0]  %s17, 16, %s176, [#allocation12]
    $region37: #{multimodal_autoencoder_forward.1} parent=1 // pred_fallthru
      _
    // Predicated region
    $region38: #{multimodal_autoencoder_forward.1} parent=1 // pred_check
      _
    $region39: #{multimodal_autoencoder_forward.1} parent=1 // pred_check_branch
      %180 = sbr.rel (0) target = $region41
    $region40: #{multimodal_autoencoder_forward.1} parent=1 // pred_region
      %s182 = ssub.s32 1024, 1024
      %183 = vsyncadd [#allocation15], %s182
      %s184 = sshll.u32 [#allocation14], 4
      %s185 = int_to_ptr.vmem [resolvable:$true] %s184
      %190 = dma.hbm_to_vmem [thread:$0]  %s19, 1024, %s185, [#allocation15], 64, 64, 4
    $region41: #{multimodal_autoencoder_forward.1} parent=1 // pred_fallthru
      _
    // Predicated region
    $region42: #{multimodal_autoencoder_forward.1} parent=1 // pred_check
      _
    $region43: #{multimodal_autoencoder_forward.1} parent=1 // pred_check_branch
      %192 = sbr.rel (0) target = $region45
    $region44: #{multimodal_autoencoder_forward.1} parent=1 // pred_region
      %s194 = ssub.s32 16, 16
      %195 = vsyncadd [#allocation15], %s194
      %s197 = sshll.u32 [#allocation16], 4
      %s198 = int_to_ptr.vmem [resolvable:$true] %s197
      %200 = dma.hbm_to_vmem [thread:$0]  %s21, 16, %s198, [#allocation15]
    $region45: #{multimodal_autoencoder_forward.1} parent=1 // pred_fallthru
      _
    // Predicated region
    $region46: #{multimodal_autoencoder_forward.1} parent=1 // pred_check
      _
    $region47: #{multimodal_autoencoder_forward.1} parent=1 // pred_check_branch
      %202 = sbr.rel (0) target = $region49
    $region48: #{multimodal_autoencoder_forward.1} parent=1 // pred_region
      _
    $region49: #{multimodal_autoencoder_forward.1} parent=1 // pred_fallthru
      _
    // Predicated region
    $region50: #{multimodal_autoencoder_forward.1} parent=1 // pred_check
      _
    $region51: #{multimodal_autoencoder_forward.1} parent=1 // pred_check_branch
      %204 = sbr.rel (0) target = $region53
    $region52: #{multimodal_autoencoder_forward.1} parent=1 // pred_region
      %s206 = ssub.s32 16, 16
      %207 = vsyncadd [#allocation18], %s206
      %s209 = sshll.u32 [#allocation17], 4
      %s210 = int_to_ptr.vmem [resolvable:$true] %s209
      %212 = dma.hbm_to_vmem [thread:$0]  %s25, 16, %s210, [#allocation18]
    $region53: #{multimodal_autoencoder_forward.1} parent=1 // pred_fallthru
      _
    // Predicated region
    $region54: #{multimodal_autoencoder_forward.1} parent=1 // pred_check
      _
    $region55: #{multimodal_autoencoder_forward.1} parent=1 // pred_check_branch
      %214 = sbr.rel (0) target = $region57
    $region56: #{multimodal_autoencoder_forward.1} parent=1 // pred_region
      %s216 = ssub.s32 1024, 1024
      %217 = vsyncadd [#allocation18], %s216
      %s218 = sshll.u32 [#allocation19], 4
      %s219 = int_to_ptr.vmem [resolvable:$true] %s218
      %224 = dma.hbm_to_vmem [thread:$0]  %s27, 1024, %s219, [#allocation18], 64, 64, 4
    $region57: #{multimodal_autoencoder_forward.1} parent=1 // pred_fallthru
      _
    // Predicated region
    $region58: #{multimodal_autoencoder_forward.1} parent=1 // pred_check
      _
    $region59: #{multimodal_autoencoder_forward.1} parent=1 // pred_check_branch
      %226 = sbr.rel (0) target = $region61
    $region60: #{multimodal_autoencoder_forward.1} parent=1 // pred_region
      %s228 = ssub.s32 16, 16
      %229 = vsyncadd [#allocation21], %s228
      %s231 = sshll.u32 [#allocation20], 4
      %s232 = int_to_ptr.vmem [resolvable:$true] %s231
      %234 = dma.hbm_to_vmem [thread:$0]  %s29, 16, %s232, [#allocation21]
    $region61: #{multimodal_autoencoder_forward.1} parent=1 // pred_fallthru
      _
    // Predicated region
    $region62: #{multimodal_autoencoder_forward.1} parent=1 // pred_check
      _
    $region63: #{multimodal_autoencoder_forward.1} parent=1 // pred_check_branch
      %236 = sbr.rel (0) target = $region65
    $region64: #{multimodal_autoencoder_forward.1} parent=1 // pred_region
      %s238 = ssub.s32 1024, 1024
      %239 = vsyncadd [#allocation21], %s238
      %s240 = sshll.u32 [#allocation22], 4
      %s241 = int_to_ptr.vmem [resolvable:$true] %s240
      %246 = dma.hbm_to_vmem [thread:$0]  %s31, 1024, %s241, [#allocation21], 64, 64, 4
    $region65: #{multimodal_autoencoder_forward.1} parent=1 // pred_fallthru
      _
    // Predicated region
    $region66: #{multimodal_autoencoder_forward.1} parent=1 // pred_check
      _
    $region67: #{multimodal_autoencoder_forward.1} parent=1 // pred_check_branch
      %248 = sbr.rel (0) target = $region69
    $region68: #{multimodal_autoencoder_forward.1} parent=1 // pred_region
      %s250 = ssub.s32 1024, 1024
      %251 = vsyncadd [#allocation24], %s250
      %s252 = sshll.u32 [#allocation23], 4
      %s253 = int_to_ptr.vmem [resolvable:$true] %s252
      %258 = dma.hbm_to_vmem [thread:$0]  %s33, 1024, %s253, [#allocation24], 64, 64, 4
    $region69: #{multimodal_autoencoder_forward.1} parent=1 // pred_fallthru
      _
    // Predicated region
    $region70: #{multimodal_autoencoder_forward.1} parent=1 // pred_check
      _
    $region71: #{multimodal_autoencoder_forward.1} parent=1 // pred_check_branch
      %260 = sbr.rel (0) target = $region73
    $region72: #{multimodal_autoencoder_forward.1} parent=1 // pred_region
      %s262 = ssub.s32 1024, 1024
      %263 = vsyncadd [#allocation24], %s262
      %s264 = sshll.u32 [#allocation25], 4
      %s265 = int_to_ptr.vmem [resolvable:$true] %s264
      %270 = dma.hbm_to_vmem [thread:$0]  %s35, 1024, %s265, [#allocation24], 64, 64, 4
    $region73: #{multimodal_autoencoder_forward.1} parent=1 // pred_fallthru
      _
    // Predicated region
    $region74: #{multimodal_autoencoder_forward.1} parent=1 // pred_check
      _
    $region75: #{multimodal_autoencoder_forward.1} parent=1 // pred_check_branch
      %272 = sbr.rel (0) target = $region77
    $region76: #{multimodal_autoencoder_forward.1} parent=1 // pred_region
      %s274 = ssub.s32 16, 16
      %275 = vsyncadd [#allocation27], %s274
      %s277 = sshll.u32 [#allocation26], 4
      %s278 = int_to_ptr.vmem [resolvable:$true] %s277
      %280 = dma.hbm_to_vmem [thread:$0]  %s37, 16, %s278, [#allocation27]
    $region77: #{multimodal_autoencoder_forward.1} parent=1 // pred_fallthru
      _
    // Predicated region
    $region78: #{multimodal_autoencoder_forward.1} parent=1 // pred_check
      _
    $region79: #{multimodal_autoencoder_forward.1} parent=1 // pred_check_branch
      %282 = sbr.rel (0) target = $region81
    $region80: #{multimodal_autoencoder_forward.1} parent=1 // pred_region
      %s284 = ssub.s32 1024, 1024
      %285 = vsyncadd [#allocation27], %s284
      %s286 = sshll.u32 [#allocation28], 4
      %s287 = int_to_ptr.vmem [resolvable:$true] %s286
      %292 = dma.hbm_to_vmem [thread:$0]  %s39, 1024, %s287, [#allocation27], 64, 64, 4
    $region81: #{multimodal_autoencoder_forward.1} parent=1 // pred_fallthru
      _
    // Predicated region
    $region82: #{multimodal_autoencoder_forward.1} parent=1 // pred_check
      _
    $region83: #{multimodal_autoencoder_forward.1} parent=1 // pred_check_branch
      %294 = sbr.rel (0) target = $region85
    $region84: #{multimodal_autoencoder_forward.1} parent=1 // pred_region
      %s296 = ssub.s32 16, 16
      %297 = vsyncadd [#allocation30], %s296
      %s299 = sshll.u32 [#allocation29], 4
      %s300 = int_to_ptr.vmem [resolvable:$true] %s299
      %302 = dma.hbm_to_vmem [thread:$0]  %s41, 16, %s300, [#allocation30]
    $region85: #{multimodal_autoencoder_forward.1} parent=1 // pred_fallthru
      _
    // Predicated region
    $region86: #{multimodal_autoencoder_forward.1} parent=1 // pred_check
      _
    $region87: #{multimodal_autoencoder_forward.1} parent=1 // pred_check_branch
      %304 = sbr.rel (0) target = $region89
    $region88: #{multimodal_autoencoder_forward.1} parent=1 // pred_region
      %s306 = ssub.s32 1024, 1024
      %307 = vsyncadd [#allocation30], %s306
      %s308 = sshll.u32 [#allocation31], 4
      %s309 = int_to_ptr.vmem [resolvable:$true] %s308
      %314 = dma.hbm_to_vmem [thread:$0]  %s43, 1024, %s309, [#allocation30], 64, 64, 4
    $region89: #{multimodal_autoencoder_forward.1} parent=1 // pred_fallthru
      _
    // Predicated region
    $region90: #{multimodal_autoencoder_forward.1} parent=1 // pred_check
      _
    $region91: #{multimodal_autoencoder_forward.1} parent=1 // pred_check_branch
      %316 = sbr.rel (0) target = $region93
    $region92: #{multimodal_autoencoder_forward.1} parent=1 // pred_region
      %s318 = ssub.s32 16, 16
      %319 = vsyncadd [#allocation33], %s318
      %s321 = sshll.u32 [#allocation32], 4
      %s322 = int_to_ptr.vmem [resolvable:$true] %s321
      %324 = dma.hbm_to_vmem [thread:$0]  %s45, 16, %s322, [#allocation33]
    $region93: #{multimodal_autoencoder_forward.1} parent=1 // pred_fallthru
      _
    // Predicated region
    $region94: #{multimodal_autoencoder_forward.1} parent=1 // pred_check
      _
    $region95: #{multimodal_autoencoder_forward.1} parent=1 // pred_check_branch
      %326 = sbr.rel (0) target = $region97
    $region96: #{multimodal_autoencoder_forward.1} parent=1 // pred_region
      %s328 = ssub.s32 1024, 1024
      %329 = vsyncadd [#allocation33], %s328
      %s330 = sshll.u32 [#allocation34], 4
      %s331 = int_to_ptr.vmem [resolvable:$true] %s330
      %336 = dma.hbm_to_vmem [thread:$0]  %s47, 1024, %s331, [#allocation33], 64, 64, 4
    $region97: #{multimodal_autoencoder_forward.1} parent=1 // pred_fallthru
      _
    // Predicated region
    $region98: #{multimodal_autoencoder_forward.1} parent=1 // pred_check
      _
    $region99: #{multimodal_autoencoder_forward.1} parent=1 // pred_check_branch
      %338 = sbr.rel (0) target = $region101
    $region100: #{multimodal_autoencoder_forward.1} parent=1 // pred_region
      %s340 = ssub.s32 16, 16
      %341 = vsyncadd [#allocation36], %s340
      %s343 = sshll.u32 [#allocation35], 4
      %s344 = int_to_ptr.vmem [resolvable:$true] %s343
      %346 = dma.hbm_to_vmem [thread:$0]  %s49, 16, %s344, [#allocation36]
    $region101: #{multimodal_autoencoder_forward.1} parent=1 // pred_fallthru
      _
    // Predicated region
    $region102: #{multimodal_autoencoder_forward.1} parent=1 // pred_check
      _
    $region103: #{multimodal_autoencoder_forward.1} parent=1 // pred_check_branch
      %348 = sbr.rel (0) target = $region105
    $region104: #{multimodal_autoencoder_forward.1} parent=1 // pred_region
      %s350 = ssub.s32 1024, 1024
      %351 = vsyncadd [#allocation36], %s350
      %s352 = sshll.u32 [#allocation37], 4
      %s353 = int_to_ptr.vmem [resolvable:$true] %s352
      %358 = dma.hbm_to_vmem [thread:$0]  %s51, 1024, %s353, [#allocation36], 64, 64, 4
    $region105: #{multimodal_autoencoder_forward.1} parent=1 // pred_fallthru
      _
    // Predicated region
    $region106: #{multimodal_autoencoder_forward.1} parent=1 // pred_check
      _
    $region107: #{multimodal_autoencoder_forward.1} parent=1 // pred_check_branch
      %360 = sbr.rel (0) target = $region109
    $region108: #{multimodal_autoencoder_forward.1} parent=1 // pred_region
      %s362 = ssub.s32 16, 16
      %363 = vsyncadd [#allocation39], %s362
      %s365 = sshll.u32 [#allocation38], 4
      %s366 = int_to_ptr.vmem [resolvable:$true] %s365
      %368 = dma.hbm_to_vmem [thread:$0]  %s53, 16, %s366, [#allocation39]
    $region109: #{multimodal_autoencoder_forward.1} parent=1 // pred_fallthru
      _
    // Predicated region
    $region110: #{multimodal_autoencoder_forward.1} parent=1 // pred_check
      _
    $region111: #{multimodal_autoencoder_forward.1} parent=1 // pred_check_branch
      %370 = sbr.rel (0) target = $region113
    $region112: #{multimodal_autoencoder_forward.1} parent=1 // pred_region
      _
    $region113: #{multimodal_autoencoder_forward.1} parent=1 // pred_fallthru
      _
    // Predicated region
    $region114: #{multimodal_autoencoder_forward.1} parent=1 // pred_check
      _
    $region115: #{multimodal_autoencoder_forward.1} parent=1 // pred_check_branch
      %372 = sbr.rel (0) target = $region117
    $region116: #{multimodal_autoencoder_forward.1} parent=1 // pred_region
      _
    $region117: #{multimodal_autoencoder_forward.1} parent=1 // pred_fallthru
      _
    // Predicated region
    $region118: #{multimodal_autoencoder_forward.1} parent=1 // pred_check
      _
    $region119: #{multimodal_autoencoder_forward.1} parent=1 // pred_check_branch
      %374 = sbr.rel (0) target = $region121
    $region120: #{multimodal_autoencoder_forward.1} parent=1 // pred_region
      _
    $region121: #{multimodal_autoencoder_forward.1} parent=1 // pred_fallthru
      _
    // Predicated region
    $region122: #{multimodal_autoencoder_forward.1} parent=1 // pred_check
      _
    $region123: #{multimodal_autoencoder_forward.1} parent=1 // pred_check_branch
      %376 = sbr.rel (0) target = $region125
    $region124: #{multimodal_autoencoder_forward.1} parent=1 // pred_region
      _
    $region125: #{multimodal_autoencoder_forward.1} parent=1 // pred_fallthru
      _
    // Predicated region
    $region126: #{multimodal_autoencoder_forward.1} parent=1 // pred_check
      _
    $region127: #{multimodal_autoencoder_forward.1} parent=1 // pred_check_branch
      %378 = sbr.rel (0) target = $region129
    $region128: #{multimodal_autoencoder_forward.1} parent=1 // pred_region
      _
    $region129: #{multimodal_autoencoder_forward.1} parent=1 // pred_fallthru
      _
    // Predicated region
    $region130: #{multimodal_autoencoder_forward.1} parent=1 // pred_check
      _
    $region131: #{multimodal_autoencoder_forward.1} parent=1 // pred_check_branch
      %380 = sbr.rel (0) target = $region133
    $region132: #{multimodal_autoencoder_forward.1} parent=1 // pred_region
      _
    $region133: #{multimodal_autoencoder_forward.1} parent=1 // pred_fallthru
      _
    // Predicated region
    $region134: #{multimodal_autoencoder_forward.1} parent=1 // pred_check
      _
    $region135: #{multimodal_autoencoder_forward.1} parent=1 // pred_check_branch
      %382 = sbr.rel (0) target = $region137
    $region136: #{multimodal_autoencoder_forward.1} parent=1 // pred_region
      _
    $region137: #{multimodal_autoencoder_forward.1} parent=1 // pred_fallthru
      _
    // Predicated region
    $region138: #{multimodal_autoencoder_forward.1} parent=1 // pred_check
      _
    $region139: #{multimodal_autoencoder_forward.1} parent=1 // pred_check_branch
      %384 = sbr.rel (0) target = $region141
    $region140: #{multimodal_autoencoder_forward.1} parent=1 // pred_region
      _
    $region141: #{multimodal_autoencoder_forward.1} parent=1 // pred_fallthru
      _
    // Predicated region
    $region142: #{multimodal_autoencoder_forward.1} parent=1 // pred_check
      _
    $region143: #{multimodal_autoencoder_forward.1} parent=1 // pred_check_branch
      %386 = sbr.rel (0) target = $region145
    $region144: #{multimodal_autoencoder_forward.1} parent=1 // pred_region
      _
    $region145: #{multimodal_autoencoder_forward.1} parent=1 // pred_fallthru
      _
    // Predicated region
    $region146: #{multimodal_autoencoder_forward.1} parent=1 // pred_check
      _
    $region147: #{multimodal_autoencoder_forward.1} parent=1 // pred_check_branch
      %388 = sbr.rel (0) target = $region149
    $region148: #{multimodal_autoencoder_forward.1} parent=1 // pred_region
      _
    $region149: #{multimodal_autoencoder_forward.1} parent=1 // pred_fallthru
      _
    // Predicated region
    $region150: #{multimodal_autoencoder_forward.1} parent=1 // pred_check
      _
    $region151: #{multimodal_autoencoder_forward.1} parent=1 // pred_check_branch
      %390 = sbr.rel (0) target = $region153
    $region152: #{multimodal_autoencoder_forward.1} parent=1 // pred_region
      %391 = dma.done [#allocation3], 256
    $region153: #{multimodal_autoencoder_forward.1} parent=1 // pred_fallthru
      _
    // Predicated region
    $region154: #{multimodal_autoencoder_forward.1} parent=1 // pred_check
      _
    $region155: #{multimodal_autoencoder_forward.1} parent=1 // pred_check_branch
      %393 = sbr.rel (0) target = $region157
    $region156: #{multimodal_autoencoder_forward.1} parent=1 // pred_region
      %394 = dma.done [#allocation6], 256
    $region157: #{multimodal_autoencoder_forward.1} parent=1 // pred_fallthru
      _
    // Predicated region
    $region158: #{multimodal_autoencoder_forward.1} parent=1 // pred_check
      _
    $region159: #{multimodal_autoencoder_forward.1} parent=1 // pred_check_branch
      %396 = sbr.rel (0) target = $region161
    $region160: #{multimodal_autoencoder_forward.1} parent=1 // pred_region
      %397 = dma.done [#allocation6], 256
    $region161: #{multimodal_autoencoder_forward.1} parent=1 // pred_fallthru
      _
    // Predicated region
    $region162: #{multimodal_autoencoder_forward.1} parent=1 // pred_check
      _
    $region163: #{multimodal_autoencoder_forward.1} parent=1 // pred_check_branch
      %399 = sbr.rel (0) target = $region165
    $region164: #{multimodal_autoencoder_forward.1} parent=1 // pred_region
      %400 = dma.done [#allocation9], 16
    $region165: #{multimodal_autoencoder_forward.1} parent=1 // pred_fallthru
      _
    // Predicated region
    $region166: #{multimodal_autoencoder_forward.1} parent=1 // pred_check
      _
    $region167: #{multimodal_autoencoder_forward.1} parent=1 // pred_check_branch
      %402 = sbr.rel (0) target = $region169
    $region168: #{multimodal_autoencoder_forward.1} parent=1 // pred_region
      %403 = dma.done [#allocation9], 1024
    $region169: #{multimodal_autoencoder_forward.1} parent=1 // pred_fallthru
      _
    // Predicated region
    $region170: #{multimodal_autoencoder_forward.1} parent=1 // pred_check
      _
    $region171: #{multimodal_autoencoder_forward.1} parent=1 // pred_check_branch
      %405 = sbr.rel (0) target = $region173
    $region172: #{multimodal_autoencoder_forward.1} parent=1 // pred_region
      %406 = dma.done [#allocation12], 16
    $region173: #{multimodal_autoencoder_forward.1} parent=1 // pred_fallthru
      _
    // Predicated region
    $region174: #{multimodal_autoencoder_forward.1} parent=1 // pred_check
      _
    $region175: #{multimodal_autoencoder_forward.1} parent=1 // pred_check_branch
      %408 = sbr.rel (0) target = $region177
    $region176: #{multimodal_autoencoder_forward.1} parent=1 // pred_region
      %409 = dma.done [#allocation12], 16
    $region177: #{multimodal_autoencoder_forward.1} parent=1 // pred_fallthru
      _
    // Predicated region
    $region178: #{multimodal_autoencoder_forward.1} parent=1 // pred_check
      _
    $region179: #{multimodal_autoencoder_forward.1} parent=1 // pred_check_branch
      %411 = sbr.rel (0) target = $region181
    $region180: #{multimodal_autoencoder_forward.1} parent=1 // pred_region
      %412 = dma.done [#allocation15], 1024
    $region181: #{multimodal_autoencoder_forward.1} parent=1 // pred_fallthru
      _
    // Predicated region
    $region182: #{multimodal_autoencoder_forward.1} parent=1 // pred_check
      _
    $region183: #{multimodal_autoencoder_forward.1} parent=1 // pred_check_branch
      %414 = sbr.rel (0) target = $region185
    $region184: #{multimodal_autoencoder_forward.1} parent=1 // pred_region
      %415 = dma.done [#allocation15], 16
    $region185: #{multimodal_autoencoder_forward.1} parent=1 // pred_fallthru
      _
    // Predicated region
    $region186: #{multimodal_autoencoder_forward.1} parent=1 // pred_check
      _
    $region187: #{multimodal_autoencoder_forward.1} parent=1 // pred_check_branch
      %417 = sbr.rel (0) target = $region189
    $region188: #{multimodal_autoencoder_forward.1} parent=1 // pred_region
      %418 = dma.done [#allocation18], 16
    $region189: #{multimodal_autoencoder_forward.1} parent=1 // pred_fallthru
      _
    // Predicated region
    $region190: #{multimodal_autoencoder_forward.1} parent=1 // pred_check
      _
    $region191: #{multimodal_autoencoder_forward.1} parent=1 // pred_check_branch
      %420 = sbr.rel (0) target = $region193
    $region192: #{multimodal_autoencoder_forward.1} parent=1 // pred_region
      %421 = dma.done [#allocation18], 1024
    $region193: #{multimodal_autoencoder_forward.1} parent=1 // pred_fallthru
      _
    // Predicated region
    $region194: #{multimodal_autoencoder_forward.1} parent=1 // pred_check
      _
    $region195: #{multimodal_autoencoder_forward.1} parent=1 // pred_check_branch
      %423 = sbr.rel (0) target = $region197
    $region196: #{multimodal_autoencoder_forward.1} parent=1 // pred_region
      %424 = dma.done [#allocation21], 16
    $region197: #{multimodal_autoencoder_forward.1} parent=1 // pred_fallthru
      _
    // Predicated region
    $region198: #{multimodal_autoencoder_forward.1} parent=1 // pred_check
      _
    $region199: #{multimodal_autoencoder_forward.1} parent=1 // pred_check_branch
      %426 = sbr.rel (0) target = $region201
    $region200: #{multimodal_autoencoder_forward.1} parent=1 // pred_region
      %427 = dma.done [#allocation21], 1024
    $region201: #{multimodal_autoencoder_forward.1} parent=1 // pred_fallthru
      _
    // Predicated region
    $region202: #{multimodal_autoencoder_forward.1} parent=1 // pred_check
      _
    $region203: #{multimodal_autoencoder_forward.1} parent=1 // pred_check_branch
      %429 = sbr.rel (0) target = $region205
    $region204: #{multimodal_autoencoder_forward.1} parent=1 // pred_region
      %430 = dma.done [#allocation24], 1024
    $region205: #{multimodal_autoencoder_forward.1} parent=1 // pred_fallthru
      _
    // Predicated region
    $region206: #{multimodal_autoencoder_forward.1} parent=1 // pred_check
      _
    $region207: #{multimodal_autoencoder_forward.1} parent=1 // pred_check_branch
      %432 = sbr.rel (0) target = $region209
    $region208: #{multimodal_autoencoder_forward.1} parent=1 // pred_region
      %433 = dma.done [#allocation24], 1024
    $region209: #{multimodal_autoencoder_forward.1} parent=1 // pred_fallthru
      _
    // Predicated region
    $region210: #{multimodal_autoencoder_forward.1} parent=1 // pred_check
      _
    $region211: #{multimodal_autoencoder_forward.1} parent=1 // pred_check_branch
      %435 = sbr.rel (0) target = $region213
    $region212: #{multimodal_autoencoder_forward.1} parent=1 // pred_region
      %436 = dma.done [#allocation27], 16
    $region213: #{multimodal_autoencoder_forward.1} parent=1 // pred_fallthru
      _
    // Predicated region
    $region214: #{multimodal_autoencoder_forward.1} parent=1 // pred_check
      _
    $region215: #{multimodal_autoencoder_forward.1} parent=1 // pred_check_branch
      %438 = sbr.rel (0) target = $region217
    $region216: #{multimodal_autoencoder_forward.1} parent=1 // pred_region
      %439 = dma.done [#allocation27], 1024
    $region217: #{multimodal_autoencoder_forward.1} parent=1 // pred_fallthru
      _
    // Predicated region
    $region218: #{multimodal_autoencoder_forward.1} parent=1 // pred_check
      _
    $region219: #{multimodal_autoencoder_forward.1} parent=1 // pred_check_branch
      %441 = sbr.rel (0) target = $region221
    $region220: #{multimodal_autoencoder_forward.1} parent=1 // pred_region
      %442 = dma.done [#allocation30], 16
    $region221: #{multimodal_autoencoder_forward.1} parent=1 // pred_fallthru
      _
    // Predicated region
    $region222: #{multimodal_autoencoder_forward.1} parent=1 // pred_check
      _
    $region223: #{multimodal_autoencoder_forward.1} parent=1 // pred_check_branch
      %444 = sbr.rel (0) target = $region225
    $region224: #{multimodal_autoencoder_forward.1} parent=1 // pred_region
      %445 = dma.done [#allocation30], 1024
    $region225: #{multimodal_autoencoder_forward.1} parent=1 // pred_fallthru
      _
    // Predicated region
    $region226: #{multimodal_autoencoder_forward.1} parent=1 // pred_check
      _
    $region227: #{multimodal_autoencoder_forward.1} parent=1 // pred_check_branch
      %447 = sbr.rel (0) target = $region229
    $region228: #{multimodal_autoencoder_forward.1} parent=1 // pred_region
      %448 = dma.done [#allocation33], 16
    $region229: #{multimodal_autoencoder_forward.1} parent=1 // pred_fallthru
      _
    // Predicated region
    $region230: #{multimodal_autoencoder_forward.1} parent=1 // pred_check
      _
    $region231: #{multimodal_autoencoder_forward.1} parent=1 // pred_check_branch
      %450 = sbr.rel (0) target = $region233
    $region232: #{multimodal_autoencoder_forward.1} parent=1 // pred_region
      %451 = dma.done [#allocation33], 1024
    $region233: #{multimodal_autoencoder_forward.1} parent=1 // pred_fallthru
      _
    // Predicated region
    $region234: #{multimodal_autoencoder_forward.1} parent=1 // pred_check
      _
    $region235: #{multimodal_autoencoder_forward.1} parent=1 // pred_check_branch
      %453 = sbr.rel (0) target = $region237
    $region236: #{multimodal_autoencoder_forward.1} parent=1 // pred_region
      %454 = dma.done [#allocation36], 16
    $region237: #{multimodal_autoencoder_forward.1} parent=1 // pred_fallthru
      _
    // Predicated region
    $region238: #{multimodal_autoencoder_forward.1} parent=1 // pred_check
      _
    $region239: #{multimodal_autoencoder_forward.1} parent=1 // pred_check_branch
      %456 = sbr.rel (0) target = $region241
    $region240: #{multimodal_autoencoder_forward.1} parent=1 // pred_region
      %457 = dma.done [#allocation36], 1024
    $region241: #{multimodal_autoencoder_forward.1} parent=1 // pred_fallthru
      _
    // Predicated region
    $region242: #{multimodal_autoencoder_forward.1} parent=1 // pred_check
      _
    $region243: #{multimodal_autoencoder_forward.1} parent=1 // pred_check_branch
      %459 = sbr.rel (0) target = $region245
    $region244: #{multimodal_autoencoder_forward.1} parent=1 // pred_region
      %460 = dma.done [#allocation39], 16
    $region245: #{multimodal_autoencoder_forward.1} parent=1 // pred_fallthru
      _
    %v462 = vld [vmem:[#allocation2] sm:$0xff]
    %v463 = vld [vmem:[#allocation2 + $0x8] sm:$0xff]
    %v464 = vpack.c.bf16 %v462, %v462
    %v465 = vpack.c.bf16 %v463, %v463
    %v466 = vld [vmem:[%s7] sm:$0xf]
    %v467 = vld [vmem:[%s7 + $0x4] sm:$0xf]
    %v468 = vld [vmem:[%s7 + $0x8] sm:$0xf]
    %v469 = vld [vmem:[%s7 + $0xc] sm:$0xf]
    %v470 = vld [vmem:[%s7 + $0x10] sm:$0xf]
    %v471 = vld [vmem:[%s7 + $0x14] sm:$0xf]
    %v472 = vld [vmem:[%s7 + $0x18] sm:$0xf]
    %v473 = vld [vmem:[%s7 + $0x1c] sm:$0xf]
    %v474 = vld [vmem:[%s7 + $0x20] sm:$0xf]
    %v475 = vld [vmem:[%s7 + $0x24] sm:$0xf]
    %v476 = vld [vmem:[%s7 + $0x28] sm:$0xf]
    %v477 = vld [vmem:[%s7 + $0x2c] sm:$0xf]
    %v478 = vld [vmem:[%s7 + $0x30] sm:$0xf]
    %v479 = vld [vmem:[%s7 + $0x34] sm:$0xf]
    %v480 = vld [vmem:[%s7 + $0x38] sm:$0xf]
    %v481 = vld [vmem:[%s7 + $0x3c] sm:$0xf]
    %v482 = vld [vmem:[%s7 + $0x40] sm:$0xf]
    %v483 = vld [vmem:[%s7 + $0x44] sm:$0xf]
    %v484 = vld [vmem:[%s7 + $0x48] sm:$0xf]
    %v485 = vld [vmem:[%s7 + $0x4c] sm:$0xf]
    %v486 = vld [vmem:[%s7 + $0x50] sm:$0xf]
    %v487 = vld [vmem:[%s7 + $0x54] sm:$0xf]
    %v488 = vld [vmem:[%s7 + $0x58] sm:$0xf]
    %v489 = vld [vmem:[%s7 + $0x5c] sm:$0xf]
    %v490 = vld [vmem:[%s7 + $0x60] sm:$0xf]
    %v491 = vld [vmem:[%s7 + $0x64] sm:$0xf]
    %v492 = vld [vmem:[%s7 + $0x68] sm:$0xf]
    %v493 = vld [vmem:[%s7 + $0x6c] sm:$0xf]
    %v494 = vld [vmem:[%s7 + $0x70] sm:$0xf]
    %v495 = vld [vmem:[%s7 + $0x74] sm:$0xf]
    %v496 = vld [vmem:[%s7 + $0x78] sm:$0xf]
    %v497 = vld [vmem:[%s7 + $0x7c] sm:$0xf]
    %v498 = vld [vmem:[#allocation8] sm:$0x1]
    %v500 = vlaneseq
    %v501 = vshrl.u32 %v500, 7
    %v502 = vsub.s32 0, %v501
    %v503 = vrot.slane %v498, %v502
    %v537 = vunpack.c.l.b16 %v466
    %v538 = vunpack.c.l.b16 %v467
    %v539 = vunpack.c.l.b16 %v468
    %v540 = vunpack.c.l.b16 %v469
    %v541 = vunpack.c.l.b16 %v470
    %v542 = vunpack.c.l.b16 %v471
    %v543 = vunpack.c.l.b16 %v472
    %v544 = vunpack.c.l.b16 %v473
    %v545 = vunpack.c.l.b16 %v474
    %v546 = vunpack.c.l.b16 %v475
    %v547 = vunpack.c.l.b16 %v476
    %v548 = vunpack.c.l.b16 %v477
    %v549 = vunpack.c.l.b16 %v478
    %v550 = vunpack.c.l.b16 %v479
    %v551 = vunpack.c.l.b16 %v480
    %v552 = vunpack.c.l.b16 %v481
    %v553 = vunpack.c.l.b16 %v482
    %v554 = vunpack.c.l.b16 %v483
    %v555 = vunpack.c.l.b16 %v484
    %v556 = vunpack.c.l.b16 %v485
    %v557 = vunpack.c.l.b16 %v486
    %v558 = vunpack.c.l.b16 %v487
    %v559 = vunpack.c.l.b16 %v488
    %v560 = vunpack.c.l.b16 %v489
    %v561 = vunpack.c.l.b16 %v490
    %v562 = vunpack.c.l.b16 %v491
    %v563 = vunpack.c.l.b16 %v492
    %v564 = vunpack.c.l.b16 %v493
    %v565 = vunpack.c.l.b16 %v494
    %v566 = vunpack.c.l.b16 %v495
    %v567 = vunpack.c.l.b16 %v496
    %v568 = vunpack.c.l.b16 %v497
    %v569 = vpack.c.b16 %v538, %v537
    %v570 = vpack.c.b16 %v540, %v539
    %v571 = vpack.c.b16 %v542, %v541
    %v572 = vpack.c.b16 %v544, %v543
    %v573 = vpack.c.b16 %v546, %v545
    %v574 = vpack.c.b16 %v548, %v547
    %v575 = vpack.c.b16 %v550, %v549
    %v576 = vpack.c.b16 %v552, %v551
    %v577 = vpack.c.b16 %v554, %v553
    %v578 = vpack.c.b16 %v556, %v555
    %v579 = vpack.c.b16 %v558, %v557
    %v580 = vpack.c.b16 %v560, %v559
    %v581 = vpack.c.b16 %v562, %v561
    %v582 = vpack.c.b16 %v564, %v563
    %v583 = vpack.c.b16 %v566, %v565
    %v584 = vpack.c.b16 %v568, %v567
    %601 = vmatprep.subr.bf16.mxu0 0
    %602 = vmatpush1.bf16.msra.mxu0 %v569
    %603 = vmatprep.subr.bf16.mxu0 0
    %604 = vmatpush1.bf16.msra.mxu0 %v570
    %605 = vmatprep.subr.bf16.mxu0 0
    %606 = vmatpush1.bf16.msra.mxu0 %v571
    %607 = vmatprep.subr.bf16.mxu0 0
    %608 = vmatpush1.bf16.msra.mxu0 %v572
    %609 = vmatprep.subr.bf16.mxu0 0
    %610 = vmatpush1.bf16.msra.mxu0 %v573
    %611 = vmatprep.subr.bf16.mxu0 0
    %612 = vmatpush1.bf16.msra.mxu0 %v574
    %613 = vmatprep.subr.bf16.mxu0 0
    %614 = vmatpush1.bf16.msra.mxu0 %v575
    %615 = vmatprep.subr.bf16.mxu0 0
    %616 = vmatpush1.bf16.msra.mxu0 %v576
    %617 = vmatprep.subr.bf16.mxu0 0
    %618 = vmatpush1.bf16.msra.mxu0 %v577
    %619 = vmatprep.subr.bf16.mxu0 0
    %620 = vmatpush1.bf16.msra.mxu0 %v578
    %621 = vmatprep.subr.bf16.mxu0 0
    %622 = vmatpush1.bf16.msra.mxu0 %v579
    %623 = vmatprep.subr.bf16.mxu0 0
    %624 = vmatpush1.bf16.msra.mxu0 %v580
    %625 = vmatprep.subr.bf16.mxu0 0
    %626 = vmatpush1.bf16.msra.mxu0 %v581
    %627 = vmatprep.subr.bf16.mxu0 0
    %628 = vmatpush1.bf16.msra.mxu0 %v582
    %629 = vmatprep.subr.bf16.mxu0 0
    %630 = vmatpush1.bf16.msra.mxu0 %v583
    %631 = vmatprep.subr.bf16.mxu0 0
    %632 = vmatpush1.bf16.msra.mxu0 %v584
    %633 = vmatprep.mubr.bf16.mxu0 %v465
    %634 = vmatmul.mubr.bf16.gmra.mrb[0].mxu0 %v464
    %v635 = vpop.f32.mrb[0].mxu0
    %v636 = vadd.f32 %v503, %v635
    %v637 = vpop.f32.mrb[0].mxu0
    %v638 = vpop.f32.mrb[0].mxu0
    %v639 = vpop.f32.mrb[0].mxu0
    %640 = vdwg.mxu0
    %v641 = vtanh.pop %v636
    %v642 = vpack.c.bf16 %v641, %v641
    %v643 = vld [vmem:[#allocation10] sm:$0xf]
    %v644 = vld [vmem:[#allocation10 + $0x4] sm:$0xf]
    %v645 = vld [vmem:[#allocation10 + $0x8] sm:$0xf]
    %v646 = vld [vmem:[#allocation10 + $0xc] sm:$0xf]
    %v647 = vld [vmem:[#allocation10 + $0x10] sm:$0xf]
    %v648 = vld [vmem:[#allocation10 + $0x14] sm:$0xf]
    %v649 = vld [vmem:[#allocation10 + $0x18] sm:$0xf]
    %v650 = vld [vmem:[#allocation10 + $0x1c] sm:$0xf]
    %v651 = vld [vmem:[#allocation10 + $0x20] sm:$0xf]
    %v652 = vld [vmem:[#allocation10 + $0x24] sm:$0xf]
    %v653 = vld [vmem:[#allocation10 + $0x28] sm:$0xf]
    %v654 = vld [vmem:[#allocation10 + $0x2c] sm:$0xf]
    %v655 = vld [vmem:[#allocation10 + $0x30] sm:$0xf]
    %v656 = vld [vmem:[#allocation10 + $0x34] sm:$0xf]
    %v657 = vld [vmem:[#allocation10 + $0x38] sm:$0xf]
    %v658 = vld [vmem:[#allocation10 + $0x3c] sm:$0xf]
    %v659 = vld [vmem:[#allocation11] sm:$0x1]
    %v661 = vlaneseq
    %v662 = vshrl.u32 %v661, 7
    %v663 = vsub.s32 0, %v662
    %v664 = vrot.slane %v659, %v663
    %v682 = vunpack.c.l.b16 %v643
    %v683 = vunpack.c.l.b16 %v644
    %v684 = vunpack.c.l.b16 %v645
    %v685 = vunpack.c.l.b16 %v646
    %v686 = vunpack.c.l.b16 %v647
    %v687 = vunpack.c.l.b16 %v648
    %v688 = vunpack.c.l.b16 %v649
    %v689 = vunpack.c.l.b16 %v650
    %v690 = vunpack.c.l.b16 %v651
    %v691 = vunpack.c.l.b16 %v652
    %v692 = vunpack.c.l.b16 %v653
    %v693 = vunpack.c.l.b16 %v654
    %v694 = vunpack.c.l.b16 %v655
    %v695 = vunpack.c.l.b16 %v656
    %v696 = vunpack.c.l.b16 %v657
    %v697 = vunpack.c.l.b16 %v658
    %v698 = vpack.c.b16 %v683, %v682
    %v699 = vpack.c.b16 %v685, %v684
    %v700 = vpack.c.b16 %v687, %v686
    %v701 = vpack.c.b16 %v689, %v688
    %v702 = vpack.c.b16 %v691, %v690
    %v703 = vpack.c.b16 %v693, %v692
    %v704 = vpack.c.b16 %v695, %v694
    %v705 = vpack.c.b16 %v697, %v696
    %714 = vmatprep.subr.bf16.mxu0 0
    %715 = vmatpush1.bf16.msra.mxu0 %v698
    %716 = vmatprep.subr.bf16.mxu0 0
    %717 = vmatpush1.bf16.msra.mxu0 %v699
    %718 = vmatprep.subr.bf16.mxu0 0
    %719 = vmatpush1.bf16.msra.mxu0 %v700
    %720 = vmatprep.subr.bf16.mxu0 0
    %721 = vmatpush1.bf16.msra.mxu0 %v701
    %722 = vmatprep.subr.bf16.mxu0 0
    %723 = vmatpush1.bf16.msra.mxu0 %v702
    %724 = vmatprep.subr.bf16.mxu0 0
    %725 = vmatpush1.bf16.msra.mxu0 %v703
    %726 = vmatprep.subr.bf16.mxu0 0
    %727 = vmatpush1.bf16.msra.mxu0 %v704
    %728 = vmatprep.subr.bf16.mxu0 0
    %729 = vmatpush1.bf16.msra.mxu0 %v705
    %730 = vmatprep.subr.bf16.mxu0 0
    %731 = vmatpush1.bf16.msra.mxu0 0
    %732 = vmatprep.subr.bf16.mxu0 0
    %733 = vmatpush1.bf16.msra.mxu0 0
    %734 = vmatprep.subr.bf16.mxu0 0
    %735 = vmatpush1.bf16.msra.mxu0 0
    %736 = vmatprep.subr.bf16.mxu0 0
    %737 = vmatpush1.bf16.msra.mxu0 0
    %738 = vmatprep.subr.bf16.mxu0 0
    %739 = vmatpush1.bf16.msra.mxu0 0
    %740 = vmatprep.subr.bf16.mxu0 0
    %741 = vmatpush1.bf16.msra.mxu0 0
    %742 = vmatprep.subr.bf16.mxu0 0
    %743 = vmatpush1.bf16.msra.mxu0 0
    %744 = vmatprep.subr.bf16.mxu0 0
    %745 = vmatpush1.bf16.msra.mxu0 0
    %746 = vmatprep.mubr.bf16.mxu0 0
    %747 = vmatmul.mubr.bf16.gmra.mrb[0].mxu0 %v642
    %v748 = vpop.f32.mrb[0].mxu0
    %v749 = vadd.f32 %v664, %v748
    %v750 = vpop.f32.mrb[0].mxu0
    %v751 = vpop.f32.mrb[0].mxu0
    %v752 = vpop.f32.mrb[0].mxu0
    %753 = vdwg.mxu0
    %v754 = vtanh.pop %v749
    %v755 = vld [vmem:[#allocation5] sm:$0xff]
    %v756 = vld [vmem:[#allocation5 + $0x8] sm:$0xff]
    %v757 = vpack.c.bf16 %v755, %v755
    %v758 = vpack.c.bf16 %v756, %v756
    %v759 = vld [vmem:[%s15] sm:$0xf]
    %v760 = vld [vmem:[%s15 + $0x4] sm:$0xf]
    %v761 = vld [vmem:[%s15 + $0x8] sm:$0xf]
    %v762 = vld [vmem:[%s15 + $0xc] sm:$0xf]
    %v763 = vld [vmem:[%s15 + $0x10] sm:$0xf]
    %v764 = vld [vmem:[%s15 + $0x14] sm:$0xf]
    %v765 = vld [vmem:[%s15 + $0x18] sm:$0xf]
    %v766 = vld [vmem:[%s15 + $0x1c] sm:$0xf]
    %v767 = vld [vmem:[%s15 + $0x20] sm:$0xf]
    %v768 = vld [vmem:[%s15 + $0x24] sm:$0xf]
    %v769 = vld [vmem:[%s15 + $0x28] sm:$0xf]
    %v770 = vld [vmem:[%s15 + $0x2c] sm:$0xf]
    %v771 = vld [vmem:[%s15 + $0x30] sm:$0xf]
    %v772 = vld [vmem:[%s15 + $0x34] sm:$0xf]
    %v773 = vld [vmem:[%s15 + $0x38] sm:$0xf]
    %v774 = vld [vmem:[%s15 + $0x3c] sm:$0xf]
    %v775 = vld [vmem:[%s15 + $0x40] sm:$0xf]
    %v776 = vld [vmem:[%s15 + $0x44] sm:$0xf]
    %v777 = vld [vmem:[%s15 + $0x48] sm:$0xf]
    %v778 = vld [vmem:[%s15 + $0x4c] sm:$0xf]
    %v779 = vld [vmem:[%s15 + $0x50] sm:$0xf]
    %v780 = vld [vmem:[%s15 + $0x54] sm:$0xf]
    %v781 = vld [vmem:[%s15 + $0x58] sm:$0xf]
    %v782 = vld [vmem:[%s15 + $0x5c] sm:$0xf]
    %v783 = vld [vmem:[%s15 + $0x60] sm:$0xf]
    %v784 = vld [vmem:[%s15 + $0x64] sm:$0xf]
    %v785 = vld [vmem:[%s15 + $0x68] sm:$0xf]
    %v786 = vld [vmem:[%s15 + $0x6c] sm:$0xf]
    %v787 = vld [vmem:[%s15 + $0x70] sm:$0xf]
    %v788 = vld [vmem:[%s15 + $0x74] sm:$0xf]
    %v789 = vld [vmem:[%s15 + $0x78] sm:$0xf]
    %v790 = vld [vmem:[%s15 + $0x7c] sm:$0xf]
    %v791 = vld [vmem:[#allocation13] sm:$0x1]
    %v793 = vlaneseq
    %v794 = vshrl.u32 %v793, 7
    %v795 = vsub.s32 0, %v794
    %v796 = vrot.slane %v791, %v795
    %v830 = vunpack.c.l.b16 %v759
    %v831 = vunpack.c.l.b16 %v760
    %v832 = vunpack.c.l.b16 %v761
    %v833 = vunpack.c.l.b16 %v762
    %v834 = vunpack.c.l.b16 %v763
    %v835 = vunpack.c.l.b16 %v764
    %v836 = vunpack.c.l.b16 %v765
    %v837 = vunpack.c.l.b16 %v766
    %v838 = vunpack.c.l.b16 %v767
    %v839 = vunpack.c.l.b16 %v768
    %v840 = vunpack.c.l.b16 %v769
    %v841 = vunpack.c.l.b16 %v770
    %v842 = vunpack.c.l.b16 %v771
    %v843 = vunpack.c.l.b16 %v772
    %v844 = vunpack.c.l.b16 %v773
    %v845 = vunpack.c.l.b16 %v774
    %v846 = vunpack.c.l.b16 %v775
    %v847 = vunpack.c.l.b16 %v776
    %v848 = vunpack.c.l.b16 %v777
    %v849 = vunpack.c.l.b16 %v778
    %v850 = vunpack.c.l.b16 %v779
    %v851 = vunpack.c.l.b16 %v780
    %v852 = vunpack.c.l.b16 %v781
    %v853 = vunpack.c.l.b16 %v782
    %v854 = vunpack.c.l.b16 %v783
    %v855 = vunpack.c.l.b16 %v784
    %v856 = vunpack.c.l.b16 %v785
    %v857 = vunpack.c.l.b16 %v786
    %v858 = vunpack.c.l.b16 %v787
    %v859 = vunpack.c.l.b16 %v788
    %v860 = vunpack.c.l.b16 %v789
    %v861 = vunpack.c.l.b16 %v790
    %v862 = vpack.c.b16 %v831, %v830
    %v863 = vpack.c.b16 %v833, %v832
    %v864 = vpack.c.b16 %v835, %v834
    %v865 = vpack.c.b16 %v837, %v836
    %v866 = vpack.c.b16 %v839, %v838
    %v867 = vpack.c.b16 %v841, %v840
    %v868 = vpack.c.b16 %v843, %v842
    %v869 = vpack.c.b16 %v845, %v844
    %v870 = vpack.c.b16 %v847, %v846
    %v871 = vpack.c.b16 %v849, %v848
    %v872 = vpack.c.b16 %v851, %v850
    %v873 = vpack.c.b16 %v853, %v852
    %v874 = vpack.c.b16 %v855, %v854
    %v875 = vpack.c.b16 %v857, %v856
    %v876 = vpack.c.b16 %v859, %v858
    %v877 = vpack.c.b16 %v861, %v860
    %894 = vmatprep.subr.bf16.mxu0 0
    %895 = vmatpush1.bf16.msra.mxu0 %v862
    %896 = vmatprep.subr.bf16.mxu0 0
    %897 = vmatpush1.bf16.msra.mxu0 %v863
    %898 = vmatprep.subr.bf16.mxu0 0
    %899 = vmatpush1.bf16.msra.mxu0 %v864
    %900 = vmatprep.subr.bf16.mxu0 0
    %901 = vmatpush1.bf16.msra.mxu0 %v865
    %902 = vmatprep.subr.bf16.mxu0 0
    %903 = vmatpush1.bf16.msra.mxu0 %v866
    %904 = vmatprep.subr.bf16.mxu0 0
    %905 = vmatpush1.bf16.msra.mxu0 %v867
    %906 = vmatprep.subr.bf16.mxu0 0
    %907 = vmatpush1.bf16.msra.mxu0 %v868
    %908 = vmatprep.subr.bf16.mxu0 0
    %909 = vmatpush1.bf16.msra.mxu0 %v869
    %910 = vmatprep.subr.bf16.mxu0 0
    %911 = vmatpush1.bf16.msra.mxu0 %v870
    %912 = vmatprep.subr.bf16.mxu0 0
    %913 = vmatpush1.bf16.msra.mxu0 %v871
    %914 = vmatprep.subr.bf16.mxu0 0
    %915 = vmatpush1.bf16.msra.mxu0 %v872
    %916 = vmatprep.subr.bf16.mxu0 0
    %917 = vmatpush1.bf16.msra.mxu0 %v873
    %918 = vmatprep.subr.bf16.mxu0 0
    %919 = vmatpush1.bf16.msra.mxu0 %v874
    %920 = vmatprep.subr.bf16.mxu0 0
    %921 = vmatpush1.bf16.msra.mxu0 %v875
    %922 = vmatprep.subr.bf16.mxu0 0
    %923 = vmatpush1.bf16.msra.mxu0 %v876
    %924 = vmatprep.subr.bf16.mxu0 0
    %925 = vmatpush1.bf16.msra.mxu0 %v877
    %926 = vmatprep.mubr.bf16.mxu0 %v758
    %927 = vmatmul.mubr.bf16.gmra.mrb[0].mxu0 %v757
    %v928 = vpop.f32.mrb[0].mxu0
    %v929 = vadd.f32 %v796, %v928
    %v930 = vpop.f32.mrb[0].mxu0
    %v931 = vpop.f32.mrb[0].mxu0
    %v932 = vpop.f32.mrb[0].mxu0
    %933 = vdwg.mxu0
    %v934 = vtanh.pop %v929
    %v935 = vpack.c.bf16 %v934, %v934
    %v936 = vld [vmem:[#allocation14] sm:$0xf]
    %v937 = vld [vmem:[#allocation14 + $0x4] sm:$0xf]
    %v938 = vld [vmem:[#allocation14 + $0x8] sm:$0xf]
    %v939 = vld [vmem:[#allocation14 + $0xc] sm:$0xf]
    %v940 = vld [vmem:[#allocation14 + $0x10] sm:$0xf]
    %v941 = vld [vmem:[#allocation14 + $0x14] sm:$0xf]
    %v942 = vld [vmem:[#allocation14 + $0x18] sm:$0xf]
    %v943 = vld [vmem:[#allocation14 + $0x1c] sm:$0xf]
    %v944 = vld [vmem:[#allocation14 + $0x20] sm:$0xf]
    %v945 = vld [vmem:[#allocation14 + $0x24] sm:$0xf]
    %v946 = vld [vmem:[#allocation14 + $0x28] sm:$0xf]
    %v947 = vld [vmem:[#allocation14 + $0x2c] sm:$0xf]
    %v948 = vld [vmem:[#allocation14 + $0x30] sm:$0xf]
    %v949 = vld [vmem:[#allocation14 + $0x34] sm:$0xf]
    %v950 = vld [vmem:[#allocation14 + $0x38] sm:$0xf]
    %v951 = vld [vmem:[#allocation14 + $0x3c] sm:$0xf]
    %v952 = vld [vmem:[#allocation16] sm:$0x1]
    %v954 = vlaneseq
    %v955 = vshrl.u32 %v954, 7
    %v956 = vsub.s32 0, %v955
    %v957 = vrot.slane %v952, %v956
    %v975 = vunpack.c.l.b16 %v936
    %v976 = vunpack.c.l.b16 %v937
    %v977 = vunpack.c.l.b16 %v938
    %v978 = vunpack.c.l.b16 %v939
    %v979 = vunpack.c.l.b16 %v940
    %v980 = vunpack.c.l.b16 %v941
    %v981 = vunpack.c.l.b16 %v942
    %v982 = vunpack.c.l.b16 %v943
    %v983 = vunpack.c.l.b16 %v944
    %v984 = vunpack.c.l.b16 %v945
    %v985 = vunpack.c.l.b16 %v946
    %v986 = vunpack.c.l.b16 %v947
    %v987 = vunpack.c.l.b16 %v948
    %v988 = vunpack.c.l.b16 %v949
    %v989 = vunpack.c.l.b16 %v950
    %v990 = vunpack.c.l.b16 %v951
    %v991 = vpack.c.b16 %v976, %v975
    %v992 = vpack.c.b16 %v978, %v977
    %v993 = vpack.c.b16 %v980, %v979
    %v994 = vpack.c.b16 %v982, %v981
    %v995 = vpack.c.b16 %v984, %v983
    %v996 = vpack.c.b16 %v986, %v985
    %v997 = vpack.c.b16 %v988, %v987
    %v998 = vpack.c.b16 %v990, %v989
    %1007 = vmatprep.subr.bf16.mxu0 0
    %1008 = vmatpush1.bf16.msra.mxu0 %v991
    %1009 = vmatprep.subr.bf16.mxu0 0
    %1010 = vmatpush1.bf16.msra.mxu0 %v992
    %1011 = vmatprep.subr.bf16.mxu0 0
    %1012 = vmatpush1.bf16.msra.mxu0 %v993
    %1013 = vmatprep.subr.bf16.mxu0 0
    %1014 = vmatpush1.bf16.msra.mxu0 %v994
    %1015 = vmatprep.subr.bf16.mxu0 0
    %1016 = vmatpush1.bf16.msra.mxu0 %v995
    %1017 = vmatprep.subr.bf16.mxu0 0
    %1018 = vmatpush1.bf16.msra.mxu0 %v996
    %1019 = vmatprep.subr.bf16.mxu0 0
    %1020 = vmatpush1.bf16.msra.mxu0 %v997
    %1021 = vmatprep.subr.bf16.mxu0 0
    %1022 = vmatpush1.bf16.msra.mxu0 %v998
    %1023 = vmatprep.subr.bf16.mxu0 0
    %1024 = vmatpush1.bf16.msra.mxu0 0
    %1025 = vmatprep.subr.bf16.mxu0 0
    %1026 = vmatpush1.bf16.msra.mxu0 0
    %1027 = vmatprep.subr.bf16.mxu0 0
    %1028 = vmatpush1.bf16.msra.mxu0 0
    %1029 = vmatprep.subr.bf16.mxu0 0
    %1030 = vmatpush1.bf16.msra.mxu0 0
    %1031 = vmatprep.subr.bf16.mxu0 0
    %1032 = vmatpush1.bf16.msra.mxu0 0
    %1033 = vmatprep.subr.bf16.mxu0 0
    %1034 = vmatpush1.bf16.msra.mxu0 0
    %1035 = vmatprep.subr.bf16.mxu0 0
    %1036 = vmatpush1.bf16.msra.mxu0 0
    %1037 = vmatprep.subr.bf16.mxu0 0
    %1038 = vmatpush1.bf16.msra.mxu0 0
    %1039 = vmatprep.mubr.bf16.mxu0 0
    %1040 = vmatmul.mubr.bf16.gmra.mrb[0].mxu0 %v935
    %v1041 = vpop.f32.mrb[0].mxu0
    %v1042 = vadd.f32 %v957, %v1041
    %v1043 = vpop.f32.mrb[0].mxu0
    %v1044 = vpop.f32.mrb[0].mxu0
    %v1045 = vpop.f32.mrb[0].mxu0
    %1046 = vdwg.mxu0
    %v1047 = vtanh.pop %v1042
    %v1048 = vld [vmem:[#allocation7] sm:$0xff]
    %v1049 = vld [vmem:[#allocation7 + $0x8] sm:$0xff]
    %v1050 = vpack.c.bf16 %v1048, %v1048
    %v1051 = vpack.c.bf16 %v1049, %v1049
    %v1052 = vld [vmem:[%s23] sm:$0xf]
    %v1053 = vld [vmem:[%s23 + $0x4] sm:$0xf]
    %v1054 = vld [vmem:[%s23 + $0x8] sm:$0xf]
    %v1055 = vld [vmem:[%s23 + $0xc] sm:$0xf]
    %v1056 = vld [vmem:[%s23 + $0x10] sm:$0xf]
    %v1057 = vld [vmem:[%s23 + $0x14] sm:$0xf]
    %v1058 = vld [vmem:[%s23 + $0x18] sm:$0xf]
    %v1059 = vld [vmem:[%s23 + $0x1c] sm:$0xf]
    %v1060 = vld [vmem:[%s23 + $0x20] sm:$0xf]
    %v1061 = vld [vmem:[%s23 + $0x24] sm:$0xf]
    %v1062 = vld [vmem:[%s23 + $0x28] sm:$0xf]
    %v1063 = vld [vmem:[%s23 + $0x2c] sm:$0xf]
    %v1064 = vld [vmem:[%s23 + $0x30] sm:$0xf]
    %v1065 = vld [vmem:[%s23 + $0x34] sm:$0xf]
    %v1066 = vld [vmem:[%s23 + $0x38] sm:$0xf]
    %v1067 = vld [vmem:[%s23 + $0x3c] sm:$0xf]
    %v1068 = vld [vmem:[%s23 + $0x40] sm:$0xf]
    %v1069 = vld [vmem:[%s23 + $0x44] sm:$0xf]
    %v1070 = vld [vmem:[%s23 + $0x48] sm:$0xf]
    %v1071 = vld [vmem:[%s23 + $0x4c] sm:$0xf]
    %v1072 = vld [vmem:[%s23 + $0x50] sm:$0xf]
    %v1073 = vld [vmem:[%s23 + $0x54] sm:$0xf]
    %v1074 = vld [vmem:[%s23 + $0x58] sm:$0xf]
    %v1075 = vld [vmem:[%s23 + $0x5c] sm:$0xf]
    %v1076 = vld [vmem:[%s23 + $0x60] sm:$0xf]
    %v1077 = vld [vmem:[%s23 + $0x64] sm:$0xf]
    %v1078 = vld [vmem:[%s23 + $0x68] sm:$0xf]
    %v1079 = vld [vmem:[%s23 + $0x6c] sm:$0xf]
    %v1080 = vld [vmem:[%s23 + $0x70] sm:$0xf]
    %v1081 = vld [vmem:[%s23 + $0x74] sm:$0xf]
    %v1082 = vld [vmem:[%s23 + $0x78] sm:$0xf]
    %v1083 = vld [vmem:[%s23 + $0x7c] sm:$0xf]
    %v1084 = vld [vmem:[#allocation17] sm:$0x1]
    %v1086 = vlaneseq
    %v1087 = vshrl.u32 %v1086, 7
    %v1088 = vsub.s32 0, %v1087
    %v1089 = vrot.slane %v1084, %v1088
    %v1123 = vunpack.c.l.b16 %v1052
    %v1124 = vunpack.c.l.b16 %v1053
    %v1125 = vunpack.c.l.b16 %v1054
    %v1126 = vunpack.c.l.b16 %v1055
    %v1127 = vunpack.c.l.b16 %v1056
    %v1128 = vunpack.c.l.b16 %v1057
    %v1129 = vunpack.c.l.b16 %v1058
    %v1130 = vunpack.c.l.b16 %v1059
    %v1131 = vunpack.c.l.b16 %v1060
    %v1132 = vunpack.c.l.b16 %v1061
    %v1133 = vunpack.c.l.b16 %v1062
    %v1134 = vunpack.c.l.b16 %v1063
    %v1135 = vunpack.c.l.b16 %v1064
    %v1136 = vunpack.c.l.b16 %v1065
    %v1137 = vunpack.c.l.b16 %v1066
    %v1138 = vunpack.c.l.b16 %v1067
    %v1139 = vunpack.c.l.b16 %v1068
    %v1140 = vunpack.c.l.b16 %v1069
    %v1141 = vunpack.c.l.b16 %v1070
    %v1142 = vunpack.c.l.b16 %v1071
    %v1143 = vunpack.c.l.b16 %v1072
    %v1144 = vunpack.c.l.b16 %v1073
    %v1145 = vunpack.c.l.b16 %v1074
    %v1146 = vunpack.c.l.b16 %v1075
    %v1147 = vunpack.c.l.b16 %v1076
    %v1148 = vunpack.c.l.b16 %v1077
    %v1149 = vunpack.c.l.b16 %v1078
    %v1150 = vunpack.c.l.b16 %v1079
    %v1151 = vunpack.c.l.b16 %v1080
    %v1152 = vunpack.c.l.b16 %v1081
    %v1153 = vunpack.c.l.b16 %v1082
    %v1154 = vunpack.c.l.b16 %v1083
    %v1155 = vpack.c.b16 %v1124, %v1123
    %v1156 = vpack.c.b16 %v1126, %v1125
    %v1157 = vpack.c.b16 %v1128, %v1127
    %v1158 = vpack.c.b16 %v1130, %v1129
    %v1159 = vpack.c.b16 %v1132, %v1131
    %v1160 = vpack.c.b16 %v1134, %v1133
    %v1161 = vpack.c.b16 %v1136, %v1135
    %v1162 = vpack.c.b16 %v1138, %v1137
    %v1163 = vpack.c.b16 %v1140, %v1139
    %v1164 = vpack.c.b16 %v1142, %v1141
    %v1165 = vpack.c.b16 %v1144, %v1143
    %v1166 = vpack.c.b16 %v1146, %v1145
    %v1167 = vpack.c.b16 %v1148, %v1147
    %v1168 = vpack.c.b16 %v1150, %v1149
    %v1169 = vpack.c.b16 %v1152, %v1151
    %v1170 = vpack.c.b16 %v1154, %v1153
    %1187 = vmatprep.subr.bf16.mxu0 0
    %1188 = vmatpush1.bf16.msra.mxu0 %v1155
    %1189 = vmatprep.subr.bf16.mxu0 0
    %1190 = vmatpush1.bf16.msra.mxu0 %v1156
    %1191 = vmatprep.subr.bf16.mxu0 0
    %1192 = vmatpush1.bf16.msra.mxu0 %v1157
    %1193 = vmatprep.subr.bf16.mxu0 0
    %1194 = vmatpush1.bf16.msra.mxu0 %v1158
    %1195 = vmatprep.subr.bf16.mxu0 0
    %1196 = vmatpush1.bf16.msra.mxu0 %v1159
    %1197 = vmatprep.subr.bf16.mxu0 0
    %1198 = vmatpush1.bf16.msra.mxu0 %v1160
    %1199 = vmatprep.subr.bf16.mxu0 0
    %1200 = vmatpush1.bf16.msra.mxu0 %v1161
    %1201 = vmatprep.subr.bf16.mxu0 0
    %1202 = vmatpush1.bf16.msra.mxu0 %v1162
    %1203 = vmatprep.subr.bf16.mxu0 0
    %1204 = vmatpush1.bf16.msra.mxu0 %v1163
    %1205 = vmatprep.subr.bf16.mxu0 0
    %1206 = vmatpush1.bf16.msra.mxu0 %v1164
    %1207 = vmatprep.subr.bf16.mxu0 0
    %1208 = vmatpush1.bf16.msra.mxu0 %v1165
    %1209 = vmatprep.subr.bf16.mxu0 0
    %1210 = vmatpush1.bf16.msra.mxu0 %v1166
    %1211 = vmatprep.subr.bf16.mxu0 0
    %1212 = vmatpush1.bf16.msra.mxu0 %v1167
    %1213 = vmatprep.subr.bf16.mxu0 0
    %1214 = vmatpush1.bf16.msra.mxu0 %v1168
    %1215 = vmatprep.subr.bf16.mxu0 0
    %1216 = vmatpush1.bf16.msra.mxu0 %v1169
    %1217 = vmatprep.subr.bf16.mxu0 0
    %1218 = vmatpush1.bf16.msra.mxu0 %v1170
    %1219 = vmatprep.mubr.bf16.mxu0 %v1051
    %1220 = vmatmul.mubr.bf16.gmra.mrb[0].mxu0 %v1050
    %v1221 = vpop.f32.mrb[0].mxu0
    %v1222 = vadd.f32 %v1089, %v1221
    %v1223 = vpop.f32.mrb[0].mxu0
    %v1224 = vpop.f32.mrb[0].mxu0
    %v1225 = vpop.f32.mrb[0].mxu0
    %1226 = vdwg.mxu0
    %v1227 = vtanh.pop %v1222
    %v1228 = vpack.c.bf16 %v1227, %v1227
    %v1229 = vld [vmem:[#allocation19] sm:$0xf]
    %v1230 = vld [vmem:[#allocation19 + $0x4] sm:$0xf]
    %v1231 = vld [vmem:[#allocation19 + $0x8] sm:$0xf]
    %v1232 = vld [vmem:[#allocation19 + $0xc] sm:$0xf]
    %v1233 = vld [vmem:[#allocation19 + $0x10] sm:$0xf]
    %v1234 = vld [vmem:[#allocation19 + $0x14] sm:$0xf]
    %v1235 = vld [vmem:[#allocation19 + $0x18] sm:$0xf]
    %v1236 = vld [vmem:[#allocation19 + $0x1c] sm:$0xf]
    %v1237 = vld [vmem:[#allocation19 + $0x20] sm:$0xf]
    %v1238 = vld [vmem:[#allocation19 + $0x24] sm:$0xf]
    %v1239 = vld [vmem:[#allocation19 + $0x28] sm:$0xf]
    %v1240 = vld [vmem:[#allocation19 + $0x2c] sm:$0xf]
    %v1241 = vld [vmem:[#allocation19 + $0x30] sm:$0xf]
    %v1242 = vld [vmem:[#allocation19 + $0x34] sm:$0xf]
    %v1243 = vld [vmem:[#allocation19 + $0x38] sm:$0xf]
    %v1244 = vld [vmem:[#allocation19 + $0x3c] sm:$0xf]
    %v1245 = vld [vmem:[#allocation20] sm:$0x1]
    %v1247 = vlaneseq
    %v1248 = vshrl.u32 %v1247, 7
    %v1249 = vsub.s32 0, %v1248
    %v1250 = vrot.slane %v1245, %v1249
    %v1268 = vunpack.c.l.b16 %v1229
    %v1269 = vunpack.c.l.b16 %v1230
    %v1270 = vunpack.c.l.b16 %v1231
    %v1271 = vunpack.c.l.b16 %v1232
    %v1272 = vunpack.c.l.b16 %v1233
    %v1273 = vunpack.c.l.b16 %v1234
    %v1274 = vunpack.c.l.b16 %v1235
    %v1275 = vunpack.c.l.b16 %v1236
    %v1276 = vunpack.c.l.b16 %v1237
    %v1277 = vunpack.c.l.b16 %v1238
    %v1278 = vunpack.c.l.b16 %v1239
    %v1279 = vunpack.c.l.b16 %v1240
    %v1280 = vunpack.c.l.b16 %v1241
    %v1281 = vunpack.c.l.b16 %v1242
    %v1282 = vunpack.c.l.b16 %v1243
    %v1283 = vunpack.c.l.b16 %v1244
    %v1284 = vpack.c.b16 %v1269, %v1268
    %v1285 = vpack.c.b16 %v1271, %v1270
    %v1286 = vpack.c.b16 %v1273, %v1272
    %v1287 = vpack.c.b16 %v1275, %v1274
    %v1288 = vpack.c.b16 %v1277, %v1276
    %v1289 = vpack.c.b16 %v1279, %v1278
    %v1290 = vpack.c.b16 %v1281, %v1280
    %v1291 = vpack.c.b16 %v1283, %v1282
    %1300 = vmatprep.subr.bf16.mxu0 0
    %1301 = vmatpush1.bf16.msra.mxu0 %v1284
    %1302 = vmatprep.subr.bf16.mxu0 0
    %1303 = vmatpush1.bf16.msra.mxu0 %v1285
    %1304 = vmatprep.subr.bf16.mxu0 0
    %1305 = vmatpush1.bf16.msra.mxu0 %v1286
    %1306 = vmatprep.subr.bf16.mxu0 0
    %1307 = vmatpush1.bf16.msra.mxu0 %v1287
    %1308 = vmatprep.subr.bf16.mxu0 0
    %1309 = vmatpush1.bf16.msra.mxu0 %v1288
    %1310 = vmatprep.subr.bf16.mxu0 0
    %1311 = vmatpush1.bf16.msra.mxu0 %v1289
    %1312 = vmatprep.subr.bf16.mxu0 0
    %1313 = vmatpush1.bf16.msra.mxu0 %v1290
    %1314 = vmatprep.subr.bf16.mxu0 0
    %1315 = vmatpush1.bf16.msra.mxu0 %v1291
    %1316 = vmatprep.subr.bf16.mxu0 0
    %1317 = vmatpush1.bf16.msra.mxu0 0
    %1318 = vmatprep.subr.bf16.mxu0 0
    %1319 = vmatpush1.bf16.msra.mxu0 0
    %1320 = vmatprep.subr.bf16.mxu0 0
    %1321 = vmatpush1.bf16.msra.mxu0 0
    %1322 = vmatprep.subr.bf16.mxu0 0
    %1323 = vmatpush1.bf16.msra.mxu0 0
    %1324 = vmatprep.subr.bf16.mxu0 0
    %1325 = vmatpush1.bf16.msra.mxu0 0
    %1326 = vmatprep.subr.bf16.mxu0 0
    %1327 = vmatpush1.bf16.msra.mxu0 0
    %1328 = vmatprep.subr.bf16.mxu0 0
    %1329 = vmatpush1.bf16.msra.mxu0 0
    %1330 = vmatprep.subr.bf16.mxu0 0
    %1331 = vmatpush1.bf16.msra.mxu0 0
    %1332 = vmatprep.mubr.bf16.mxu0 0
    %1333 = vmatmul.mubr.bf16.gmra.mrb[0].mxu0 %v1228
    %v1334 = vpop.f32.mrb[0].mxu0
    %v1335 = vadd.f32 %v1250, %v1334
    %v1336 = vpop.f32.mrb[0].mxu0
    %v1337 = vpop.f32.mrb[0].mxu0
    %v1338 = vpop.f32.mrb[0].mxu0
    %1339 = vdwg.mxu0
    %v1340 = vtanh.pop %v1335
    %v1341 = vpack.c.bf16 %v754, %v754
    %v1342 = vld [vmem:[#allocation22] sm:$0xf]
    %v1343 = vld [vmem:[#allocation22 + $0x4] sm:$0xf]
    %v1344 = vld [vmem:[#allocation22 + $0x8] sm:$0xf]
    %v1345 = vld [vmem:[#allocation22 + $0xc] sm:$0xf]
    %v1346 = vld [vmem:[#allocation22 + $0x10] sm:$0xf]
    %v1347 = vld [vmem:[#allocation22 + $0x14] sm:$0xf]
    %v1348 = vld [vmem:[#allocation22 + $0x18] sm:$0xf]
    %v1349 = vld [vmem:[#allocation22 + $0x1c] sm:$0xf]
    %v1350 = vld [vmem:[#allocation22 + $0x20] sm:$0xf]
    %v1351 = vld [vmem:[#allocation22 + $0x24] sm:$0xf]
    %v1352 = vld [vmem:[#allocation22 + $0x28] sm:$0xf]
    %v1353 = vld [vmem:[#allocation22 + $0x2c] sm:$0xf]
    %v1354 = vld [vmem:[#allocation22 + $0x30] sm:$0xf]
    %v1355 = vld [vmem:[#allocation22 + $0x34] sm:$0xf]
    %v1356 = vld [vmem:[#allocation22 + $0x38] sm:$0xf]
    %v1357 = vld [vmem:[#allocation22 + $0x3c] sm:$0xf]
    %v1358 = vpack.c.bf16 %v1047, %v1047
    %v1359 = vld [vmem:[#allocation23] sm:$0xf]
    %v1360 = vld [vmem:[#allocation23 + $0x4] sm:$0xf]
    %v1361 = vld [vmem:[#allocation23 + $0x8] sm:$0xf]
    %v1362 = vld [vmem:[#allocation23 + $0xc] sm:$0xf]
    %v1363 = vld [vmem:[#allocation23 + $0x10] sm:$0xf]
    %v1364 = vld [vmem:[#allocation23 + $0x14] sm:$0xf]
    %v1365 = vld [vmem:[#allocation23 + $0x18] sm:$0xf]
    %v1366 = vld [vmem:[#allocation23 + $0x1c] sm:$0xf]
    %v1367 = vld [vmem:[#allocation23 + $0x20] sm:$0xf]
    %v1368 = vld [vmem:[#allocation23 + $0x24] sm:$0xf]
    %v1369 = vld [vmem:[#allocation23 + $0x28] sm:$0xf]
    %v1370 = vld [vmem:[#allocation23 + $0x2c] sm:$0xf]
    %v1371 = vld [vmem:[#allocation23 + $0x30] sm:$0xf]
    %v1372 = vld [vmem:[#allocation23 + $0x34] sm:$0xf]
    %v1373 = vld [vmem:[#allocation23 + $0x38] sm:$0xf]
    %v1374 = vld [vmem:[#allocation23 + $0x3c] sm:$0xf]
    %v1391 = vunpack.c.l.b16 %v1359
    %v1392 = vunpack.c.l.b16 %v1360
    %v1393 = vunpack.c.l.b16 %v1361
    %v1394 = vunpack.c.l.b16 %v1362
    %v1395 = vunpack.c.l.b16 %v1363
    %v1396 = vunpack.c.l.b16 %v1364
    %v1397 = vunpack.c.l.b16 %v1365
    %v1398 = vunpack.c.l.b16 %v1366
    %v1399 = vunpack.c.l.b16 %v1367
    %v1400 = vunpack.c.l.b16 %v1368
    %v1401 = vunpack.c.l.b16 %v1369
    %v1402 = vunpack.c.l.b16 %v1370
    %v1403 = vunpack.c.l.b16 %v1371
    %v1404 = vunpack.c.l.b16 %v1372
    %v1405 = vunpack.c.l.b16 %v1373
    %v1406 = vunpack.c.l.b16 %v1374
    %v1407 = vpack.c.b16 %v1392, %v1391
    %v1408 = vpack.c.b16 %v1394, %v1393
    %v1409 = vpack.c.b16 %v1396, %v1395
    %v1410 = vpack.c.b16 %v1398, %v1397
    %v1411 = vpack.c.b16 %v1400, %v1399
    %v1412 = vpack.c.b16 %v1402, %v1401
    %v1413 = vpack.c.b16 %v1404, %v1403
    %v1414 = vpack.c.b16 %v1406, %v1405
    %1423 = vmatprep.subr.bf16.mxu0 0
    %1424 = vmatpush1.bf16.msra.mxu0 %v1407
    %1425 = vmatprep.subr.bf16.mxu0 0
    %1426 = vmatpush1.bf16.msra.mxu0 %v1408
    %1427 = vmatprep.subr.bf16.mxu0 0
    %1428 = vmatpush1.bf16.msra.mxu0 %v1409
    %1429 = vmatprep.subr.bf16.mxu0 0
    %1430 = vmatpush1.bf16.msra.mxu0 %v1410
    %1431 = vmatprep.subr.bf16.mxu0 0
    %1432 = vmatpush1.bf16.msra.mxu0 %v1411
    %1433 = vmatprep.subr.bf16.mxu0 0
    %1434 = vmatpush1.bf16.msra.mxu0 %v1412
    %1435 = vmatprep.subr.bf16.mxu0 0
    %1436 = vmatpush1.bf16.msra.mxu0 %v1413
    %1437 = vmatprep.subr.bf16.mxu0 0
    %1438 = vmatpush1.bf16.msra.mxu0 %v1414
    %1439 = vmatprep.subr.bf16.mxu0 0
    %1440 = vmatpush1.bf16.msra.mxu0 0
    %1441 = vmatprep.subr.bf16.mxu0 0
    %1442 = vmatpush1.bf16.msra.mxu0 0
    %1443 = vmatprep.subr.bf16.mxu0 0
    %1444 = vmatpush1.bf16.msra.mxu0 0
    %1445 = vmatprep.subr.bf16.mxu0 0
    %1446 = vmatpush1.bf16.msra.mxu0 0
    %1447 = vmatprep.subr.bf16.mxu0 0
    %1448 = vmatpush1.bf16.msra.mxu0 0
    %1449 = vmatprep.subr.bf16.mxu0 0
    %1450 = vmatpush1.bf16.msra.mxu0 0
    %1451 = vmatprep.subr.bf16.mxu0 0
    %1452 = vmatpush1.bf16.msra.mxu0 0
    %1453 = vmatprep.subr.bf16.mxu0 0
    %1454 = vmatpush1.bf16.msra.mxu0 0
    %1455 = vmatprep.mubr.bf16.mxu0 0
    %1456 = vmatmul.mubr.bf16.gmra.mrb[0].mxu0 %v1358
    %v1457 = vpop.f32.mrb[0].mxu0
    %v1458 = vadd.f32 0.0, %v1457
    %v1459 = vpop.f32.mrb[0].mxu0
    %v1460 = vpop.f32.mrb[0].mxu0
    %v1461 = vpop.f32.mrb[0].mxu0
    %1462 = vdwg.mxu0
    %v1479 = vunpack.c.l.b16 %v1342
    %v1480 = vunpack.c.l.b16 %v1343
    %v1481 = vunpack.c.l.b16 %v1344
    %v1482 = vunpack.c.l.b16 %v1345
    %v1483 = vunpack.c.l.b16 %v1346
    %v1484 = vunpack.c.l.b16 %v1347
    %v1485 = vunpack.c.l.b16 %v1348
    %v1486 = vunpack.c.l.b16 %v1349
    %v1487 = vunpack.c.l.b16 %v1350
    %v1488 = vunpack.c.l.b16 %v1351
    %v1489 = vunpack.c.l.b16 %v1352
    %v1490 = vunpack.c.l.b16 %v1353
    %v1491 = vunpack.c.l.b16 %v1354
    %v1492 = vunpack.c.l.b16 %v1355
    %v1493 = vunpack.c.l.b16 %v1356
    %v1494 = vunpack.c.l.b16 %v1357
    %v1495 = vpack.c.b16 %v1480, %v1479
    %v1496 = vpack.c.b16 %v1482, %v1481
    %v1497 = vpack.c.b16 %v1484, %v1483
    %v1498 = vpack.c.b16 %v1486, %v1485
    %v1499 = vpack.c.b16 %v1488, %v1487
    %v1500 = vpack.c.b16 %v1490, %v1489
    %v1501 = vpack.c.b16 %v1492, %v1491
    %v1502 = vpack.c.b16 %v1494, %v1493
    %1511 = vmatprep.subr.bf16.mxu0 0
    %1512 = vmatpush1.bf16.msra.mxu0 %v1495
    %1513 = vmatprep.subr.bf16.mxu0 0
    %1514 = vmatpush1.bf16.msra.mxu0 %v1496
    %1515 = vmatprep.subr.bf16.mxu0 0
    %1516 = vmatpush1.bf16.msra.mxu0 %v1497
    %1517 = vmatprep.subr.bf16.mxu0 0
    %1518 = vmatpush1.bf16.msra.mxu0 %v1498
    %1519 = vmatprep.subr.bf16.mxu0 0
    %1520 = vmatpush1.bf16.msra.mxu0 %v1499
    %1521 = vmatprep.subr.bf16.mxu0 0
    %1522 = vmatpush1.bf16.msra.mxu0 %v1500
    %1523 = vmatprep.subr.bf16.mxu0 0
    %1524 = vmatpush1.bf16.msra.mxu0 %v1501
    %1525 = vmatprep.subr.bf16.mxu0 0
    %1526 = vmatpush1.bf16.msra.mxu0 %v1502
    %1527 = vmatprep.subr.bf16.mxu0 0
    %1528 = vmatpush1.bf16.msra.mxu0 0
    %1529 = vmatprep.subr.bf16.mxu0 0
    %1530 = vmatpush1.bf16.msra.mxu0 0
    %1531 = vmatprep.subr.bf16.mxu0 0
    %1532 = vmatpush1.bf16.msra.mxu0 0
    %1533 = vmatprep.subr.bf16.mxu0 0
    %1534 = vmatpush1.bf16.msra.mxu0 0
    %1535 = vmatprep.subr.bf16.mxu0 0
    %1536 = vmatpush1.bf16.msra.mxu0 0
    %1537 = vmatprep.subr.bf16.mxu0 0
    %1538 = vmatpush1.bf16.msra.mxu0 0
    %1539 = vmatprep.subr.bf16.mxu0 0
    %1540 = vmatpush1.bf16.msra.mxu0 0
    %1541 = vmatprep.subr.bf16.mxu0 0
    %1542 = vmatpush1.bf16.msra.mxu0 0
    %1543 = vmatprep.mubr.bf16.mxu0 0
    %1544 = vmatmul.mubr.bf16.gmra.mrb[0].mxu0 %v1341
    %v1545 = vpop.f32.mrb[0].mxu0
    %v1546 = vadd.f32 %v1458, %v1545
    %v1547 = vpop.f32.mrb[0].mxu0
    %v1548 = vpop.f32.mrb[0].mxu0
    %v1549 = vpop.f32.mrb[0].mxu0
    %1550 = vdwg.mxu0
    %v1551 = vpack.c.bf16 %v1340, %v1340
    %v1552 = vld [vmem:[#allocation25] sm:$0xf]
    %v1553 = vld [vmem:[#allocation25 + $0x4] sm:$0xf]
    %v1554 = vld [vmem:[#allocation25 + $0x8] sm:$0xf]
    %v1555 = vld [vmem:[#allocation25 + $0xc] sm:$0xf]
    %v1556 = vld [vmem:[#allocation25 + $0x10] sm:$0xf]
    %v1557 = vld [vmem:[#allocation25 + $0x14] sm:$0xf]
    %v1558 = vld [vmem:[#allocation25 + $0x18] sm:$0xf]
    %v1559 = vld [vmem:[#allocation25 + $0x1c] sm:$0xf]
    %v1560 = vld [vmem:[#allocation25 + $0x20] sm:$0xf]
    %v1561 = vld [vmem:[#allocation25 + $0x24] sm:$0xf]
    %v1562 = vld [vmem:[#allocation25 + $0x28] sm:$0xf]
    %v1563 = vld [vmem:[#allocation25 + $0x2c] sm:$0xf]
    %v1564 = vld [vmem:[#allocation25 + $0x30] sm:$0xf]
    %v1565 = vld [vmem:[#allocation25 + $0x34] sm:$0xf]
    %v1566 = vld [vmem:[#allocation25 + $0x38] sm:$0xf]
    %v1567 = vld [vmem:[#allocation25 + $0x3c] sm:$0xf]
    %v1584 = vunpack.c.l.b16 %v1552
    %v1585 = vunpack.c.l.b16 %v1553
    %v1586 = vunpack.c.l.b16 %v1554
    %v1587 = vunpack.c.l.b16 %v1555
    %v1588 = vunpack.c.l.b16 %v1556
    %v1589 = vunpack.c.l.b16 %v1557
    %v1590 = vunpack.c.l.b16 %v1558
    %v1591 = vunpack.c.l.b16 %v1559
    %v1592 = vunpack.c.l.b16 %v1560
    %v1593 = vunpack.c.l.b16 %v1561
    %v1594 = vunpack.c.l.b16 %v1562
    %v1595 = vunpack.c.l.b16 %v1563
    %v1596 = vunpack.c.l.b16 %v1564
    %v1597 = vunpack.c.l.b16 %v1565
    %v1598 = vunpack.c.l.b16 %v1566
    %v1599 = vunpack.c.l.b16 %v1567
    %v1600 = vpack.c.b16 %v1585, %v1584
    %v1601 = vpack.c.b16 %v1587, %v1586
    %v1602 = vpack.c.b16 %v1589, %v1588
    %v1603 = vpack.c.b16 %v1591, %v1590
    %v1604 = vpack.c.b16 %v1593, %v1592
    %v1605 = vpack.c.b16 %v1595, %v1594
    %v1606 = vpack.c.b16 %v1597, %v1596
    %v1607 = vpack.c.b16 %v1599, %v1598
    %1616 = vmatprep.subr.bf16.mxu0 0
    %1617 = vmatpush1.bf16.msra.mxu0 %v1600
    %1618 = vmatprep.subr.bf16.mxu0 0
    %1619 = vmatpush1.bf16.msra.mxu0 %v1601
    %1620 = vmatprep.subr.bf16.mxu0 0
    %1621 = vmatpush1.bf16.msra.mxu0 %v1602
    %1622 = vmatprep.subr.bf16.mxu0 0
    %1623 = vmatpush1.bf16.msra.mxu0 %v1603
    %1624 = vmatprep.subr.bf16.mxu0 0
    %1625 = vmatpush1.bf16.msra.mxu0 %v1604
    %1626 = vmatprep.subr.bf16.mxu0 0
    %1627 = vmatpush1.bf16.msra.mxu0 %v1605
    %1628 = vmatprep.subr.bf16.mxu0 0
    %1629 = vmatpush1.bf16.msra.mxu0 %v1606
    %1630 = vmatprep.subr.bf16.mxu0 0
    %1631 = vmatpush1.bf16.msra.mxu0 %v1607
    %1632 = vmatprep.subr.bf16.mxu0 0
    %1633 = vmatpush1.bf16.msra.mxu0 0
    %1634 = vmatprep.subr.bf16.mxu0 0
    %1635 = vmatpush1.bf16.msra.mxu0 0
    %1636 = vmatprep.subr.bf16.mxu0 0
    %1637 = vmatpush1.bf16.msra.mxu0 0
    %1638 = vmatprep.subr.bf16.mxu0 0
    %1639 = vmatpush1.bf16.msra.mxu0 0
    %1640 = vmatprep.subr.bf16.mxu0 0
    %1641 = vmatpush1.bf16.msra.mxu0 0
    %1642 = vmatprep.subr.bf16.mxu0 0
    %1643 = vmatpush1.bf16.msra.mxu0 0
    %1644 = vmatprep.subr.bf16.mxu0 0
    %1645 = vmatpush1.bf16.msra.mxu0 0
    %1646 = vmatprep.subr.bf16.mxu0 0
    %1647 = vmatpush1.bf16.msra.mxu0 0
    %1648 = vmatprep.mubr.bf16.mxu0 0
    %1649 = vmatmul.mubr.bf16.gmra.mrb[0].mxu0 %v1551
    %v1650 = vpop.f32.mrb[0].mxu0
    %v1651 = vadd.f32 0.0, %v1650
    %v1652 = vpop.f32.mrb[0].mxu0
    %v1653 = vpop.f32.mrb[0].mxu0
    %v1654 = vpop.f32.mrb[0].mxu0
    %1655 = vdwg.mxu0
    %v1656 = vadd.f32 %v1546, %v1651
    %v1657 = vld [vmem:[#allocation26] sm:$0x1]
    %v1659 = vlaneseq
    %v1660 = vshrl.u32 %v1659, 7
    %v1661 = vsub.s32 0, %v1660
    %v1662 = vrot.slane %v1657, %v1661
    %v1664 = vadd.f32 %v1656, %v1662
    %v1665 = vtanh.pop %v1664
    %1666 = vst [vmem:[#allocation44] sm:$0xff] %v1665
    %v1667 = vpack.c.bf16 %v1665, %v1665
    %v1668 = vld [vmem:[#allocation28] sm:$0xf]
    %v1669 = vld [vmem:[#allocation28 + $0x4] sm:$0xf]
    %v1670 = vld [vmem:[#allocation28 + $0x8] sm:$0xf]
    %v1671 = vld [vmem:[#allocation28 + $0xc] sm:$0xf]
    %v1672 = vld [vmem:[#allocation28 + $0x10] sm:$0xf]
    %v1673 = vld [vmem:[#allocation28 + $0x14] sm:$0xf]
    %v1674 = vld [vmem:[#allocation28 + $0x18] sm:$0xf]
    %v1675 = vld [vmem:[#allocation28 + $0x1c] sm:$0xf]
    %v1676 = vld [vmem:[#allocation28 + $0x20] sm:$0xf]
    %v1677 = vld [vmem:[#allocation28 + $0x24] sm:$0xf]
    %v1678 = vld [vmem:[#allocation28 + $0x28] sm:$0xf]
    %v1679 = vld [vmem:[#allocation28 + $0x2c] sm:$0xf]
    %v1680 = vld [vmem:[#allocation28 + $0x30] sm:$0xf]
    %v1681 = vld [vmem:[#allocation28 + $0x34] sm:$0xf]
    %v1682 = vld [vmem:[#allocation28 + $0x38] sm:$0xf]
    %v1683 = vld [vmem:[#allocation28 + $0x3c] sm:$0xf]
    %v1684 = vld [vmem:[#allocation29] sm:$0x1]
    %v1686 = vlaneseq
    %v1687 = vshrl.u32 %v1686, 7
    %v1688 = vsub.s32 0, %v1687
    %v1689 = vrot.slane %v1684, %v1688
    %v1707 = vunpack.c.l.b16 %v1668
    %v1708 = vunpack.c.l.b16 %v1669
    %v1709 = vunpack.c.l.b16 %v1670
    %v1710 = vunpack.c.l.b16 %v1671
    %v1711 = vunpack.c.l.b16 %v1672
    %v1712 = vunpack.c.l.b16 %v1673
    %v1713 = vunpack.c.l.b16 %v1674
    %v1714 = vunpack.c.l.b16 %v1675
    %v1715 = vunpack.c.l.b16 %v1676
    %v1716 = vunpack.c.l.b16 %v1677
    %v1717 = vunpack.c.l.b16 %v1678
    %v1718 = vunpack.c.l.b16 %v1679
    %v1719 = vunpack.c.l.b16 %v1680
    %v1720 = vunpack.c.l.b16 %v1681
    %v1721 = vunpack.c.l.b16 %v1682
    %v1722 = vunpack.c.l.b16 %v1683
    %v1723 = vpack.c.b16 %v1708, %v1707
    %v1724 = vpack.c.b16 %v1710, %v1709
    %v1725 = vpack.c.b16 %v1712, %v1711
    %v1726 = vpack.c.b16 %v1714, %v1713
    %v1727 = vpack.c.b16 %v1716, %v1715
    %v1728 = vpack.c.b16 %v1718, %v1717
    %v1729 = vpack.c.b16 %v1720, %v1719
    %v1730 = vpack.c.b16 %v1722, %v1721
    %1739 = vmatprep.subr.bf16.mxu0 0
    %1740 = vmatpush1.bf16.msra.mxu0 %v1723
    %1741 = vmatprep.subr.bf16.mxu0 0
    %1742 = vmatpush1.bf16.msra.mxu0 %v1724
    %1743 = vmatprep.subr.bf16.mxu0 0
    %1744 = vmatpush1.bf16.msra.mxu0 %v1725
    %1745 = vmatprep.subr.bf16.mxu0 0
    %1746 = vmatpush1.bf16.msra.mxu0 %v1726
    %1747 = vmatprep.subr.bf16.mxu0 0
    %1748 = vmatpush1.bf16.msra.mxu0 %v1727
    %1749 = vmatprep.subr.bf16.mxu0 0
    %1750 = vmatpush1.bf16.msra.mxu0 %v1728
    %1751 = vmatprep.subr.bf16.mxu0 0
    %1752 = vmatpush1.bf16.msra.mxu0 %v1729
    %1753 = vmatprep.subr.bf16.mxu0 0
    %1754 = vmatpush1.bf16.msra.mxu0 %v1730
    %1755 = vmatprep.subr.bf16.mxu0 0
    %1756 = vmatpush1.bf16.msra.mxu0 0
    %1757 = vmatprep.subr.bf16.mxu0 0
    %1758 = vmatpush1.bf16.msra.mxu0 0
    %1759 = vmatprep.subr.bf16.mxu0 0
    %1760 = vmatpush1.bf16.msra.mxu0 0
    %1761 = vmatprep.subr.bf16.mxu0 0
    %1762 = vmatpush1.bf16.msra.mxu0 0
    %1763 = vmatprep.subr.bf16.mxu0 0
    %1764 = vmatpush1.bf16.msra.mxu0 0
    %1765 = vmatprep.subr.bf16.mxu0 0
    %1766 = vmatpush1.bf16.msra.mxu0 0
    %1767 = vmatprep.subr.bf16.mxu0 0
    %1768 = vmatpush1.bf16.msra.mxu0 0
    %1769 = vmatprep.subr.bf16.mxu0 0
    %1770 = vmatpush1.bf16.msra.mxu0 0
    %1771 = vmatprep.mubr.bf16.mxu0 0
    %1772 = vmatmul.mubr.bf16.gmra.mrb[0].mxu0 %v1667
    %v1773 = vpop.f32.mrb[0].mxu0
    %v1774 = vadd.f32 %v1689, %v1773
    %v1775 = vpop.f32.mrb[0].mxu0
    %v1776 = vpop.f32.mrb[0].mxu0
    %v1777 = vpop.f32.mrb[0].mxu0
    %1778 = vdwg.mxu0
    %v1779 = vtanh.pop %v1774
    %v1780 = vpack.c.bf16 %v1779, %v1779
    %v1781 = vld [vmem:[#allocation37] sm:$0xf]
    %v1782 = vld [vmem:[#allocation37 + $0x4] sm:$0xf]
    %v1783 = vld [vmem:[#allocation37 + $0x8] sm:$0xf]
    %v1784 = vld [vmem:[#allocation37 + $0xc] sm:$0xf]
    %v1785 = vld [vmem:[#allocation37 + $0x10] sm:$0xf]
    %v1786 = vld [vmem:[#allocation37 + $0x14] sm:$0xf]
    %v1787 = vld [vmem:[#allocation37 + $0x18] sm:$0xf]
    %v1788 = vld [vmem:[#allocation37 + $0x1c] sm:$0xf]
    %v1789 = vld [vmem:[#allocation37 + $0x20] sm:$0xf]
    %v1790 = vld [vmem:[#allocation37 + $0x24] sm:$0xf]
    %v1791 = vld [vmem:[#allocation37 + $0x28] sm:$0xf]
    %v1792 = vld [vmem:[#allocation37 + $0x2c] sm:$0xf]
    %v1793 = vld [vmem:[#allocation37 + $0x30] sm:$0xf]
    %v1794 = vld [vmem:[#allocation37 + $0x34] sm:$0xf]
    %v1795 = vld [vmem:[#allocation37 + $0x38] sm:$0xf]
    %v1796 = vld [vmem:[#allocation37 + $0x3c] sm:$0xf]
    %v1797 = vld [vmem:[#allocation38] sm:$0x1]
    %v1799 = vlaneseq
    %v1800 = vshrl.u32 %v1799, 7
    %v1801 = vsub.s32 0, %v1800
    %v1802 = vrot.slane %v1797, %v1801
    %v1820 = vunpack.c.l.b16 %v1781
    %v1821 = vunpack.c.l.b16 %v1782
    %v1822 = vunpack.c.l.b16 %v1783
    %v1823 = vunpack.c.l.b16 %v1784
    %v1824 = vunpack.c.l.b16 %v1785
    %v1825 = vunpack.c.l.b16 %v1786
    %v1826 = vunpack.c.l.b16 %v1787
    %v1827 = vunpack.c.l.b16 %v1788
    %v1828 = vunpack.c.l.b16 %v1789
    %v1829 = vunpack.c.l.b16 %v1790
    %v1830 = vunpack.c.l.b16 %v1791
    %v1831 = vunpack.c.l.b16 %v1792
    %v1832 = vunpack.c.l.b16 %v1793
    %v1833 = vunpack.c.l.b16 %v1794
    %v1834 = vunpack.c.l.b16 %v1795
    %v1835 = vunpack.c.l.b16 %v1796
    %v1836 = vpack.c.b16 %v1821, %v1820
    %v1837 = vpack.c.b16 %v1823, %v1822
    %v1838 = vpack.c.b16 %v1825, %v1824
    %v1839 = vpack.c.b16 %v1827, %v1826
    %v1840 = vpack.c.b16 %v1829, %v1828
    %v1841 = vpack.c.b16 %v1831, %v1830
    %v1842 = vpack.c.b16 %v1833, %v1832
    %v1843 = vpack.c.b16 %v1835, %v1834
    %1852 = vmatprep.subr.bf16.mxu0 0
    %1853 = vmatpush1.bf16.msra.mxu0 %v1836
    %1854 = vmatprep.subr.bf16.mxu0 0
    %1855 = vmatpush1.bf16.msra.mxu0 %v1837
    %1856 = vmatprep.subr.bf16.mxu0 0
    %1857 = vmatpush1.bf16.msra.mxu0 %v1838
    %1858 = vmatprep.subr.bf16.mxu0 0
    %1859 = vmatpush1.bf16.msra.mxu0 %v1839
    %1860 = vmatprep.subr.bf16.mxu0 0
    %1861 = vmatpush1.bf16.msra.mxu0 %v1840
    %1862 = vmatprep.subr.bf16.mxu0 0
    %1863 = vmatpush1.bf16.msra.mxu0 %v1841
    %1864 = vmatprep.subr.bf16.mxu0 0
    %1865 = vmatpush1.bf16.msra.mxu0 %v1842
    %1866 = vmatprep.subr.bf16.mxu0 0
    %1867 = vmatpush1.bf16.msra.mxu0 %v1843
    %1868 = vmatprep.subr.bf16.mxu0 0
    %1869 = vmatpush1.bf16.msra.mxu0 0
    %1870 = vmatprep.subr.bf16.mxu0 0
    %1871 = vmatpush1.bf16.msra.mxu0 0
    %1872 = vmatprep.subr.bf16.mxu0 0
    %1873 = vmatpush1.bf16.msra.mxu0 0
    %1874 = vmatprep.subr.bf16.mxu0 0
    %1875 = vmatpush1.bf16.msra.mxu0 0
    %1876 = vmatprep.subr.bf16.mxu0 0
    %1877 = vmatpush1.bf16.msra.mxu0 0
    %1878 = vmatprep.subr.bf16.mxu0 0
    %1879 = vmatpush1.bf16.msra.mxu0 0
    %1880 = vmatprep.subr.bf16.mxu0 0
    %1881 = vmatpush1.bf16.msra.mxu0 0
    %1882 = vmatprep.subr.bf16.mxu0 0
    %1883 = vmatpush1.bf16.msra.mxu0 0
    %1884 = vmatprep.mubr.bf16.mxu0 0
    %1885 = vmatmul.mubr.bf16.gmra.mrb[0].mxu0 %v1780
    %v1886 = vpop.f32.mrb[0].mxu0
    %v1887 = vadd.f32 %v1802, %v1886
    %v1888 = vpop.f32.mrb[0].mxu0
    %v1889 = vpop.f32.mrb[0].mxu0
    %v1890 = vpop.f32.mrb[0].mxu0
    %1891 = vdwg.mxu0
    %v1892 = vtanh.pop %v1887
    %v1893 = vpack.c.bf16 %v1892, %v1892
    %v1894 = vld [vmem:[%s55] sm:$0xff]
    %v1895 = vld [vmem:[%s55 + $0x8] sm:$0xff]
    %v1896 = vld [vmem:[%s55 + $0x10] sm:$0xff]
    %v1897 = vld [vmem:[%s55 + $0x18] sm:$0xff]
    %v1898 = vld [vmem:[%s55 + $0x20] sm:$0xff]
    %v1899 = vld [vmem:[%s55 + $0x28] sm:$0xff]
    %v1900 = vld [vmem:[%s55 + $0x30] sm:$0xff]
    %v1901 = vld [vmem:[%s55 + $0x38] sm:$0xff]
    %v1902 = vld [vmem:[%s55 + $0x40] sm:$0xff]
    %v1903 = vld [vmem:[%s55 + $0x48] sm:$0xff]
    %v1904 = vld [vmem:[%s55 + $0x50] sm:$0xff]
    %v1905 = vld [vmem:[%s55 + $0x58] sm:$0xff]
    %v1906 = vld [vmem:[%s55 + $0x60] sm:$0xff]
    %v1907 = vld [vmem:[%s55 + $0x68] sm:$0xff]
    %v1908 = vld [vmem:[%s55 + $0x70] sm:$0xff]
    %v1909 = vld [vmem:[%s55 + $0x78] sm:$0xff]
    %v1910 = vld [vmem:[%s57] sm:$0x3]
    %v1912 = vlaneseq
    %v1913 = vshrl.u32 %v1912, 7
    %v1914 = vsub.s32 0, %v1913
    %v1915 = vrot.slane %v1910, %v1914
    %v1916 = vlaneseq
    %v1917 = vshrl.u32 %v1916, 7
    %v1918 = vsub.s32 1, %v1917
    %v1919 = vrot.slane %v1910, %v1918
    %v1938 = vunpack.c.l.b16 %v1894
    %v1939 = vunpack.c.h.b16 %v1894
    %v1940 = vunpack.c.l.b16 %v1895
    %v1941 = vunpack.c.h.b16 %v1895
    %v1942 = vunpack.c.l.b16 %v1896
    %v1943 = vunpack.c.h.b16 %v1896
    %v1944 = vunpack.c.l.b16 %v1897
    %v1945 = vunpack.c.h.b16 %v1897
    %v1946 = vunpack.c.l.b16 %v1898
    %v1947 = vunpack.c.h.b16 %v1898
    %v1948 = vunpack.c.l.b16 %v1899
    %v1949 = vunpack.c.h.b16 %v1899
    %v1950 = vunpack.c.l.b16 %v1900
    %v1951 = vunpack.c.h.b16 %v1900
    %v1952 = vunpack.c.l.b16 %v1901
    %v1953 = vunpack.c.h.b16 %v1901
    %v1954 = vunpack.c.l.b16 %v1902
    %v1955 = vunpack.c.h.b16 %v1902
    %v1956 = vunpack.c.l.b16 %v1903
    %v1957 = vunpack.c.h.b16 %v1903
    %v1958 = vunpack.c.l.b16 %v1904
    %v1959 = vunpack.c.h.b16 %v1904
    %v1960 = vunpack.c.l.b16 %v1905
    %v1961 = vunpack.c.h.b16 %v1905
    %v1962 = vunpack.c.l.b16 %v1906
    %v1963 = vunpack.c.h.b16 %v1906
    %v1964 = vunpack.c.l.b16 %v1907
    %v1965 = vunpack.c.h.b16 %v1907
    %v1966 = vunpack.c.l.b16 %v1908
    %v1967 = vunpack.c.h.b16 %v1908
    %v1968 = vunpack.c.l.b16 %v1909
    %v1969 = vunpack.c.h.b16 %v1909
    %v1970 = vpack.c.b16 %v1940, %v1938
    %v1971 = vpack.c.b16 %v1941, %v1939
    %v1972 = vpack.c.b16 %v1944, %v1942
    %v1973 = vpack.c.b16 %v1945, %v1943
    %v1974 = vpack.c.b16 %v1948, %v1946
    %v1975 = vpack.c.b16 %v1949, %v1947
    %v1976 = vpack.c.b16 %v1952, %v1950
    %v1977 = vpack.c.b16 %v1953, %v1951
    %v1978 = vpack.c.b16 %v1956, %v1954
    %v1979 = vpack.c.b16 %v1957, %v1955
    %v1980 = vpack.c.b16 %v1960, %v1958
    %v1981 = vpack.c.b16 %v1961, %v1959
    %v1982 = vpack.c.b16 %v1964, %v1962
    %v1983 = vpack.c.b16 %v1965, %v1963
    %v1984 = vpack.c.b16 %v1968, %v1966
    %v1985 = vpack.c.b16 %v1969, %v1967
    %2002 = vmatprep.subr.bf16.mxu0 %v1971
    %2003 = vmatpush1.bf16.msra.mxu0 %v1970
    %2004 = vmatprep.subr.bf16.mxu0 %v1973
    %2005 = vmatpush1.bf16.msra.mxu0 %v1972
    %2006 = vmatprep.subr.bf16.mxu0 %v1975
    %2007 = vmatpush1.bf16.msra.mxu0 %v1974
    %2008 = vmatprep.subr.bf16.mxu0 %v1977
    %2009 = vmatpush1.bf16.msra.mxu0 %v1976
    %2010 = vmatprep.subr.bf16.mxu0 %v1979
    %2011 = vmatpush1.bf16.msra.mxu0 %v1978
    %2012 = vmatprep.subr.bf16.mxu0 %v1981
    %2013 = vmatpush1.bf16.msra.mxu0 %v1980
    %2014 = vmatprep.subr.bf16.mxu0 %v1983
    %2015 = vmatpush1.bf16.msra.mxu0 %v1982
    %2016 = vmatprep.subr.bf16.mxu0 %v1985
    %2017 = vmatpush1.bf16.msra.mxu0 %v1984
    %2018 = vmatprep.subr.bf16.mxu0 0
    %2019 = vmatpush1.bf16.msra.mxu0 0
    %2020 = vmatprep.subr.bf16.mxu0 0
    %2021 = vmatpush1.bf16.msra.mxu0 0
    %2022 = vmatprep.subr.bf16.mxu0 0
    %2023 = vmatpush1.bf16.msra.mxu0 0
    %2024 = vmatprep.subr.bf16.mxu0 0
    %2025 = vmatpush1.bf16.msra.mxu0 0
    %2026 = vmatprep.subr.bf16.mxu0 0
    %2027 = vmatpush1.bf16.msra.mxu0 0
    %2028 = vmatprep.subr.bf16.mxu0 0
    %2029 = vmatpush1.bf16.msra.mxu0 0
    %2030 = vmatprep.subr.bf16.mxu0 0
    %2031 = vmatpush1.bf16.msra.mxu0 0
    %2032 = vmatprep.subr.bf16.mxu0 0
    %2033 = vmatpush1.bf16.msra.mxu0 0
    %2034 = vmatprep.mubr.bf16.mxu0 0
    %2035 = vmatmul.mubr.bf16.gmra.mrb[0].mxu0 %v1893
    %v2036 = vpop.f32.mrb[0].mxu0
    %v2037 = vadd.f32 %v1915, %v2036
    %v2038 = vpop.f32.mrb[0].mxu0
    %v2039 = vadd.f32 %v1919, %v2038
    %v2040 = vpop.f32.mrb[0].mxu0
    %v2041 = vpop.f32.mrb[0].mxu0
    %2042 = vdwg.mxu0
    %v2043 = vtanh.pop %v2037
    %v2044 = vtanh.pop %v2039
    %2045 = vst [vmem:[#allocation40] sm:$0xff] %v2043
    %2046 = vst [vmem:[#allocation40 + $0x8] sm:$0xff] %v2044
    %v2047 = vld [vmem:[#allocation31] sm:$0xf]
    %v2048 = vld [vmem:[#allocation31 + $0x4] sm:$0xf]
    %v2049 = vld [vmem:[#allocation31 + $0x8] sm:$0xf]
    %v2050 = vld [vmem:[#allocation31 + $0xc] sm:$0xf]
    %v2051 = vld [vmem:[#allocation31 + $0x10] sm:$0xf]
    %v2052 = vld [vmem:[#allocation31 + $0x14] sm:$0xf]
    %v2053 = vld [vmem:[#allocation31 + $0x18] sm:$0xf]
    %v2054 = vld [vmem:[#allocation31 + $0x1c] sm:$0xf]
    %v2055 = vld [vmem:[#allocation31 + $0x20] sm:$0xf]
    %v2056 = vld [vmem:[#allocation31 + $0x24] sm:$0xf]
    %v2057 = vld [vmem:[#allocation31 + $0x28] sm:$0xf]
    %v2058 = vld [vmem:[#allocation31 + $0x2c] sm:$0xf]
    %v2059 = vld [vmem:[#allocation31 + $0x30] sm:$0xf]
    %v2060 = vld [vmem:[#allocation31 + $0x34] sm:$0xf]
    %v2061 = vld [vmem:[#allocation31 + $0x38] sm:$0xf]
    %v2062 = vld [vmem:[#allocation31 + $0x3c] sm:$0xf]
    %v2063 = vld [vmem:[#allocation32] sm:$0x1]
    %v2065 = vlaneseq
    %v2066 = vshrl.u32 %v2065, 7
    %v2067 = vsub.s32 0, %v2066
    %v2068 = vrot.slane %v2063, %v2067
    %v2086 = vunpack.c.l.b16 %v2047
    %v2087 = vunpack.c.l.b16 %v2048
    %v2088 = vunpack.c.l.b16 %v2049
    %v2089 = vunpack.c.l.b16 %v2050
    %v2090 = vunpack.c.l.b16 %v2051
    %v2091 = vunpack.c.l.b16 %v2052
    %v2092 = vunpack.c.l.b16 %v2053
    %v2093 = vunpack.c.l.b16 %v2054
    %v2094 = vunpack.c.l.b16 %v2055
    %v2095 = vunpack.c.l.b16 %v2056
    %v2096 = vunpack.c.l.b16 %v2057
    %v2097 = vunpack.c.l.b16 %v2058
    %v2098 = vunpack.c.l.b16 %v2059
    %v2099 = vunpack.c.l.b16 %v2060
    %v2100 = vunpack.c.l.b16 %v2061
    %v2101 = vunpack.c.l.b16 %v2062
    %v2102 = vpack.c.b16 %v2087, %v2086
    %v2103 = vpack.c.b16 %v2089, %v2088
    %v2104 = vpack.c.b16 %v2091, %v2090
    %v2105 = vpack.c.b16 %v2093, %v2092
    %v2106 = vpack.c.b16 %v2095, %v2094
    %v2107 = vpack.c.b16 %v2097, %v2096
    %v2108 = vpack.c.b16 %v2099, %v2098
    %v2109 = vpack.c.b16 %v2101, %v2100
    %2118 = vmatprep.subr.bf16.mxu0 0
    %2119 = vmatpush1.bf16.msra.mxu0 %v2102
    %2120 = vmatprep.subr.bf16.mxu0 0
    %2121 = vmatpush1.bf16.msra.mxu0 %v2103
    %2122 = vmatprep.subr.bf16.mxu0 0
    %2123 = vmatpush1.bf16.msra.mxu0 %v2104
    %2124 = vmatprep.subr.bf16.mxu0 0
    %2125 = vmatpush1.bf16.msra.mxu0 %v2105
    %2126 = vmatprep.subr.bf16.mxu0 0
    %2127 = vmatpush1.bf16.msra.mxu0 %v2106
    %2128 = vmatprep.subr.bf16.mxu0 0
    %2129 = vmatpush1.bf16.msra.mxu0 %v2107
    %2130 = vmatprep.subr.bf16.mxu0 0
    %2131 = vmatpush1.bf16.msra.mxu0 %v2108
    %2132 = vmatprep.subr.bf16.mxu0 0
    %2133 = vmatpush1.bf16.msra.mxu0 %v2109
    %2134 = vmatprep.subr.bf16.mxu0 0
    %2135 = vmatpush1.bf16.msra.mxu0 0
    %2136 = vmatprep.subr.bf16.mxu0 0
    %2137 = vmatpush1.bf16.msra.mxu0 0
    %2138 = vmatprep.subr.bf16.mxu0 0
    %2139 = vmatpush1.bf16.msra.mxu0 0
    %2140 = vmatprep.subr.bf16.mxu0 0
    %2141 = vmatpush1.bf16.msra.mxu0 0
    %2142 = vmatprep.subr.bf16.mxu0 0
    %2143 = vmatpush1.bf16.msra.mxu0 0
    %2144 = vmatprep.subr.bf16.mxu0 0
    %2145 = vmatpush1.bf16.msra.mxu0 0
    %2146 = vmatprep.subr.bf16.mxu0 0
    %2147 = vmatpush1.bf16.msra.mxu0 0
    %2148 = vmatprep.subr.bf16.mxu0 0
    %2149 = vmatpush1.bf16.msra.mxu0 0
    %2150 = vmatprep.mubr.bf16.mxu0 0
    %2151 = vmatmul.mubr.bf16.gmra.mrb[0].mxu0 %v1667
    %v2152 = vpop.f32.mrb[0].mxu0
    %v2153 = vadd.f32 %v2068, %v2152
    %v2154 = vpop.f32.mrb[0].mxu0
    %v2155 = vpop.f32.mrb[0].mxu0
    %v2156 = vpop.f32.mrb[0].mxu0
    %2157 = vdwg.mxu0
    %v2158 = vtanh.pop %v2153
    %v2159 = vpack.c.bf16 %v2158, %v2158
    %v2160 = vld [vmem:[%s59] sm:$0xf]
    %v2161 = vld [vmem:[%s59 + $0x4] sm:$0xf]
    %v2162 = vld [vmem:[%s59 + $0x8] sm:$0xf]
    %v2163 = vld [vmem:[%s59 + $0xc] sm:$0xf]
    %v2164 = vld [vmem:[%s59 + $0x10] sm:$0xf]
    %v2165 = vld [vmem:[%s59 + $0x14] sm:$0xf]
    %v2166 = vld [vmem:[%s59 + $0x18] sm:$0xf]
    %v2167 = vld [vmem:[%s59 + $0x1c] sm:$0xf]
    %v2168 = vld [vmem:[%s59 + $0x20] sm:$0xf]
    %v2169 = vld [vmem:[%s59 + $0x24] sm:$0xf]
    %v2170 = vld [vmem:[%s59 + $0x28] sm:$0xf]
    %v2171 = vld [vmem:[%s59 + $0x2c] sm:$0xf]
    %v2172 = vld [vmem:[%s59 + $0x30] sm:$0xf]
    %v2173 = vld [vmem:[%s59 + $0x34] sm:$0xf]
    %v2174 = vld [vmem:[%s59 + $0x38] sm:$0xf]
    %v2175 = vld [vmem:[%s59 + $0x3c] sm:$0xf]
    %v2176 = vld [vmem:[%s61] sm:$0x1]
    %v2178 = vlaneseq
    %v2179 = vshrl.u32 %v2178, 7
    %v2180 = vsub.s32 0, %v2179
    %v2181 = vrot.slane %v2176, %v2180
    %v2199 = vunpack.c.l.b16 %v2160
    %v2200 = vunpack.c.l.b16 %v2161
    %v2201 = vunpack.c.l.b16 %v2162
    %v2202 = vunpack.c.l.b16 %v2163
    %v2203 = vunpack.c.l.b16 %v2164
    %v2204 = vunpack.c.l.b16 %v2165
    %v2205 = vunpack.c.l.b16 %v2166
    %v2206 = vunpack.c.l.b16 %v2167
    %v2207 = vunpack.c.l.b16 %v2168
    %v2208 = vunpack.c.l.b16 %v2169
    %v2209 = vunpack.c.l.b16 %v2170
    %v2210 = vunpack.c.l.b16 %v2171
    %v2211 = vunpack.c.l.b16 %v2172
    %v2212 = vunpack.c.l.b16 %v2173
    %v2213 = vunpack.c.l.b16 %v2174
    %v2214 = vunpack.c.l.b16 %v2175
    %v2215 = vpack.c.b16 %v2200, %v2199
    %v2216 = vpack.c.b16 %v2202, %v2201
    %v2217 = vpack.c.b16 %v2204, %v2203
    %v2218 = vpack.c.b16 %v2206, %v2205
    %v2219 = vpack.c.b16 %v2208, %v2207
    %v2220 = vpack.c.b16 %v2210, %v2209
    %v2221 = vpack.c.b16 %v2212, %v2211
    %v2222 = vpack.c.b16 %v2214, %v2213
    %2231 = vmatprep.subr.bf16.mxu0 0
    %2232 = vmatpush1.bf16.msra.mxu0 %v2215
    %2233 = vmatprep.subr.bf16.mxu0 0
    %2234 = vmatpush1.bf16.msra.mxu0 %v2216
    %2235 = vmatprep.subr.bf16.mxu0 0
    %2236 = vmatpush1.bf16.msra.mxu0 %v2217
    %2237 = vmatprep.subr.bf16.mxu0 0
    %2238 = vmatpush1.bf16.msra.mxu0 %v2218
    %2239 = vmatprep.subr.bf16.mxu0 0
    %2240 = vmatpush1.bf16.msra.mxu0 %v2219
    %2241 = vmatprep.subr.bf16.mxu0 0
    %2242 = vmatpush1.bf16.msra.mxu0 %v2220
    %2243 = vmatprep.subr.bf16.mxu0 0
    %2244 = vmatpush1.bf16.msra.mxu0 %v2221
    %2245 = vmatprep.subr.bf16.mxu0 0
    %2246 = vmatpush1.bf16.msra.mxu0 %v2222
    %2247 = vmatprep.subr.bf16.mxu0 0
    %2248 = vmatpush1.bf16.msra.mxu0 0
    %2249 = vmatprep.subr.bf16.mxu0 0
    %2250 = vmatpush1.bf16.msra.mxu0 0
    %2251 = vmatprep.subr.bf16.mxu0 0
    %2252 = vmatpush1.bf16.msra.mxu0 0
    %2253 = vmatprep.subr.bf16.mxu0 0
    %2254 = vmatpush1.bf16.msra.mxu0 0
    %2255 = vmatprep.subr.bf16.mxu0 0
    %2256 = vmatpush1.bf16.msra.mxu0 0
    %2257 = vmatprep.subr.bf16.mxu0 0
    %2258 = vmatpush1.bf16.msra.mxu0 0
    %2259 = vmatprep.subr.bf16.mxu0 0
    %2260 = vmatpush1.bf16.msra.mxu0 0
    %2261 = vmatprep.subr.bf16.mxu0 0
    %2262 = vmatpush1.bf16.msra.mxu0 0
    %2263 = vmatprep.mubr.bf16.mxu0 0
    %2264 = vmatmul.mubr.bf16.gmra.mrb[0].mxu0 %v2159
    %v2265 = vpop.f32.mrb[0].mxu0
    %v2266 = vadd.f32 %v2181, %v2265
    %v2267 = vpop.f32.mrb[0].mxu0
    %v2268 = vpop.f32.mrb[0].mxu0
    %v2269 = vpop.f32.mrb[0].mxu0
    %2270 = vdwg.mxu0
    %v2271 = vtanh.pop %v2266
    %v2272 = vpack.c.bf16 %v2271, %v2271
    %v2273 = vld [vmem:[%s63] sm:$0xff]
    %v2274 = vld [vmem:[%s63 + $0x8] sm:$0xff]
    %v2275 = vld [vmem:[%s63 + $0x10] sm:$0xff]
    %v2276 = vld [vmem:[%s63 + $0x18] sm:$0xff]
    %v2277 = vld [vmem:[%s63 + $0x20] sm:$0xff]
    %v2278 = vld [vmem:[%s63 + $0x28] sm:$0xff]
    %v2279 = vld [vmem:[%s63 + $0x30] sm:$0xff]
    %v2280 = vld [vmem:[%s63 + $0x38] sm:$0xff]
    %v2281 = vld [vmem:[%s63 + $0x40] sm:$0xff]
    %v2282 = vld [vmem:[%s63 + $0x48] sm:$0xff]
    %v2283 = vld [vmem:[%s63 + $0x50] sm:$0xff]
    %v2284 = vld [vmem:[%s63 + $0x58] sm:$0xff]
    %v2285 = vld [vmem:[%s63 + $0x60] sm:$0xff]
    %v2286 = vld [vmem:[%s63 + $0x68] sm:$0xff]
    %v2287 = vld [vmem:[%s63 + $0x70] sm:$0xff]
    %v2288 = vld [vmem:[%s63 + $0x78] sm:$0xff]
    %v2289 = vld [vmem:[%s65] sm:$0x3]
    %v2291 = vlaneseq
    %v2292 = vshrl.u32 %v2291, 7
    %v2293 = vsub.s32 0, %v2292
    %v2294 = vrot.slane %v2289, %v2293
    %v2295 = vlaneseq
    %v2296 = vshrl.u32 %v2295, 7
    %v2297 = vsub.s32 1, %v2296
    %v2298 = vrot.slane %v2289, %v2297
    %v2317 = vunpack.c.l.b16 %v2273
    %v2318 = vunpack.c.h.b16 %v2273
    %v2319 = vunpack.c.l.b16 %v2274
    %v2320 = vunpack.c.h.b16 %v2274
    %v2321 = vunpack.c.l.b16 %v2275
    %v2322 = vunpack.c.h.b16 %v2275
    %v2323 = vunpack.c.l.b16 %v2276
    %v2324 = vunpack.c.h.b16 %v2276
    %v2325 = vunpack.c.l.b16 %v2277
    %v2326 = vunpack.c.h.b16 %v2277
    %v2327 = vunpack.c.l.b16 %v2278
    %v2328 = vunpack.c.h.b16 %v2278
    %v2329 = vunpack.c.l.b16 %v2279
    %v2330 = vunpack.c.h.b16 %v2279
    %v2331 = vunpack.c.l.b16 %v2280
    %v2332 = vunpack.c.h.b16 %v2280
    %v2333 = vunpack.c.l.b16 %v2281
    %v2334 = vunpack.c.h.b16 %v2281
    %v2335 = vunpack.c.l.b16 %v2282
    %v2336 = vunpack.c.h.b16 %v2282
    %v2337 = vunpack.c.l.b16 %v2283
    %v2338 = vunpack.c.h.b16 %v2283
    %v2339 = vunpack.c.l.b16 %v2284
    %v2340 = vunpack.c.h.b16 %v2284
    %v2341 = vunpack.c.l.b16 %v2285
    %v2342 = vunpack.c.h.b16 %v2285
    %v2343 = vunpack.c.l.b16 %v2286
    %v2344 = vunpack.c.h.b16 %v2286
    %v2345 = vunpack.c.l.b16 %v2287
    %v2346 = vunpack.c.h.b16 %v2287
    %v2347 = vunpack.c.l.b16 %v2288
    %v2348 = vunpack.c.h.b16 %v2288
    %v2349 = vpack.c.b16 %v2319, %v2317
    %v2350 = vpack.c.b16 %v2320, %v2318
    %v2351 = vpack.c.b16 %v2323, %v2321
    %v2352 = vpack.c.b16 %v2324, %v2322
    %v2353 = vpack.c.b16 %v2327, %v2325
    %v2354 = vpack.c.b16 %v2328, %v2326
    %v2355 = vpack.c.b16 %v2331, %v2329
    %v2356 = vpack.c.b16 %v2332, %v2330
    %v2357 = vpack.c.b16 %v2335, %v2333
    %v2358 = vpack.c.b16 %v2336, %v2334
    %v2359 = vpack.c.b16 %v2339, %v2337
    %v2360 = vpack.c.b16 %v2340, %v2338
    %v2361 = vpack.c.b16 %v2343, %v2341
    %v2362 = vpack.c.b16 %v2344, %v2342
    %v2363 = vpack.c.b16 %v2347, %v2345
    %v2364 = vpack.c.b16 %v2348, %v2346
    %2381 = vmatprep.subr.bf16.mxu0 %v2350
    %2382 = vmatpush1.bf16.msra.mxu0 %v2349
    %2383 = vmatprep.subr.bf16.mxu0 %v2352
    %2384 = vmatpush1.bf16.msra.mxu0 %v2351
    %2385 = vmatprep.subr.bf16.mxu0 %v2354
    %2386 = vmatpush1.bf16.msra.mxu0 %v2353
    %2387 = vmatprep.subr.bf16.mxu0 %v2356
    %2388 = vmatpush1.bf16.msra.mxu0 %v2355
    %2389 = vmatprep.subr.bf16.mxu0 %v2358
    %2390 = vmatpush1.bf16.msra.mxu0 %v2357
    %2391 = vmatprep.subr.bf16.mxu0 %v2360
    %2392 = vmatpush1.bf16.msra.mxu0 %v2359
    %2393 = vmatprep.subr.bf16.mxu0 %v2362
    %2394 = vmatpush1.bf16.msra.mxu0 %v2361
    %2395 = vmatprep.subr.bf16.mxu0 %v2364
    %2396 = vmatpush1.bf16.msra.mxu0 %v2363
    %2397 = vmatprep.subr.bf16.mxu0 0
    %2398 = vmatpush1.bf16.msra.mxu0 0
    %2399 = vmatprep.subr.bf16.mxu0 0
    %2400 = vmatpush1.bf16.msra.mxu0 0
    %2401 = vmatprep.subr.bf16.mxu0 0
    %2402 = vmatpush1.bf16.msra.mxu0 0
    %2403 = vmatprep.subr.bf16.mxu0 0
    %2404 = vmatpush1.bf16.msra.mxu0 0
    %2405 = vmatprep.subr.bf16.mxu0 0
    %2406 = vmatpush1.bf16.msra.mxu0 0
    %2407 = vmatprep.subr.bf16.mxu0 0
    %2408 = vmatpush1.bf16.msra.mxu0 0
    %2409 = vmatprep.subr.bf16.mxu0 0
    %2410 = vmatpush1.bf16.msra.mxu0 0
    %2411 = vmatprep.subr.bf16.mxu0 0
    %2412 = vmatpush1.bf16.msra.mxu0 0
    %2413 = vmatprep.mubr.bf16.mxu0 0
    %2414 = vmatmul.mubr.bf16.gmra.mrb[0].mxu0 %v2272
    %v2415 = vpop.f32.mrb[0].mxu0
    %v2416 = vadd.f32 %v2294, %v2415
    %v2417 = vpop.f32.mrb[0].mxu0
    %v2418 = vadd.f32 %v2298, %v2417
    %v2419 = vpop.f32.mrb[0].mxu0
    %v2420 = vpop.f32.mrb[0].mxu0
    %2421 = vdwg.mxu0
    %v2422 = vtanh.pop %v2416
    %v2423 = vtanh.pop %v2418
    %2424 = vst [vmem:[#allocation41] sm:$0xff] %v2422
    %2425 = vst [vmem:[#allocation41 + $0x8] sm:$0xff] %v2423
    %v2426 = vld [vmem:[#allocation34] sm:$0xf]
    %v2427 = vld [vmem:[#allocation34 + $0x4] sm:$0xf]
    %v2428 = vld [vmem:[#allocation34 + $0x8] sm:$0xf]
    %v2429 = vld [vmem:[#allocation34 + $0xc] sm:$0xf]
    %v2430 = vld [vmem:[#allocation34 + $0x10] sm:$0xf]
    %v2431 = vld [vmem:[#allocation34 + $0x14] sm:$0xf]
    %v2432 = vld [vmem:[#allocation34 + $0x18] sm:$0xf]
    %v2433 = vld [vmem:[#allocation34 + $0x1c] sm:$0xf]
    %v2434 = vld [vmem:[#allocation34 + $0x20] sm:$0xf]
    %v2435 = vld [vmem:[#allocation34 + $0x24] sm:$0xf]
    %v2436 = vld [vmem:[#allocation34 + $0x28] sm:$0xf]
    %v2437 = vld [vmem:[#allocation34 + $0x2c] sm:$0xf]
    %v2438 = vld [vmem:[#allocation34 + $0x30] sm:$0xf]
    %v2439 = vld [vmem:[#allocation34 + $0x34] sm:$0xf]
    %v2440 = vld [vmem:[#allocation34 + $0x38] sm:$0xf]
    %v2441 = vld [vmem:[#allocation34 + $0x3c] sm:$0xf]
    %v2442 = vld [vmem:[#allocation35] sm:$0x1]
    %v2444 = vlaneseq
    %v2445 = vshrl.u32 %v2444, 7
    %v2446 = vsub.s32 0, %v2445
    %v2447 = vrot.slane %v2442, %v2446
    %v2465 = vunpack.c.l.b16 %v2426
    %v2466 = vunpack.c.l.b16 %v2427
    %v2467 = vunpack.c.l.b16 %v2428
    %v2468 = vunpack.c.l.b16 %v2429
    %v2469 = vunpack.c.l.b16 %v2430
    %v2470 = vunpack.c.l.b16 %v2431
    %v2471 = vunpack.c.l.b16 %v2432
    %v2472 = vunpack.c.l.b16 %v2433
    %v2473 = vunpack.c.l.b16 %v2434
    %v2474 = vunpack.c.l.b16 %v2435
    %v2475 = vunpack.c.l.b16 %v2436
    %v2476 = vunpack.c.l.b16 %v2437
    %v2477 = vunpack.c.l.b16 %v2438
    %v2478 = vunpack.c.l.b16 %v2439
    %v2479 = vunpack.c.l.b16 %v2440
    %v2480 = vunpack.c.l.b16 %v2441
    %v2481 = vpack.c.b16 %v2466, %v2465
    %v2482 = vpack.c.b16 %v2468, %v2467
    %v2483 = vpack.c.b16 %v2470, %v2469
    %v2484 = vpack.c.b16 %v2472, %v2471
    %v2485 = vpack.c.b16 %v2474, %v2473
    %v2486 = vpack.c.b16 %v2476, %v2475
    %v2487 = vpack.c.b16 %v2478, %v2477
    %v2488 = vpack.c.b16 %v2480, %v2479
    %2497 = vmatprep.subr.bf16.mxu0 0
    %2498 = vmatpush1.bf16.msra.mxu0 %v2481
    %2499 = vmatprep.subr.bf16.mxu0 0
    %2500 = vmatpush1.bf16.msra.mxu0 %v2482
    %2501 = vmatprep.subr.bf16.mxu0 0
    %2502 = vmatpush1.bf16.msra.mxu0 %v2483
    %2503 = vmatprep.subr.bf16.mxu0 0
    %2504 = vmatpush1.bf16.msra.mxu0 %v2484
    %2505 = vmatprep.subr.bf16.mxu0 0
    %2506 = vmatpush1.bf16.msra.mxu0 %v2485
    %2507 = vmatprep.subr.bf16.mxu0 0
    %2508 = vmatpush1.bf16.msra.mxu0 %v2486
    %2509 = vmatprep.subr.bf16.mxu0 0
    %2510 = vmatpush1.bf16.msra.mxu0 %v2487
    %2511 = vmatprep.subr.bf16.mxu0 0
    %2512 = vmatpush1.bf16.msra.mxu0 %v2488
    %2513 = vmatprep.subr.bf16.mxu0 0
    %2514 = vmatpush1.bf16.msra.mxu0 0
    %2515 = vmatprep.subr.bf16.mxu0 0
    %2516 = vmatpush1.bf16.msra.mxu0 0
    %2517 = vmatprep.subr.bf16.mxu0 0
    %2518 = vmatpush1.bf16.msra.mxu0 0
    %2519 = vmatprep.subr.bf16.mxu0 0
    %2520 = vmatpush1.bf16.msra.mxu0 0
    %2521 = vmatprep.subr.bf16.mxu0 0
    %2522 = vmatpush1.bf16.msra.mxu0 0
    %2523 = vmatprep.subr.bf16.mxu0 0
    %2524 = vmatpush1.bf16.msra.mxu0 0
    %2525 = vmatprep.subr.bf16.mxu0 0
    %2526 = vmatpush1.bf16.msra.mxu0 0
    %2527 = vmatprep.subr.bf16.mxu0 0
    %2528 = vmatpush1.bf16.msra.mxu0 0
    %2529 = vmatprep.mubr.bf16.mxu0 0
    %2530 = vmatmul.mubr.bf16.gmra.mrb[0].mxu0 %v1667
    %v2531 = vpop.f32.mrb[0].mxu0
    %v2532 = vadd.f32 %v2447, %v2531
    %v2533 = vpop.f32.mrb[0].mxu0
    %v2534 = vpop.f32.mrb[0].mxu0
    %v2535 = vpop.f32.mrb[0].mxu0
    %2536 = vdwg.mxu0
    %v2537 = vtanh.pop %v2532
    %v2538 = vpack.c.bf16 %v2537, %v2537
    %v2539 = vld [vmem:[%s67] sm:$0xf]
    %v2540 = vld [vmem:[%s67 + $0x4] sm:$0xf]
    %v2541 = vld [vmem:[%s67 + $0x8] sm:$0xf]
    %v2542 = vld [vmem:[%s67 + $0xc] sm:$0xf]
    %v2543 = vld [vmem:[%s67 + $0x10] sm:$0xf]
    %v2544 = vld [vmem:[%s67 + $0x14] sm:$0xf]
    %v2545 = vld [vmem:[%s67 + $0x18] sm:$0xf]
    %v2546 = vld [vmem:[%s67 + $0x1c] sm:$0xf]
    %v2547 = vld [vmem:[%s67 + $0x20] sm:$0xf]
    %v2548 = vld [vmem:[%s67 + $0x24] sm:$0xf]
    %v2549 = vld [vmem:[%s67 + $0x28] sm:$0xf]
    %v2550 = vld [vmem:[%s67 + $0x2c] sm:$0xf]
    %v2551 = vld [vmem:[%s67 + $0x30] sm:$0xf]
    %v2552 = vld [vmem:[%s67 + $0x34] sm:$0xf]
    %v2553 = vld [vmem:[%s67 + $0x38] sm:$0xf]
    %v2554 = vld [vmem:[%s67 + $0x3c] sm:$0xf]
    %v2555 = vld [vmem:[%s69] sm:$0x1]
    %v2557 = vlaneseq
    %v2558 = vshrl.u32 %v2557, 7
    %v2559 = vsub.s32 0, %v2558
    %v2560 = vrot.slane %v2555, %v2559
    %v2578 = vunpack.c.l.b16 %v2539
    %v2579 = vunpack.c.l.b16 %v2540
    %v2580 = vunpack.c.l.b16 %v2541
    %v2581 = vunpack.c.l.b16 %v2542
    %v2582 = vunpack.c.l.b16 %v2543
    %v2583 = vunpack.c.l.b16 %v2544
    %v2584 = vunpack.c.l.b16 %v2545
    %v2585 = vunpack.c.l.b16 %v2546
    %v2586 = vunpack.c.l.b16 %v2547
    %v2587 = vunpack.c.l.b16 %v2548
    %v2588 = vunpack.c.l.b16 %v2549
    %v2589 = vunpack.c.l.b16 %v2550
    %v2590 = vunpack.c.l.b16 %v2551
    %v2591 = vunpack.c.l.b16 %v2552
    %v2592 = vunpack.c.l.b16 %v2553
    %v2593 = vunpack.c.l.b16 %v2554
    %v2594 = vpack.c.b16 %v2579, %v2578
    %v2595 = vpack.c.b16 %v2581, %v2580
    %v2596 = vpack.c.b16 %v2583, %v2582
    %v2597 = vpack.c.b16 %v2585, %v2584
    %v2598 = vpack.c.b16 %v2587, %v2586
    %v2599 = vpack.c.b16 %v2589, %v2588
    %v2600 = vpack.c.b16 %v2591, %v2590
    %v2601 = vpack.c.b16 %v2593, %v2592
    %2610 = vmatprep.subr.bf16.mxu0 0
    %2611 = vmatpush1.bf16.msra.mxu0 %v2594
    %2612 = vmatprep.subr.bf16.mxu0 0
    %2613 = vmatpush1.bf16.msra.mxu0 %v2595
    %2614 = vmatprep.subr.bf16.mxu0 0
    %2615 = vmatpush1.bf16.msra.mxu0 %v2596
    %2616 = vmatprep.subr.bf16.mxu0 0
    %2617 = vmatpush1.bf16.msra.mxu0 %v2597
    %2618 = vmatprep.subr.bf16.mxu0 0
    %2619 = vmatpush1.bf16.msra.mxu0 %v2598
    %2620 = vmatprep.subr.bf16.mxu0 0
    %2621 = vmatpush1.bf16.msra.mxu0 %v2599
    %2622 = vmatprep.subr.bf16.mxu0 0
    %2623 = vmatpush1.bf16.msra.mxu0 %v2600
    %2624 = vmatprep.subr.bf16.mxu0 0
    %2625 = vmatpush1.bf16.msra.mxu0 %v2601
    %2626 = vmatprep.subr.bf16.mxu0 0
    %2627 = vmatpush1.bf16.msra.mxu0 0
    %2628 = vmatprep.subr.bf16.mxu0 0
    %2629 = vmatpush1.bf16.msra.mxu0 0
    %2630 = vmatprep.subr.bf16.mxu0 0
    %2631 = vmatpush1.bf16.msra.mxu0 0
    %2632 = vmatprep.subr.bf16.mxu0 0
    %2633 = vmatpush1.bf16.msra.mxu0 0
    %2634 = vmatprep.subr.bf16.mxu0 0
    %2635 = vmatpush1.bf16.msra.mxu0 0
    %2636 = vmatprep.subr.bf16.mxu0 0
    %2637 = vmatpush1.bf16.msra.mxu0 0
    %2638 = vmatprep.subr.bf16.mxu0 0
    %2639 = vmatpush1.bf16.msra.mxu0 0
    %2640 = vmatprep.subr.bf16.mxu0 0
    %2641 = vmatpush1.bf16.msra.mxu0 0
    %2642 = vmatprep.mubr.bf16.mxu0 0
    %2643 = vmatmul.mubr.bf16.gmra.mrb[0].mxu0 %v2538
    %v2644 = vpop.f32.mrb[0].mxu0
    %v2645 = vadd.f32 %v2560, %v2644
    %v2646 = vpop.f32.mrb[0].mxu0
    %v2647 = vpop.f32.mrb[0].mxu0
    %v2648 = vpop.f32.mrb[0].mxu0
    %2649 = vdwg.mxu0
    %v2650 = vtanh.pop %v2645
    %v2651 = vpack.c.bf16 %v2650, %v2650
    %v2652 = vld [vmem:[%s71] sm:$0xff]
    %v2653 = vld [vmem:[%s71 + $0x8] sm:$0xff]
    %v2654 = vld [vmem:[%s71 + $0x10] sm:$0xff]
    %v2655 = vld [vmem:[%s71 + $0x18] sm:$0xff]
    %v2656 = vld [vmem:[%s71 + $0x20] sm:$0xff]
    %v2657 = vld [vmem:[%s71 + $0x28] sm:$0xff]
    %v2658 = vld [vmem:[%s71 + $0x30] sm:$0xff]
    %v2659 = vld [vmem:[%s71 + $0x38] sm:$0xff]
    %v2660 = vld [vmem:[%s71 + $0x40] sm:$0xff]
    %v2661 = vld [vmem:[%s71 + $0x48] sm:$0xff]
    %v2662 = vld [vmem:[%s71 + $0x50] sm:$0xff]
    %v2663 = vld [vmem:[%s71 + $0x58] sm:$0xff]
    %v2664 = vld [vmem:[%s71 + $0x60] sm:$0xff]
    %v2665 = vld [vmem:[%s71 + $0x68] sm:$0xff]
    %v2666 = vld [vmem:[%s71 + $0x70] sm:$0xff]
    %v2667 = vld [vmem:[%s71 + $0x78] sm:$0xff]
    %v2668 = vld [vmem:[%s73] sm:$0x3]
    %v2670 = vlaneseq
    %v2671 = vshrl.u32 %v2670, 7
    %v2672 = vsub.s32 0, %v2671
    %v2673 = vrot.slane %v2668, %v2672
    %v2674 = vlaneseq
    %v2675 = vshrl.u32 %v2674, 7
    %v2676 = vsub.s32 1, %v2675
    %v2677 = vrot.slane %v2668, %v2676
    %v2696 = vunpack.c.l.b16 %v2652
    %v2697 = vunpack.c.h.b16 %v2652
    %v2698 = vunpack.c.l.b16 %v2653
    %v2699 = vunpack.c.h.b16 %v2653
    %v2700 = vunpack.c.l.b16 %v2654
    %v2701 = vunpack.c.h.b16 %v2654
    %v2702 = vunpack.c.l.b16 %v2655
    %v2703 = vunpack.c.h.b16 %v2655
    %v2704 = vunpack.c.l.b16 %v2656
    %v2705 = vunpack.c.h.b16 %v2656
    %v2706 = vunpack.c.l.b16 %v2657
    %v2707 = vunpack.c.h.b16 %v2657
    %v2708 = vunpack.c.l.b16 %v2658
    %v2709 = vunpack.c.h.b16 %v2658
    %v2710 = vunpack.c.l.b16 %v2659
    %v2711 = vunpack.c.h.b16 %v2659
    %v2712 = vunpack.c.l.b16 %v2660
    %v2713 = vunpack.c.h.b16 %v2660
    %v2714 = vunpack.c.l.b16 %v2661
    %v2715 = vunpack.c.h.b16 %v2661
    %v2716 = vunpack.c.l.b16 %v2662
    %v2717 = vunpack.c.h.b16 %v2662
    %v2718 = vunpack.c.l.b16 %v2663
    %v2719 = vunpack.c.h.b16 %v2663
    %v2720 = vunpack.c.l.b16 %v2664
    %v2721 = vunpack.c.h.b16 %v2664
    %v2722 = vunpack.c.l.b16 %v2665
    %v2723 = vunpack.c.h.b16 %v2665
    %v2724 = vunpack.c.l.b16 %v2666
    %v2725 = vunpack.c.h.b16 %v2666
    %v2726 = vunpack.c.l.b16 %v2667
    %v2727 = vunpack.c.h.b16 %v2667
    %v2728 = vpack.c.b16 %v2698, %v2696
    %v2729 = vpack.c.b16 %v2699, %v2697
    %v2730 = vpack.c.b16 %v2702, %v2700
    %v2731 = vpack.c.b16 %v2703, %v2701
    %v2732 = vpack.c.b16 %v2706, %v2704
    %v2733 = vpack.c.b16 %v2707, %v2705
    %v2734 = vpack.c.b16 %v2710, %v2708
    %v2735 = vpack.c.b16 %v2711, %v2709
    %v2736 = vpack.c.b16 %v2714, %v2712
    %v2737 = vpack.c.b16 %v2715, %v2713
    %v2738 = vpack.c.b16 %v2718, %v2716
    %v2739 = vpack.c.b16 %v2719, %v2717
    %v2740 = vpack.c.b16 %v2722, %v2720
    %v2741 = vpack.c.b16 %v2723, %v2721
    %v2742 = vpack.c.b16 %v2726, %v2724
    %v2743 = vpack.c.b16 %v2727, %v2725
    %2760 = vmatprep.subr.bf16.mxu0 %v2729
    %2761 = vmatpush1.bf16.msra.mxu0 %v2728
    %2762 = vmatprep.subr.bf16.mxu0 %v2731
    %2763 = vmatpush1.bf16.msra.mxu0 %v2730
    %2764 = vmatprep.subr.bf16.mxu0 %v2733
    %2765 = vmatpush1.bf16.msra.mxu0 %v2732
    %2766 = vmatprep.subr.bf16.mxu0 %v2735
    %2767 = vmatpush1.bf16.msra.mxu0 %v2734
    %2768 = vmatprep.subr.bf16.mxu0 %v2737
    %2769 = vmatpush1.bf16.msra.mxu0 %v2736
    %2770 = vmatprep.subr.bf16.mxu0 %v2739
    %2771 = vmatpush1.bf16.msra.mxu0 %v2738
    %2772 = vmatprep.subr.bf16.mxu0 %v2741
    %2773 = vmatpush1.bf16.msra.mxu0 %v2740
    %2774 = vmatprep.subr.bf16.mxu0 %v2743
    %2775 = vmatpush1.bf16.msra.mxu0 %v2742
    %2776 = vmatprep.subr.bf16.mxu0 0
    %2777 = vmatpush1.bf16.msra.mxu0 0
    %2778 = vmatprep.subr.bf16.mxu0 0
    %2779 = vmatpush1.bf16.msra.mxu0 0
    %2780 = vmatprep.subr.bf16.mxu0 0
    %2781 = vmatpush1.bf16.msra.mxu0 0
    %2782 = vmatprep.subr.bf16.mxu0 0
    %2783 = vmatpush1.bf16.msra.mxu0 0
    %2784 = vmatprep.subr.bf16.mxu0 0
    %2785 = vmatpush1.bf16.msra.mxu0 0
    %2786 = vmatprep.subr.bf16.mxu0 0
    %2787 = vmatpush1.bf16.msra.mxu0 0
    %2788 = vmatprep.subr.bf16.mxu0 0
    %2789 = vmatpush1.bf16.msra.mxu0 0
    %2790 = vmatprep.subr.bf16.mxu0 0
    %2791 = vmatpush1.bf16.msra.mxu0 0
    %2792 = vmatprep.mubr.bf16.mxu0 0
    %2793 = vmatmul.mubr.bf16.gmra.mrb[0].mxu0 %v2651
    %v2794 = vpop.f32.mrb[0].mxu0
    %v2795 = vadd.f32 %v2673, %v2794
    %v2796 = vpop.f32.mrb[0].mxu0
    %v2797 = vadd.f32 %v2677, %v2796
    %v2798 = vpop.f32.mrb[0].mxu0
    %v2799 = vpop.f32.mrb[0].mxu0
    %2800 = vdwg.mxu0
    %v2801 = vtanh.pop %v2795
    %v2802 = vtanh.pop %v2797
    %2803 = vst [vmem:[#allocation43] sm:$0xff] %v2801
    %2804 = vst [vmem:[#allocation43 + $0x8] sm:$0xff] %v2802
    // Predicated region
    $region246: #{multimodal_autoencoder_forward.1} parent=1 // pred_check
      _
    $region247: #{multimodal_autoencoder_forward.1} parent=1 // pred_check_branch
      %2806 = sbr.rel (0) target = $region249
    $region248: #{multimodal_autoencoder_forward.1} parent=1 // pred_region
      %s2808 = ssub.s32 256, 256
      %2809 = vsyncadd [#allocation4], %s2808
      %s2811 = sshll.u32 [#allocation40], 4
      %s2812 = int_to_ptr.vmem [resolvable:$true] %s2811
      %2814 = dma.vmem_to_hbm [thread:$0]  %s2812, 256, %s75, [#allocation4]
    $region249: #{multimodal_autoencoder_forward.1} parent=1 // pred_fallthru
      _
    // Predicated region
    $region250: #{multimodal_autoencoder_forward.1} parent=1 // pred_check
      _
    $region251: #{multimodal_autoencoder_forward.1} parent=1 // pred_check_branch
      %2816 = sbr.rel (0) target = $region253
    $region252: #{multimodal_autoencoder_forward.1} parent=1 // pred_region
      %s2818 = ssub.s32 256, 256
      %2819 = vsyncadd [#allocation42], %s2818
      %s2821 = sshll.u32 [#allocation41], 4
      %s2822 = int_to_ptr.vmem [resolvable:$true] %s2821
      %2824 = dma.vmem_to_hbm [thread:$0]  %s2822, 256, %s77, [#allocation42]
    $region253: #{multimodal_autoencoder_forward.1} parent=1 // pred_fallthru
      _
    // Predicated region
    $region254: #{multimodal_autoencoder_forward.1} parent=1 // pred_check
      _
    $region255: #{multimodal_autoencoder_forward.1} parent=1 // pred_check_branch
      %2826 = sbr.rel (0) target = $region257
    $region256: #{multimodal_autoencoder_forward.1} parent=1 // pred_region
      %s2828 = ssub.s32 256, 256
      %2829 = vsyncadd [#allocation42], %s2828
      %s2831 = sshll.u32 [#allocation43], 4
      %s2832 = int_to_ptr.vmem [resolvable:$true] %s2831
      %2834 = dma.vmem_to_hbm [thread:$0]  %s2832, 256, %s79, [#allocation42]
    $region257: #{multimodal_autoencoder_forward.1} parent=1 // pred_fallthru
      _
    // Predicated region
    $region258: #{multimodal_autoencoder_forward.1} parent=1 // pred_check
      _
    $region259: #{multimodal_autoencoder_forward.1} parent=1 // pred_check_branch
      %2836 = sbr.rel (0) target = $region261
    $region260: #{multimodal_autoencoder_forward.1} parent=1 // pred_region
      %s2838 = ssub.s32 128, 128
      %2839 = vsyncadd [#allocation45], %s2838
      %s2841 = sshll.u32 [#allocation44], 4
      %s2842 = int_to_ptr.vmem [resolvable:$true] %s2841
      %2844 = dma.vmem_to_hbm [thread:$0]  %s2842, 128, %s81, [#allocation45]
    $region261: #{multimodal_autoencoder_forward.1} parent=1 // pred_fallthru
      _
    // Predicated region
    $region262: #{multimodal_autoencoder_forward.1} parent=1 // pred_check
      _
    $region263: #{multimodal_autoencoder_forward.1} parent=1 // pred_check_branch
      %2846 = sbr.rel (0) target = $region265
    $region264: #{multimodal_autoencoder_forward.1} parent=1 // pred_region
      %2847 = dma.done [#allocation4], 256
    $region265: #{multimodal_autoencoder_forward.1} parent=1 // pred_fallthru
      _
    // Predicated region
    $region266: #{multimodal_autoencoder_forward.1} parent=1 // pred_check
      _
    $region267: #{multimodal_autoencoder_forward.1} parent=1 // pred_check_branch
      %2849 = sbr.rel (0) target = $region269
    $region268: #{multimodal_autoencoder_forward.1} parent=1 // pred_region
      %2850 = dma.done [#allocation42], 256
    $region269: #{multimodal_autoencoder_forward.1} parent=1 // pred_fallthru
      _
    // Predicated region
    $region270: #{multimodal_autoencoder_forward.1} parent=1 // pred_check
      _
    $region271: #{multimodal_autoencoder_forward.1} parent=1 // pred_check_branch
      %2852 = sbr.rel (0) target = $region273
    $region272: #{multimodal_autoencoder_forward.1} parent=1 // pred_region
      %2853 = dma.done [#allocation42], 256
    $region273: #{multimodal_autoencoder_forward.1} parent=1 // pred_fallthru
      _
    // Predicated region
    $region274: #{multimodal_autoencoder_forward.1} parent=1 // pred_check
      _
    $region275: #{multimodal_autoencoder_forward.1} parent=1 // pred_check_branch
      %2855 = sbr.rel (0) target = $region277
    $region276: #{multimodal_autoencoder_forward.1} parent=1 // pred_region
      %2856 = dma.done [#allocation45], 128
    $region277: #{multimodal_autoencoder_forward.1} parent=1 // pred_fallthru
      _
    %2857 = vsyncpa [#allocation3], 1
    %2858 = vsyncpa [#allocation6], 1
    %2859 = vsyncpa [#allocation9], 1
    %2860 = vsyncpa [#allocation12], 1
    %2861 = vsyncpa [#allocation15], 1
    %2862 = vsyncpa [#allocation18], 1
    %2863 = vsyncpa [#allocation21], 1
    %2864 = vsyncpa [#allocation24], 1
    %2865 = vsyncpa [#allocation27], 1
    %2866 = vsyncpa [#allocation30], 1
    %2867 = vsyncpa [#allocation33], 1
    %2868 = vsyncpa [#allocation36], 1
    %2869 = vsyncpa [#allocation39], 1
    %2870 = vsyncpa [#allocation4], 1
    %2871 = vsyncpa [#allocation42], 1
    %2872 = vsyncpa [#allocation45], 1

</llo_original>
